<compile_context>
chip_gen: v7x
topology: tpu7x:2x2x1
jax: 0.10.0
libtpu: 0.0.40
codegen_flags: <defaults>
</compile_context>

<pallas_src>
import math
import functools

import numpy as np
import jax
import jax.numpy as jnp
from jax.experimental import pallas as pl
from jax.experimental.pallas import tpu as pltpu

# ---- small, module-consistent sizes -----------------------------------------
N_HEADS = 4
EMBED = 32
N_LAYERS = 2
NODE_DIM = 3          # e.g. node coordinates
FF_HIDDEN = 64        # feed_forward_hidden (default 512 in the module; kept small)
BATCH = 2
GRAPH = 8
KEY_DIM = EMBED // N_HEADS
VAL_DIM = EMBED // N_HEADS
BN_EPS = 1e-5


def _vmem_spec():
    return pl.BlockSpec(memory_space=pltpu.MemorySpace.VMEM)


def _batchnorm(h, w, b):
    # BatchNorm1d training-mode forward: batch stats over all rows, biased variance.
    mean = jnp.mean(h, axis=0, keepdims=True)
    var = jnp.mean((h - mean) ** 2, axis=0, keepdims=True)
    return (h - mean) * jax.lax.rsqrt(var + BN_EPS) * w + b


# ---- fused encoder kernel ----------------------------------------------------
def encoder_kernel(x_ref, xbias_ref, iw_ref, ib_ref,
                   wq_ref, wk_ref, wv_ref, wo_ref,
                   bn1w_ref, bn1b_ref,
                   w1_ref, b1_ref, w2_ref, b2_ref,
                   bn2w_ref, bn2b_ref,
                   h_out_ref, mean_out_ref,
                   *, batch, graph, n_heads, key_dim, val_dim, n_layers):
    rows = batch * graph
    embed = iw_ref.shape[1]
    norm = 1.0 / math.sqrt(key_dim)

    # ---- init_embed: Linear(node_dim, embed).  K=3 contraction -> VPU FMAs. ----
    x = x_ref[...]                              # (R, node_dim) f32
    iw = iw_ref[...]                            # (node_dim, E) f32
    h = ib_ref[...]                             # (1, E) -> broadcasts to (R, E)
    for d in range(x_ref.shape[1]):
        h = h + x[:, d:d + 1] * iw[d:d + 1, :]

    # Block-diagonal additive bias (-1e30 off the per-graph diagonal blocks):
    # lets all heads attend over the full R=B*N key axis while exactly reproducing
    # per-batch softmax (cross-batch entries underflow to probability 0).
    xbias = xbias_ref[...]                      # (R, R) f32

    # ---- N_LAYERS MultiHeadAttentionLayers, statically unrolled ----
    for l in range(n_layers):
        wq = wq_ref[l]                          # (H, E, K) bf16
        wk = wk_ref[l]
        wv = wv_ref[l]                          # (H, E, V) bf16
        wo = wo_ref[l]                          # (H, V, E) bf16

        # Head-batched projections: head dim on the leading (major) axis, one
        # leading-batch-dim dot_general each (no lane slicing).
        h_bf = h.astype(jnp.bfloat16)
        h_bcast = jnp.broadcast_to(h_bf, (n_heads, rows, embed))     # (H, R, E)

        q = jnp.einsum('hre,hek->hrk', h_bcast, wq,
                       preferred_element_type=jnp.float32)           # (H, R, K)
        k = jnp.einsum('hre,hek->hrk', h_bcast, wk,
                       preferred_element_type=jnp.float32)           # (H, R, K)
        v = jnp.einsum('hre,hev->hrv', h_bcast, wv,
                       preferred_element_type=jnp.float32)           # (H, R, V)

        # Scores + softmax (f32), heads batched on the leading axis.
        s = norm * jnp.einsum('hqk,hmk->hqm',
                              q.astype(jnp.bfloat16), k.astype(jnp.bfloat16),
                              preferred_element_type=jnp.float32)    # (H, R, R)
        s = s + xbias
        s = s - jnp.max(s, axis=-1, keepdims=True)
        e = jnp.exp(s)
        # approx reciprocal uses the EUP slot; ~2^-12 rel. error vs exact divide.
        attn = e * pl.reciprocal(jnp.sum(e, axis=-1, keepdims=True), approx=True)

        ctx = jnp.einsum('hqm,hmv->hqv',
                         attn.astype(jnp.bfloat16), v.astype(jnp.bfloat16),
                         preferred_element_type=jnp.float32)          # (H, R, V)

        # Output projection folded per head and summed over heads:
        # sum_h ctx_h @ Wout_h == concat_h(ctx_h) @ Wout.view(H*V, E)  (no concat).
        mha = jnp.sum(jnp.einsum('hrv,hve->hre', ctx.astype(jnp.bfloat16), wo,
                                 preferred_element_type=jnp.float32), axis=0)

        # skip + BatchNorm #1
        h1 = _batchnorm(h + mha, bn1w_ref[l], bn1b_ref[l])

        # feed-forward + skip + BatchNorm #2 (bf16 MXU operands, f32 elementwise)
        ff = jnp.dot(h1.astype(jnp.bfloat16), w1_ref[l],
                     preferred_element_type=jnp.float32) + b1_ref[l]
        ff = jnp.maximum(ff, 0.0)
        ff = jnp.dot(ff.astype(jnp.bfloat16), w2_ref[l],
                     preferred_element_type=jnp.float32) + b2_ref[l]
        h = _batchnorm(h1 + ff, bn2w_ref[l], bn2b_ref[l])

    # ---- outputs --------------------------------------------------------------
    h3 = h.reshape(batch, graph, embed)                    # (B, N, E) (major split)
    # Lane-dense node-embedding slab: last dim N*E = 256 (128-multiple) -> unmasked
    # stores.  Built once with static sublane selects + a lane concat.
    h_out_ref[...] = jnp.concatenate([h3[:, n, :] for n in range(graph)], axis=-1)
    mean_out_ref[...] = jnp.mean(h3, axis=1)               # h.mean(dim=1)


# ---- static cost estimate ------------------------------------------------------
def _encoder_cost(B, N, E, H, K, V, F, L, node_dim):
    R = B * N
    flops = 2 * R * node_dim * E
    per_layer = (3 * 2 * H * R * E * K          # q / k / v projections
                 + 2 * H * R * R * K            # scores
                 + 2 * H * R * R * V            # attn @ v
                 + 2 * H * R * V * E            # output projection
                 + 2 * R * E * F + 2 * R * F * E  # feed-forward
                 + 16 * R * E)                  # skips, BN, softmax bookkeeping (rough)
    flops += L * per_layer
    transcendentals = L * (H * R * R + H * R + 4 * E)   # exp + recip + rsqrt
    return int(flops), int(transcendentals)


# ---- wrapper -----------------------------------------------------------------
@jax.jit
def graph_attention_encoder(x, params):
    B, N, node_dim = x.shape
    xf = x.reshape(B * N, node_dim)

    E = params['init_w'].shape[1]
    L, H, _, K = params['wq'].shape
    V = params['wv'].shape[3]
    F = params['w1'].shape[2]

    # Static block-diagonal attention bias (0 within a graph, -1e30 across graphs).
    row = np.arange(B * N) // N
    xbias = np.where(row[:, None] == row[None, :], 0.0, -1e30).astype(np.float32)

    kernel = functools.partial(
        encoder_kernel, batch=B, graph=N, n_heads=H,
        key_dim=K, val_dim=V, n_layers=L)

    args = (xf, xbias, params['init_w'], params['init_b'],
            params['wq'], params['wk'], params['wv'], params['wo'],
            params['bn1_w'], params['bn1_b'],
            params['w1'], params['b1'], params['w2'], params['b2'],
            params['bn2_w'], params['bn2_b'])

    flops, transcendentals = _encoder_cost(B, N, E, H, K, V, F, L, node_dim)
    bytes_accessed = (sum(int(a.size) * a.dtype.itemsize for a in args)
                      + (B * N * E + B * E) * 4)
    cost = pl.CostEstimate(flops=flops, transcendentals=transcendentals,
                           bytes_accessed=int(bytes_accessed))

    h_slab, h_mean = pl.pallas_call(
        kernel,
        out_shape=(jax.ShapeDtypeStruct((B, N * E), jnp.float32),   # lane-dense slab
                   jax.ShapeDtypeStruct((B, E), jnp.float32)),
        in_specs=[_vmem_spec() for _ in args],
        out_specs=(_vmem_spec(), _vmem_spec()),
        cost_estimate=cost,
    )(*args)

    return h_slab.reshape(B, N, E), h_mean


# ---- deterministic parameters (kernel-ready layouts, prepared ONCE here) ------
def init_params(key):
    def uni(k, shape, stdv):
        return jax.random.uniform(k, shape, jnp.float32, -stdv, stdv)

    keys = jax.random.split(key, 1 + N_LAYERS)
    k_iw, k_ib = jax.random.split(keys[0])
    s = 1.0 / math.sqrt(NODE_DIM)
    params = {
        'init_w': uni(k_iw, (NODE_DIM, EMBED), s),       # Linear(node_dim, embed)
        'init_b': uni(k_ib, (1, EMBED), s),
    }

    wq, wk, wv, wo, w1, b1, w2, b2 = ([] for _ in range(8))
    for i in range(N_LAYERS):
        ks = jax.random.split(keys[1 + i], 8)
        wq.append(uni(ks[0], (N_HEADS, EMBED, KEY_DIM), 1.0 / math.sqrt(KEY_DIM)))
        wk.append(uni(ks[1], (N_HEADS, EMBED, KEY_DIM), 1.0 / math.sqrt(KEY_DIM)))
        wv.append(uni(ks[2], (N_HEADS, EMBED, VAL_DIM), 1.0 / math.sqrt(VAL_DIM)))
        wo.append(uni(ks[3], (N_HEADS, VAL_DIM, EMBED), 1.0 / math.sqrt(EMBED)))
        w1.append(uni(ks[4], (EMBED, FF_HIDDEN), 1.0 / math.sqrt(EMBED)))
        b1.append(uni(ks[5], (1, FF_HIDDEN), 1.0 / math.sqrt(EMBED)))
        w2.append(uni(ks[6], (FF_HIDDEN, EMBED), 1.0 / math.sqrt(FF_HIDDEN)))
        b2.append(uni(ks[7], (1, EMBED), 1.0 / math.sqrt(FF_HIDDEN)))

    stack = lambda xs: jnp.stack(xs, axis=0)
    # MXU-only weights stored bf16 (f32 accumulation in-kernel); biases / BN stay f32.
    params.update({
        'wq': stack(wq).astype(jnp.bfloat16),            # (L, H, E, K)
        'wk': stack(wk).astype(jnp.bfloat16),             # (L, H, E, K)
        'wv': stack(wv).astype(jnp.bfloat16),             # (L, H, E, V)
        'wo': stack(wo).astype(jnp.bfloat16),              # (L, H, V, E)
        'w1': stack(w1).astype(jnp.bfloat16),              # (L, E, F)
        'b1': stack(b1),                                   # (L, 1, F)
        'w2': stack(w2).astype(jnp.bfloat16),              # (L, F, E)
        'b2': stack(b2),                                   # (L, 1, E)
        # BatchNorm1d affine (PyTorch default init: weight=1, bias=0)
        'bn1_w': jnp.ones((N_LAYERS, 1, EMBED), jnp.float32),
        'bn1_b': jnp.zeros((N_LAYERS, 1, EMBED), jnp.float32),
        'bn2_w': jnp.ones((N_LAYERS, 1, EMBED), jnp.float32),
        'bn2_b': jnp.zeros((N_LAYERS, 1, EMBED), jnp.float32),
    })
    return params


if __name__ == "__main__":
    key = jax.random.PRNGKey(0)
    k_x, k_p = jax.random.split(key)
    x = jax.random.normal(k_x, (BATCH, GRAPH, NODE_DIM), jnp.float32)
    params = init_params(k_p)

    h_nodes, h_mean = graph_attention_encoder(x, params)
    jax.block_until_ready((h_nodes, h_mean))

    assert h_nodes.shape == (BATCH, GRAPH, EMBED)
    assert h_mean.shape == (BATCH, EMBED)
    assert bool(jnp.all(jnp.isfinite(h_nodes))) and bool(jnp.all(jnp.isfinite(h_mean)))
    print("KERNEL_OK")
</pallas_src>

<mosaic_0001>
module attributes {stable_mosaic.version = 11 : i64} {
  func.func @encoder_kernel(%arg0: memref<16x3xf32, #tpu.memory_space<vmem>>, %arg1: memref<16x16xf32, #tpu.memory_space<vmem>>, %arg2: memref<3x32xf32, #tpu.memory_space<vmem>>, %arg3: memref<1x32xf32, #tpu.memory_space<vmem>>, %arg4: memref<2x4x32x8xbf16, #tpu.memory_space<vmem>>, %arg5: memref<2x4x32x8xbf16, #tpu.memory_space<vmem>>, %arg6: memref<2x4x32x8xbf16, #tpu.memory_space<vmem>>, %arg7: memref<2x4x8x32xbf16, #tpu.memory_space<vmem>>, %arg8: memref<2x1x32xf32, #tpu.memory_space<vmem>>, %arg9: memref<2x1x32xf32, #tpu.memory_space<vmem>>, %arg10: memref<2x32x64xbf16, #tpu.memory_space<vmem>>, %arg11: memref<2x1x64xf32, #tpu.memory_space<vmem>>, %arg12: memref<2x64x32xbf16, #tpu.memory_space<vmem>>, %arg13: memref<2x1x32xf32, #tpu.memory_space<vmem>>, %arg14: memref<2x1x32xf32, #tpu.memory_space<vmem>>, %arg15: memref<2x1x32xf32, #tpu.memory_space<vmem>>, %arg16: memref<2x256xf32, #tpu.memory_space<vmem>>, %arg17: memref<2x32xf32, #tpu.memory_space<vmem>>) attributes {dimension_semantics = [], scalar_prefetch = 0 : i64, scratch_operands = 0 : i64, tpu.core_type = #tpu.core_type<tc>} {
    %c0 = arith.constant 0 : index
    %c0_0 = arith.constant 0 : index
    %0 = vector.load %arg0[%c0, %c0_0] : memref<16x3xf32, #tpu.memory_space<vmem>>, vector<16x3xf32>
    %c0_1 = arith.constant 0 : index
    %c0_2 = arith.constant 0 : index
    %1 = vector.load %arg2[%c0_1, %c0_2] : memref<3x32xf32, #tpu.memory_space<vmem>>, vector<3x32xf32>
    %c0_3 = arith.constant 0 : index
    %c0_4 = arith.constant 0 : index
    %2 = vector.load %arg3[%c0_3, %c0_4] : memref<1x32xf32, #tpu.memory_space<vmem>>, vector<1x32xf32>
    %3 = vector.extract_strided_slice %0 {offsets = [0, 0], sizes = [16, 1], strides = [1, 1]} : vector<16x3xf32> to vector<16x1xf32>
    %4 = vector.extract_strided_slice %1 {offsets = [0, 0], sizes = [1, 32], strides = [1, 1]} : vector<3x32xf32> to vector<1x32xf32>
    %5 = vector.broadcast %3 : vector<16x1xf32> to vector<16x32xf32>
    %6 = vector.broadcast %4 : vector<1x32xf32> to vector<16x32xf32>
    %7 = arith.mulf %5, %6 : vector<16x32xf32>
    %8 = vector.broadcast %2 : vector<1x32xf32> to vector<16x32xf32>
    %9 = arith.addf %8, %7 : vector<16x32xf32>
    %10 = vector.extract_strided_slice %0 {offsets = [0, 1], sizes = [16, 1], strides = [1, 1]} : vector<16x3xf32> to vector<16x1xf32>
    %11 = vector.extract_strided_slice %1 {offsets = [1, 0], sizes = [1, 32], strides = [1, 1]} : vector<3x32xf32> to vector<1x32xf32>
    %12 = vector.broadcast %10 : vector<16x1xf32> to vector<16x32xf32>
    %13 = vector.broadcast %11 : vector<1x32xf32> to vector<16x32xf32>
    %14 = arith.mulf %12, %13 : vector<16x32xf32>
    %15 = arith.addf %9, %14 : vector<16x32xf32>
    %16 = vector.extract_strided_slice %0 {offsets = [0, 2], sizes = [16, 1], strides = [1, 1]} : vector<16x3xf32> to vector<16x1xf32>
    %17 = vector.extract_strided_slice %1 {offsets = [2, 0], sizes = [1, 32], strides = [1, 1]} : vector<3x32xf32> to vector<1x32xf32>
    %18 = vector.broadcast %16 : vector<16x1xf32> to vector<16x32xf32>
    %19 = vector.broadcast %17 : vector<1x32xf32> to vector<16x32xf32>
    %20 = arith.mulf %18, %19 : vector<16x32xf32>
    %21 = arith.addf %15, %20 : vector<16x32xf32>
    %c0_5 = arith.constant 0 : index
    %c0_6 = arith.constant 0 : index
    %22 = vector.load %arg1[%c0_5, %c0_6] : memref<16x16xf32, #tpu.memory_space<vmem>>, vector<16x16xf32>
    %c0_7 = arith.constant 0 : index
    %c0_8 = arith.constant 0 : index
    %c0_9 = arith.constant 0 : index
    %c0_10 = arith.constant 0 : index
    %23 = vector.load %arg4[%c0_7, %c0_8, %c0_9, %c0_10] : memref<2x4x32x8xbf16, #tpu.memory_space<vmem>>, vector<1x4x32x8xbf16>
    %24 = vector.shape_cast %23 : vector<1x4x32x8xbf16> to vector<4x32x8xbf16>
    %c0_11 = arith.constant 0 : index
    %c0_12 = arith.constant 0 : index
    %c0_13 = arith.constant 0 : index
    %c0_14 = arith.constant 0 : index
    %25 = vector.load %arg5[%c0_11, %c0_12, %c0_13, %c0_14] : memref<2x4x32x8xbf16, #tpu.memory_space<vmem>>, vector<1x4x32x8xbf16>
    %26 = vector.shape_cast %25 : vector<1x4x32x8xbf16> to vector<4x32x8xbf16>
    %c0_15 = arith.constant 0 : index
    %c0_16 = arith.constant 0 : index
    %c0_17 = arith.constant 0 : index
    %c0_18 = arith.constant 0 : index
    %27 = vector.load %arg6[%c0_15, %c0_16, %c0_17, %c0_18] : memref<2x4x32x8xbf16, #tpu.memory_space<vmem>>, vector<1x4x32x8xbf16>
    %28 = vector.shape_cast %27 : vector<1x4x32x8xbf16> to vector<4x32x8xbf16>
    %c0_19 = arith.constant 0 : index
    %c0_20 = arith.constant 0 : index
    %c0_21 = arith.constant 0 : index
    %c0_22 = arith.constant 0 : index
    %29 = vector.load %arg7[%c0_19, %c0_20, %c0_21, %c0_22] : memref<2x4x8x32xbf16, #tpu.memory_space<vmem>>, vector<1x4x8x32xbf16>
    %30 = vector.shape_cast %29 : vector<1x4x8x32xbf16> to vector<4x8x32xbf16>
    %31 = arith.truncf %21 : vector<16x32xf32> to vector<16x32xbf16>
    %32 = vector.shape_cast %31 : vector<16x32xbf16> to vector<1x16x32xbf16>
    %33 = vector.broadcast %32 : vector<1x16x32xbf16> to vector<4x16x32xbf16>
    "tpu.trace_start"() <{level = 10 : i32, message = "hre,hek->hrk"}> : () -> ()
    %cst = arith.constant dense<0.000000e+00> : vector<4x16x8xf32>
    %34 = tpu.matmul %33, %24, %cst {dimension_numbers = #tpu.dot_dimension_numbers<[2], [1], [1], [2], [0, 0, 0, 1, 1, 2], [0], [0]>} : vector<4x16x32xbf16>, vector<4x32x8xbf16>, vector<4x16x8xf32> -> vector<4x16x8xf32>
    %cst_23 = arith.constant dense<0.000000e+00> : vector<4x16x8xf32>
    %35 = tpu.matmul %33, %26, %cst_23 {dimension_numbers = #tpu.dot_dimension_numbers<[2], [1], [1], [2], [0, 0, 0, 1, 1, 2], [0], [0]>} : vector<4x16x32xbf16>, vector<4x32x8xbf16>, vector<4x16x8xf32> -> vector<4x16x8xf32>
    "tpu.trace_stop"() : () -> ()
    "tpu.trace_start"() <{level = 10 : i32, message = "hre,hev->hrv"}> : () -> ()
    %cst_24 = arith.constant dense<0.000000e+00> : vector<4x16x8xf32>
    %36 = tpu.matmul %33, %28, %cst_24 {dimension_numbers = #tpu.dot_dimension_numbers<[2], [1], [1], [2], [0, 0, 0, 1, 1, 2], [0], [0]>} : vector<4x16x32xbf16>, vector<4x32x8xbf16>, vector<4x16x8xf32> -> vector<4x16x8xf32>
    "tpu.trace_stop"() : () -> ()
    %37 = arith.truncf %34 : vector<4x16x8xf32> to vector<4x16x8xbf16>
    %38 = arith.truncf %35 : vector<4x16x8xf32> to vector<4x16x8xbf16>
    "tpu.trace_start"() <{level = 10 : i32, message = "hqk,hmk->hqm"}> : () -> ()
    %cst_25 = arith.constant dense<0.000000e+00> : vector<4x16x16xf32>
    %39 = tpu.matmul %37, %38, %cst_25 {dimension_numbers = #tpu.dot_dimension_numbers<[2], [2], [1], [1], [0, 0, 0, 1, 1, 1], [0], [0]>} : vector<4x16x8xbf16>, vector<4x16x8xbf16>, vector<4x16x16xf32> -> vector<4x16x16xf32>
    "tpu.trace_stop"() : () -> ()
    %cst_26 = arith.constant 0.353553385 : f32
    %40 = vector.broadcast %cst_26 : f32 to vector<4x16x16xf32>
    %41 = arith.mulf %40, %39 : vector<4x16x16xf32>
    %42 = vector.shape_cast %22 : vector<16x16xf32> to vector<1x16x16xf32>
    %43 = vector.broadcast %42 : vector<1x16x16xf32> to vector<4x16x16xf32>
    %44 = arith.addf %41, %43 : vector<4x16x16xf32>
    %cst_27 = arith.constant dense<0xFF800000> : vector<4x16xf32>
    %45 = vector.multi_reduction <maximumf>, %44, %cst_27 [2] : vector<4x16x16xf32> to vector<4x16xf32>
    %46 = vector.shape_cast %45 : vector<4x16xf32> to vector<4x16x1xf32>
    %47 = vector.broadcast %46 : vector<4x16x1xf32> to vector<4x16x16xf32>
    %48 = arith.subf %44, %47 : vector<4x16x16xf32>
    %49 = math.exp %48 : vector<4x16x16xf32>
    %cst_28 = arith.constant dense<0.000000e+00> : vector<4x16xf32>
    %50 = vector.multi_reduction <add>, %49, %cst_28 [2] : vector<4x16x16xf32> to vector<4x16xf32>
    %51 = vector.shape_cast %50 : vector<4x16xf32> to vector<4x16x1xf32>
    %52 = tpu.reciprocal %51 {approx = true} : vector<4x16x1xf32> -> vector<4x16x1xf32>
    %53 = vector.broadcast %52 : vector<4x16x1xf32> to vector<4x16x16xf32>
    %54 = arith.mulf %49, %53 : vector<4x16x16xf32>
    %55 = arith.truncf %54 : vector<4x16x16xf32> to vector<4x16x16xbf16>
    %56 = arith.truncf %36 : vector<4x16x8xf32> to vector<4x16x8xbf16>
    "tpu.trace_start"() <{level = 10 : i32, message = "hqm,hmv->hqv"}> : () -> ()
    %cst_29 = arith.constant dense<0.000000e+00> : vector<4x16x8xf32>
    %57 = tpu.matmul %55, %56, %cst_29 {dimension_numbers = #tpu.dot_dimension_numbers<[2], [1], [1], [2], [0, 0, 0, 1, 1, 2], [0], [0]>} : vector<4x16x16xbf16>, vector<4x16x8xbf16>, vector<4x16x8xf32> -> vector<4x16x8xf32>
    "tpu.trace_stop"() : () -> ()
    %58 = arith.truncf %57 : vector<4x16x8xf32> to vector<4x16x8xbf16>
    "tpu.trace_start"() <{level = 10 : i32, message = "hrv,hve->hre"}> : () -> ()
    %cst_30 = arith.constant dense<0.000000e+00> : vector<4x16x32xf32>
    %59 = tpu.matmul %58, %30, %cst_30 {dimension_numbers = #tpu.dot_dimension_numbers<[2], [1], [1], [2], [0, 0, 0, 1, 1, 2], [0], [0]>} : vector<4x16x8xbf16>, vector<4x8x32xbf16>, vector<4x16x32xf32> -> vector<4x16x32xf32>
    "tpu.trace_stop"() : () -> ()
    %cst_31 = arith.constant dense<0.000000e+00> : vector<16x32xf32>
    %60 = vector.multi_reduction <add>, %59, %cst_31 [0] : vector<4x16x32xf32> to vector<16x32xf32>
    %61 = arith.addf %21, %60 : vector<16x32xf32>
    %c0_32 = arith.constant 0 : index
    %c0_33 = arith.constant 0 : index
    %c0_34 = arith.constant 0 : index
    %62 = vector.load %arg8[%c0_32, %c0_33, %c0_34] : memref<2x1x32xf32, #tpu.memory_space<vmem>>, vector<1x1x32xf32>
    %63 = vector.shape_cast %62 : vector<1x1x32xf32> to vector<1x32xf32>
    %c0_35 = arith.constant 0 : index
    %c0_36 = arith.constant 0 : index
    %c0_37 = arith.constant 0 : index
    %64 = vector.load %arg9[%c0_35, %c0_36, %c0_37] : memref<2x1x32xf32, #tpu.memory_space<vmem>>, vector<1x1x32xf32>
    %65 = vector.shape_cast %64 : vector<1x1x32xf32> to vector<1x32xf32>
    %cst_38 = arith.constant dense<0.000000e+00> : vector<32xf32>
    %66 = vector.multi_reduction <add>, %61, %cst_38 [0] : vector<16x32xf32> to vector<32xf32>
    %67 = vector.shape_cast %66 : vector<32xf32> to vector<1x32xf32>
    %cst_39 = arith.constant 1.600000e+01 : f32
    %68 = vector.broadcast %cst_39 : f32 to vector<1x32xf32>
    %69 = arith.divf %67, %68 : vector<1x32xf32>
    %70 = vector.broadcast %69 : vector<1x32xf32> to vector<16x32xf32>
    %71 = arith.subf %61, %70 : vector<16x32xf32>
    %72 = arith.mulf %71, %71 : vector<16x32xf32>
    %cst_40 = arith.constant dense<0.000000e+00> : vector<32xf32>
    %73 = vector.multi_reduction <add>, %72, %cst_40 [0] : vector<16x32xf32> to vector<32xf32>
    %74 = vector.shape_cast %73 : vector<32xf32> to vector<1x32xf32>
    %cst_41 = arith.constant 1.600000e+01 : f32
    %75 = vector.broadcast %cst_41 : f32 to vector<1x32xf32>
    %76 = arith.divf %74, %75 : vector<1x32xf32>
    %77 = vector.broadcast %69 : vector<1x32xf32> to vector<16x32xf32>
    %78 = arith.subf %61, %77 : vector<16x32xf32>
    %cst_42 = arith.constant 9.99999974E-6 : f32
    %79 = vector.broadcast %cst_42 : f32 to vector<1x32xf32>
    %80 = arith.addf %76, %79 : vector<1x32xf32>
    %81 = math.rsqrt %80 : vector<1x32xf32>
    %82 = vector.broadcast %81 : vector<1x32xf32> to vector<16x32xf32>
    %83 = arith.mulf %78, %82 : vector<16x32xf32>
    %84 = vector.broadcast %63 : vector<1x32xf32> to vector<16x32xf32>
    %85 = arith.mulf %83, %84 : vector<16x32xf32>
    %86 = vector.broadcast %65 : vector<1x32xf32> to vector<16x32xf32>
    %87 = arith.addf %85, %86 : vector<16x32xf32>
    %88 = arith.truncf %87 : vector<16x32xf32> to vector<16x32xbf16>
    %c0_43 = arith.constant 0 : index
    %c0_44 = arith.constant 0 : index
    %c0_45 = arith.constant 0 : index
    %89 = vector.load %arg10[%c0_43, %c0_44, %c0_45] : memref<2x32x64xbf16, #tpu.memory_space<vmem>>, vector<1x32x64xbf16>
    %90 = vector.shape_cast %89 : vector<1x32x64xbf16> to vector<32x64xbf16>
    %cst_46 = arith.constant dense<0.000000e+00> : vector<16x64xf32>
    %91 = tpu.matmul %88, %90, %cst_46 {dimension_numbers = #tpu.dot_dimension_numbers<[1], [0], [0], [1], [0, 0, 1, 1], [], []>} : vector<16x32xbf16>, vector<32x64xbf16>, vector<16x64xf32> -> vector<16x64xf32>
    %c0_47 = arith.constant 0 : index
    %c0_48 = arith.constant 0 : index
    %c0_49 = arith.constant 0 : index
    %92 = vector.load %arg11[%c0_47, %c0_48, %c0_49] : memref<2x1x64xf32, #tpu.memory_space<vmem>>, vector<1x1x64xf32>
    %93 = vector.shape_cast %92 : vector<1x1x64xf32> to vector<1x64xf32>
    %94 = vector.broadcast %93 : vector<1x64xf32> to vector<16x64xf32>
    %95 = arith.addf %91, %94 : vector<16x64xf32>
    %cst_50 = arith.constant 0.000000e+00 : f32
    %96 = vector.broadcast %cst_50 : f32 to vector<16x64xf32>
    %97 = arith.maximumf %95, %96 : vector<16x64xf32>
    %98 = arith.truncf %97 : vector<16x64xf32> to vector<16x64xbf16>
    %c0_51 = arith.constant 0 : index
    %c0_52 = arith.constant 0 : index
    %c0_53 = arith.constant 0 : index
    %99 = vector.load %arg12[%c0_51, %c0_52, %c0_53] : memref<2x64x32xbf16, #tpu.memory_space<vmem>>, vector<1x64x32xbf16>
    %100 = vector.shape_cast %99 : vector<1x64x32xbf16> to vector<64x32xbf16>
    %cst_54 = arith.constant dense<0.000000e+00> : vector<16x32xf32>
    %101 = tpu.matmul %98, %100, %cst_54 {dimension_numbers = #tpu.dot_dimension_numbers<[1], [0], [0], [1], [0, 0, 1, 1], [], []>} : vector<16x64xbf16>, vector<64x32xbf16>, vector<16x32xf32> -> vector<16x32xf32>
    %c0_55 = arith.constant 0 : index
    %c0_56 = arith.constant 0 : index
    %c0_57 = arith.constant 0 : index
    %102 = vector.load %arg13[%c0_55, %c0_56, %c0_57] : memref<2x1x32xf32, #tpu.memory_space<vmem>>, vector<1x1x32xf32>
    %103 = vector.shape_cast %102 : vector<1x1x32xf32> to vector<1x32xf32>
    %104 = vector.broadcast %103 : vector<1x32xf32> to vector<16x32xf32>
    %105 = arith.addf %101, %104 : vector<16x32xf32>
    %106 = arith.addf %87, %105 : vector<16x32xf32>
    %c0_58 = arith.constant 0 : index
    %c0_59 = arith.constant 0 : index
    %c0_60 = arith.constant 0 : index
    %107 = vector.load %arg14[%c0_58, %c0_59, %c0_60] : memref<2x1x32xf32, #tpu.memory_space<vmem>>, vector<1x1x32xf32>
    %108 = vector.shape_cast %107 : vector<1x1x32xf32> to vector<1x32xf32>
    %c0_61 = arith.constant 0 : index
    %c0_62 = arith.constant 0 : index
    %c0_63 = arith.constant 0 : index
    %109 = vector.load %arg15[%c0_61, %c0_62, %c0_63] : memref<2x1x32xf32, #tpu.memory_space<vmem>>, vector<1x1x32xf32>
    %110 = vector.shape_cast %109 : vector<1x1x32xf32> to vector<1x32xf32>
    %cst_64 = arith.constant dense<0.000000e+00> : vector<32xf32>
    %111 = vector.multi_reduction <add>, %106, %cst_64 [0] : vector<16x32xf32> to vector<32xf32>
    %112 = vector.shape_cast %111 : vector<32xf32> to vector<1x32xf32>
    %cst_65 = arith.constant 1.600000e+01 : f32
    %113 = vector.broadcast %cst_65 : f32 to vector<1x32xf32>
    %114 = arith.divf %112, %113 : vector<1x32xf32>
    %115 = vector.broadcast %114 : vector<1x32xf32> to vector<16x32xf32>
    %116 = arith.subf %106, %115 : vector<16x32xf32>
    %117 = arith.mulf %116, %116 : vector<16x32xf32>
    %cst_66 = arith.constant dense<0.000000e+00> : vector<32xf32>
    %118 = vector.multi_reduction <add>, %117, %cst_66 [0] : vector<16x32xf32> to vector<32xf32>
    %119 = vector.shape_cast %118 : vector<32xf32> to vector<1x32xf32>
    %cst_67 = arith.constant 1.600000e+01 : f32
    %120 = vector.broadcast %cst_67 : f32 to vector<1x32xf32>
    %121 = arith.divf %119, %120 : vector<1x32xf32>
    %122 = vector.broadcast %114 : vector<1x32xf32> to vector<16x32xf32>
    %123 = arith.subf %106, %122 : vector<16x32xf32>
    %cst_68 = arith.constant 9.99999974E-6 : f32
    %124 = vector.broadcast %cst_68 : f32 to vector<1x32xf32>
    %125 = arith.addf %121, %124 : vector<1x32xf32>
    %126 = math.rsqrt %125 : vector<1x32xf32>
    %127 = vector.broadcast %126 : vector<1x32xf32> to vector<16x32xf32>
    %128 = arith.mulf %123, %127 : vector<16x32xf32>
    %129 = vector.broadcast %108 : vector<1x32xf32> to vector<16x32xf32>
    %130 = arith.mulf %128, %129 : vector<16x32xf32>
    %131 = vector.broadcast %110 : vector<1x32xf32> to vector<16x32xf32>
    %132 = arith.addf %130, %131 : vector<16x32xf32>
    %c1 = arith.constant 1 : index
    %c0_69 = arith.constant 0 : index
    %c0_70 = arith.constant 0 : index
    %c0_71 = arith.constant 0 : index
    %133 = vector.load %arg4[%c1, %c0_69, %c0_70, %c0_71] : memref<2x4x32x8xbf16, #tpu.memory_space<vmem>>, vector<1x4x32x8xbf16>
    %134 = vector.shape_cast %133 : vector<1x4x32x8xbf16> to vector<4x32x8xbf16>
    %c1_72 = arith.constant 1 : index
    %c0_73 = arith.constant 0 : index
    %c0_74 = arith.constant 0 : index
    %c0_75 = arith.constant 0 : index
    %135 = vector.load %arg5[%c1_72, %c0_73, %c0_74, %c0_75] : memref<2x4x32x8xbf16, #tpu.memory_space<vmem>>, vector<1x4x32x8xbf16>
    %136 = vector.shape_cast %135 : vector<1x4x32x8xbf16> to vector<4x32x8xbf16>
    %c1_76 = arith.constant 1 : index
    %c0_77 = arith.constant 0 : index
    %c0_78 = arith.constant 0 : index
    %c0_79 = arith.constant 0 : index
    %137 = vector.load %arg6[%c1_76, %c0_77, %c0_78, %c0_79] : memref<2x4x32x8xbf16, #tpu.memory_space<vmem>>, vector<1x4x32x8xbf16>
    %138 = vector.shape_cast %137 : vector<1x4x32x8xbf16> to vector<4x32x8xbf16>
    %c1_80 = arith.constant 1 : index
    %c0_81 = arith.constant 0 : index
    %c0_82 = arith.constant 0 : index
    %c0_83 = arith.constant 0 : index
    %139 = vector.load %arg7[%c1_80, %c0_81, %c0_82, %c0_83] : memref<2x4x8x32xbf16, #tpu.memory_space<vmem>>, vector<1x4x8x32xbf16>
    %140 = vector.shape_cast %139 : vector<1x4x8x32xbf16> to vector<4x8x32xbf16>
    %141 = arith.truncf %132 : vector<16x32xf32> to vector<16x32xbf16>
    %142 = vector.shape_cast %141 : vector<16x32xbf16> to vector<1x16x32xbf16>
    %143 = vector.broadcast %142 : vector<1x16x32xbf16> to vector<4x16x32xbf16>
    "tpu.trace_start"() <{level = 10 : i32, message = "hre,hek->hrk"}> : () -> ()
    %cst_84 = arith.constant dense<0.000000e+00> : vector<4x16x8xf32>
    %144 = tpu.matmul %143, %134, %cst_84 {dimension_numbers = #tpu.dot_dimension_numbers<[2], [1], [1], [2], [0, 0, 0, 1, 1, 2], [0], [0]>} : vector<4x16x32xbf16>, vector<4x32x8xbf16>, vector<4x16x8xf32> -> vector<4x16x8xf32>
    %cst_85 = arith.constant dense<0.000000e+00> : vector<4x16x8xf32>
    %145 = tpu.matmul %143, %136, %cst_85 {dimension_numbers = #tpu.dot_dimension_numbers<[2], [1], [1], [2], [0, 0, 0, 1, 1, 2], [0], [0]>} : vector<4x16x32xbf16>, vector<4x32x8xbf16>, vector<4x16x8xf32> -> vector<4x16x8xf32>
    "tpu.trace_stop"() : () -> ()
    "tpu.trace_start"() <{level = 10 : i32, message = "hre,hev->hrv"}> : () -> ()
    %cst_86 = arith.constant dense<0.000000e+00> : vector<4x16x8xf32>
    %146 = tpu.matmul %143, %138, %cst_86 {dimension_numbers = #tpu.dot_dimension_numbers<[2], [1], [1], [2], [0, 0, 0, 1, 1, 2], [0], [0]>} : vector<4x16x32xbf16>, vector<4x32x8xbf16>, vector<4x16x8xf32> -> vector<4x16x8xf32>
    "tpu.trace_stop"() : () -> ()
    %147 = arith.truncf %144 : vector<4x16x8xf32> to vector<4x16x8xbf16>
    %148 = arith.truncf %145 : vector<4x16x8xf32> to vector<4x16x8xbf16>
    "tpu.trace_start"() <{level = 10 : i32, message = "hqk,hmk->hqm"}> : () -> ()
    %cst_87 = arith.constant dense<0.000000e+00> : vector<4x16x16xf32>
    %149 = tpu.matmul %147, %148, %cst_87 {dimension_numbers = #tpu.dot_dimension_numbers<[2], [2], [1], [1], [0, 0, 0, 1, 1, 1], [0], [0]>} : vector<4x16x8xbf16>, vector<4x16x8xbf16>, vector<4x16x16xf32> -> vector<4x16x16xf32>
    "tpu.trace_stop"() : () -> ()
    %cst_88 = arith.constant 0.353553385 : f32
    %150 = vector.broadcast %cst_88 : f32 to vector<4x16x16xf32>
    %151 = arith.mulf %150, %149 : vector<4x16x16xf32>
    %152 = vector.shape_cast %22 : vector<16x16xf32> to vector<1x16x16xf32>
    %153 = vector.broadcast %152 : vector<1x16x16xf32> to vector<4x16x16xf32>
    %154 = arith.addf %151, %153 : vector<4x16x16xf32>
    %cst_89 = arith.constant dense<0xFF800000> : vector<4x16xf32>
    %155 = vector.multi_reduction <maximumf>, %154, %cst_89 [2] : vector<4x16x16xf32> to vector<4x16xf32>
    %156 = vector.shape_cast %155 : vector<4x16xf32> to vector<4x16x1xf32>
    %157 = vector.broadcast %156 : vector<4x16x1xf32> to vector<4x16x16xf32>
    %158 = arith.subf %154, %157 : vector<4x16x16xf32>
    %159 = math.exp %158 : vector<4x16x16xf32>
    %cst_90 = arith.constant dense<0.000000e+00> : vector<4x16xf32>
    %160 = vector.multi_reduction <add>, %159, %cst_90 [2] : vector<4x16x16xf32> to vector<4x16xf32>
    %161 = vector.shape_cast %160 : vector<4x16xf32> to vector<4x16x1xf32>
    %162 = tpu.reciprocal %161 {approx = true} : vector<4x16x1xf32> -> vector<4x16x1xf32>
    %163 = vector.broadcast %162 : vector<4x16x1xf32> to vector<4x16x16xf32>
    %164 = arith.mulf %159, %163 : vector<4x16x16xf32>
    %165 = arith.truncf %164 : vector<4x16x16xf32> to vector<4x16x16xbf16>
    %166 = arith.truncf %146 : vector<4x16x8xf32> to vector<4x16x8xbf16>
    "tpu.trace_start"() <{level = 10 : i32, message = "hqm,hmv->hqv"}> : () -> ()
    %cst_91 = arith.constant dense<0.000000e+00> : vector<4x16x8xf32>
    %167 = tpu.matmul %165, %166, %cst_91 {dimension_numbers = #tpu.dot_dimension_numbers<[2], [1], [1], [2], [0, 0, 0, 1, 1, 2], [0], [0]>} : vector<4x16x16xbf16>, vector<4x16x8xbf16>, vector<4x16x8xf32> -> vector<4x16x8xf32>
    "tpu.trace_stop"() : () -> ()
    %168 = arith.truncf %167 : vector<4x16x8xf32> to vector<4x16x8xbf16>
    "tpu.trace_start"() <{level = 10 : i32, message = "hrv,hve->hre"}> : () -> ()
    %cst_92 = arith.constant dense<0.000000e+00> : vector<4x16x32xf32>
    %169 = tpu.matmul %168, %140, %cst_92 {dimension_numbers = #tpu.dot_dimension_numbers<[2], [1], [1], [2], [0, 0, 0, 1, 1, 2], [0], [0]>} : vector<4x16x8xbf16>, vector<4x8x32xbf16>, vector<4x16x32xf32> -> vector<4x16x32xf32>
    "tpu.trace_stop"() : () -> ()
    %cst_93 = arith.constant dense<0.000000e+00> : vector<16x32xf32>
    %170 = vector.multi_reduction <add>, %169, %cst_93 [0] : vector<4x16x32xf32> to vector<16x32xf32>
    %171 = arith.addf %132, %170 : vector<16x32xf32>
    %c1_94 = arith.constant 1 : index
    %c0_95 = arith.constant 0 : index
    %c0_96 = arith.constant 0 : index
    %172 = vector.load %arg8[%c1_94, %c0_95, %c0_96] : memref<2x1x32xf32, #tpu.memory_space<vmem>>, vector<1x1x32xf32>
    %173 = vector.shape_cast %172 : vector<1x1x32xf32> to vector<1x32xf32>
    %c1_97 = arith.constant 1 : index
    %c0_98 = arith.constant 0 : index
    %c0_99 = arith.constant 0 : index
    %174 = vector.load %arg9[%c1_97, %c0_98, %c0_99] : memref<2x1x32xf32, #tpu.memory_space<vmem>>, vector<1x1x32xf32>
    %175 = vector.shape_cast %174 : vector<1x1x32xf32> to vector<1x32xf32>
    %cst_100 = arith.constant dense<0.000000e+00> : vector<32xf32>
    %176 = vector.multi_reduction <add>, %171, %cst_100 [0] : vector<16x32xf32> to vector<32xf32>
    %177 = vector.shape_cast %176 : vector<32xf32> to vector<1x32xf32>
    %cst_101 = arith.constant 1.600000e+01 : f32
    %178 = vector.broadcast %cst_101 : f32 to vector<1x32xf32>
    %179 = arith.divf %177, %178 : vector<1x32xf32>
    %180 = vector.broadcast %179 : vector<1x32xf32> to vector<16x32xf32>
    %181 = arith.subf %171, %180 : vector<16x32xf32>
    %182 = arith.mulf %181, %181 : vector<16x32xf32>
    %cst_102 = arith.constant dense<0.000000e+00> : vector<32xf32>
    %183 = vector.multi_reduction <add>, %182, %cst_102 [0] : vector<16x32xf32> to vector<32xf32>
    %184 = vector.shape_cast %183 : vector<32xf32> to vector<1x32xf32>
    %cst_103 = arith.constant 1.600000e+01 : f32
    %185 = vector.broadcast %cst_103 : f32 to vector<1x32xf32>
    %186 = arith.divf %184, %185 : vector<1x32xf32>
    %187 = vector.broadcast %179 : vector<1x32xf32> to vector<16x32xf32>
    %188 = arith.subf %171, %187 : vector<16x32xf32>
    %cst_104 = arith.constant 9.99999974E-6 : f32
    %189 = vector.broadcast %cst_104 : f32 to vector<1x32xf32>
    %190 = arith.addf %186, %189 : vector<1x32xf32>
    %191 = math.rsqrt %190 : vector<1x32xf32>
    %192 = vector.broadcast %191 : vector<1x32xf32> to vector<16x32xf32>
    %193 = arith.mulf %188, %192 : vector<16x32xf32>
    %194 = vector.broadcast %173 : vector<1x32xf32> to vector<16x32xf32>
    %195 = arith.mulf %193, %194 : vector<16x32xf32>
    %196 = vector.broadcast %175 : vector<1x32xf32> to vector<16x32xf32>
    %197 = arith.addf %195, %196 : vector<16x32xf32>
    %198 = arith.truncf %197 : vector<16x32xf32> to vector<16x32xbf16>
    %c1_105 = arith.constant 1 : index
    %c0_106 = arith.constant 0 : index
    %c0_107 = arith.constant 0 : index
    %199 = vector.load %arg10[%c1_105, %c0_106, %c0_107] : memref<2x32x64xbf16, #tpu.memory_space<vmem>>, vector<1x32x64xbf16>
    %200 = vector.shape_cast %199 : vector<1x32x64xbf16> to vector<32x64xbf16>
    %cst_108 = arith.constant dense<0.000000e+00> : vector<16x64xf32>
    %201 = tpu.matmul %198, %200, %cst_108 {dimension_numbers = #tpu.dot_dimension_numbers<[1], [0], [0], [1], [0, 0, 1, 1], [], []>} : vector<16x32xbf16>, vector<32x64xbf16>, vector<16x64xf32> -> vector<16x64xf32>
    %c1_109 = arith.constant 1 : index
    %c0_110 = arith.constant 0 : index
    %c0_111 = arith.constant 0 : index
    %202 = vector.load %arg11[%c1_109, %c0_110, %c0_111] : memref<2x1x64xf32, #tpu.memory_space<vmem>>, vector<1x1x64xf32>
    %203 = vector.shape_cast %202 : vector<1x1x64xf32> to vector<1x64xf32>
    %204 = vector.broadcast %203 : vector<1x64xf32> to vector<16x64xf32>
    %205 = arith.addf %201, %204 : vector<16x64xf32>
    %cst_112 = arith.constant 0.000000e+00 : f32
    %206 = vector.broadcast %cst_112 : f32 to vector<16x64xf32>
    %207 = arith.maximumf %205, %206 : vector<16x64xf32>
    %208 = arith.truncf %207 : vector<16x64xf32> to vector<16x64xbf16>
    %c1_113 = arith.constant 1 : index
    %c0_114 = arith.constant 0 : index
    %c0_115 = arith.constant 0 : index
    %209 = vector.load %arg12[%c1_113, %c0_114, %c0_115] : memref<2x64x32xbf16, #tpu.memory_space<vmem>>, vector<1x64x32xbf16>
    %210 = vector.shape_cast %209 : vector<1x64x32xbf16> to vector<64x32xbf16>
    %cst_116 = arith.constant dense<0.000000e+00> : vector<16x32xf32>
    %211 = tpu.matmul %208, %210, %cst_116 {dimension_numbers = #tpu.dot_dimension_numbers<[1], [0], [0], [1], [0, 0, 1, 1], [], []>} : vector<16x64xbf16>, vector<64x32xbf16>, vector<16x32xf32> -> vector<16x32xf32>
    %c1_117 = arith.constant 1 : index
    %c0_118 = arith.constant 0 : index
    %c0_119 = arith.constant 0 : index
    %212 = vector.load %arg13[%c1_117, %c0_118, %c0_119] : memref<2x1x32xf32, #tpu.memory_space<vmem>>, vector<1x1x32xf32>
    %213 = vector.shape_cast %212 : vector<1x1x32xf32> to vector<1x32xf32>
    %214 = vector.broadcast %213 : vector<1x32xf32> to vector<16x32xf32>
    %215 = arith.addf %211, %214 : vector<16x32xf32>
    %216 = arith.addf %197, %215 : vector<16x32xf32>
    %c1_120 = arith.constant 1 : index
    %c0_121 = arith.constant 0 : index
    %c0_122 = arith.constant 0 : index
    %217 = vector.load %arg14[%c1_120, %c0_121, %c0_122] : memref<2x1x32xf32, #tpu.memory_space<vmem>>, vector<1x1x32xf32>
    %218 = vector.shape_cast %217 : vector<1x1x32xf32> to vector<1x32xf32>
    %c1_123 = arith.constant 1 : index
    %c0_124 = arith.constant 0 : index
    %c0_125 = arith.constant 0 : index
    %219 = vector.load %arg15[%c1_123, %c0_124, %c0_125] : memref<2x1x32xf32, #tpu.memory_space<vmem>>, vector<1x1x32xf32>
    %220 = vector.shape_cast %219 : vector<1x1x32xf32> to vector<1x32xf32>
    %cst_126 = arith.constant dense<0.000000e+00> : vector<32xf32>
    %221 = vector.multi_reduction <add>, %216, %cst_126 [0] : vector<16x32xf32> to vector<32xf32>
    %222 = vector.shape_cast %221 : vector<32xf32> to vector<1x32xf32>
    %cst_127 = arith.constant 1.600000e+01 : f32
    %223 = vector.broadcast %cst_127 : f32 to vector<1x32xf32>
    %224 = arith.divf %222, %223 : vector<1x32xf32>
    %225 = vector.broadcast %224 : vector<1x32xf32> to vector<16x32xf32>
    %226 = arith.subf %216, %225 : vector<16x32xf32>
    %227 = arith.mulf %226, %226 : vector<16x32xf32>
    %cst_128 = arith.constant dense<0.000000e+00> : vector<32xf32>
    %228 = vector.multi_reduction <add>, %227, %cst_128 [0] : vector<16x32xf32> to vector<32xf32>
    %229 = vector.shape_cast %228 : vector<32xf32> to vector<1x32xf32>
    %cst_129 = arith.constant 1.600000e+01 : f32
    %230 = vector.broadcast %cst_129 : f32 to vector<1x32xf32>
    %231 = arith.divf %229, %230 : vector<1x32xf32>
    %232 = vector.broadcast %224 : vector<1x32xf32> to vector<16x32xf32>
    %233 = arith.subf %216, %232 : vector<16x32xf32>
    %cst_130 = arith.constant 9.99999974E-6 : f32
    %234 = vector.broadcast %cst_130 : f32 to vector<1x32xf32>
    %235 = arith.addf %231, %234 : vector<1x32xf32>
    %236 = math.rsqrt %235 : vector<1x32xf32>
    %237 = vector.broadcast %236 : vector<1x32xf32> to vector<16x32xf32>
    %238 = arith.mulf %233, %237 : vector<16x32xf32>
    %239 = vector.broadcast %218 : vector<1x32xf32> to vector<16x32xf32>
    %240 = arith.mulf %238, %239 : vector<16x32xf32>
    %241 = vector.broadcast %220 : vector<1x32xf32> to vector<16x32xf32>
    %242 = arith.addf %240, %241 : vector<16x32xf32>
    %243 = vector.shape_cast %242 : vector<16x32xf32> to vector<2x8x32xf32>
    %244 = vector.extract_strided_slice %243 {offsets = [0, 0, 0], sizes = [2, 1, 32], strides = [1, 1, 1]} : vector<2x8x32xf32> to vector<2x1x32xf32>
    %245 = vector.shape_cast %244 : vector<2x1x32xf32> to vector<2x32xf32>
    %246 = vector.extract_strided_slice %243 {offsets = [0, 1, 0], sizes = [2, 1, 32], strides = [1, 1, 1]} : vector<2x8x32xf32> to vector<2x1x32xf32>
    %247 = vector.shape_cast %246 : vector<2x1x32xf32> to vector<2x32xf32>
    %248 = vector.extract_strided_slice %243 {offsets = [0, 2, 0], sizes = [2, 1, 32], strides = [1, 1, 1]} : vector<2x8x32xf32> to vector<2x1x32xf32>
    %249 = vector.shape_cast %248 : vector<2x1x32xf32> to vector<2x32xf32>
    %250 = vector.extract_strided_slice %243 {offsets = [0, 3, 0], sizes = [2, 1, 32], strides = [1, 1, 1]} : vector<2x8x32xf32> to vector<2x1x32xf32>
    %251 = vector.shape_cast %250 : vector<2x1x32xf32> to vector<2x32xf32>
    %252 = vector.extract_strided_slice %243 {offsets = [0, 4, 0], sizes = [2, 1, 32], strides = [1, 1, 1]} : vector<2x8x32xf32> to vector<2x1x32xf32>
    %253 = vector.shape_cast %252 : vector<2x1x32xf32> to vector<2x32xf32>
    %254 = vector.extract_strided_slice %243 {offsets = [0, 5, 0], sizes = [2, 1, 32], strides = [1, 1, 1]} : vector<2x8x32xf32> to vector<2x1x32xf32>
    %255 = vector.shape_cast %254 : vector<2x1x32xf32> to vector<2x32xf32>
    %256 = vector.extract_strided_slice %243 {offsets = [0, 6, 0], sizes = [2, 1, 32], strides = [1, 1, 1]} : vector<2x8x32xf32> to vector<2x1x32xf32>
    %257 = vector.shape_cast %256 : vector<2x1x32xf32> to vector<2x32xf32>
    %258 = vector.extract_strided_slice %243 {offsets = [0, 7, 0], sizes = [2, 1, 32], strides = [1, 1, 1]} : vector<2x8x32xf32> to vector<2x1x32xf32>
    %259 = vector.shape_cast %258 : vector<2x1x32xf32> to vector<2x32xf32>
    %260 = tpu.concatenate %245, %247, %249, %251, %253, %255, %257, %259 in 1 : vector<2x32xf32>, vector<2x32xf32>, vector<2x32xf32>, vector<2x32xf32>, vector<2x32xf32>, vector<2x32xf32>, vector<2x32xf32>, vector<2x32xf32> -> vector<2x256xf32>
    %c0_131 = arith.constant 0 : index
    %c0_132 = arith.constant 0 : index
    %261 = vector.load %arg16[%c0_131, %c0_132] : memref<2x256xf32, #tpu.memory_space<vmem>>, vector<2x256xf32>
    tpu.vector_store %arg16[%c0_131, %c0_132], %260 {strides = array<i32>} : memref<2x256xf32, #tpu.memory_space<vmem>>, vector<2x256xf32>,
    %cst_133 = arith.constant dense<0.000000e+00> : vector<2x32xf32>
    %262 = vector.multi_reduction <add>, %243, %cst_133 [1] : vector<2x8x32xf32> to vector<2x32xf32>
    %cst_134 = arith.constant 8.000000e+00 : f32
    %263 = vector.broadcast %cst_134 : f32 to vector<2x32xf32>
    %264 = arith.divf %262, %263 : vector<2x32xf32>
    %c0_135 = arith.constant 0 : index
    %c0_136 = arith.constant 0 : index
    %265 = vector.load %arg17[%c0_135, %c0_136] : memref<2x32xf32, #tpu.memory_space<vmem>>, vector<2x32xf32>
    tpu.vector_store %arg17[%c0_135, %c0_136], %264 {strides = array<i32>} : memref<2x32xf32, #tpu.memory_space<vmem>>, vector<2x32xf32>,
    return
  }
}

</mosaic_0001>

<llo_original>
// kernel: graph_attention_encoder.1
$region0: #{graph_attention_encoder.1}
  #allocation0 [shape = 'u32[]', space=smem, size = 0x4, offset = 0x4, fixed_abs, tag = 'smem constant byte address 0x4 - core index']
  #allocation1 [shape = 'u32[144,128]{1,0:T(1,128)}', space=vmem, size = 0x12000, scoped, tag = 'internal scratch']
  %s0 = inlined_call_operand.vmem [shape: f32[16,3], index: 0, kind: input, shape index: {}]
  %s1 = inlined_call_operand.vmem [shape: f32[16,16], index: 1, kind: input, shape index: {}]
  %s2 = inlined_call_operand.vmem [shape: f32[3,32], index: 2, kind: input, shape index: {}]
  %s3 = inlined_call_operand.vmem [shape: f32[1,32], index: 3, kind: input, shape index: {}]
  %s4 = inlined_call_operand.vmem [shape: bf16[2,4,32,8], index: 4, kind: input, shape index: {}]
  %s5 = inlined_call_operand.vmem [shape: bf16[2,4,32,8], index: 5, kind: input, shape index: {}]
  %s6 = inlined_call_operand.vmem [shape: bf16[2,4,32,8], index: 6, kind: input, shape index: {}]
  %s7 = inlined_call_operand.vmem [shape: bf16[2,4,8,32], index: 7, kind: input, shape index: {}]
  %s8 = inlined_call_operand.vmem [shape: f32[2,1,32], index: 8, kind: input, shape index: {}]
  %s9 = inlined_call_operand.vmem [shape: f32[2,1,32], index: 9, kind: input, shape index: {}]
  %s10 = inlined_call_operand.vmem [shape: bf16[2,32,64], index: 10, kind: input, shape index: {}]
  %s11 = inlined_call_operand.vmem [shape: f32[2,1,64], index: 11, kind: input, shape index: {}]
  %s12 = inlined_call_operand.vmem [shape: bf16[2,64,32], index: 12, kind: input, shape index: {}]
  %s13 = inlined_call_operand.vmem [shape: f32[2,1,32], index: 13, kind: input, shape index: {}]
  %s14 = inlined_call_operand.vmem [shape: f32[2,1,32], index: 14, kind: input, shape index: {}]
  %s15 = inlined_call_operand.vmem [shape: f32[2,1,32], index: 15, kind: input, shape index: {}]
  %s16 = inlined_call_operand.vmem [shape: f32[2,256], index: 16, kind: output, shape index: {0}]
  %s17 = inlined_call_operand.hbm [shape: f32[2,32], index: 17, kind: output, shape index: {1}]
  %18 = xla_tuple %s16, %s17
  %s19 = sld [smem:[#allocation0]]
  $region82: #{graph_attention_encoder.1} parent=0
    _
  %s21 = ssub.s32 1, %s19
  %s22 = scalar_select 0, %s21, %s19
  $region1: #{graph_attention_encoder.1} parent=0
    #allocation2 [shape = 'u8[1024]{0}', space=vmem, size = 0x400, scoped, tag = 'output window, operand 1, single buffered']
    #allocation3 [shape = 's32[1]{0}', space=sflag, size = 0x4, scoped, tag = 'scoped memory for graph_attention_encoder.1']
    %23 = vsyncpa [#allocation3], 0
    // Predicated region
    $region2: #{graph_attention_encoder.1} parent=1 // pred_check
      _
    $region3: #{graph_attention_encoder.1} parent=1 // pred_check_branch
      %25 = sbr.rel (0) target = $region5
    $region4: #{graph_attention_encoder.1} parent=1 // pred_region
      _
    $region5: #{graph_attention_encoder.1} parent=1 // pred_fallthru
      _
    // Predicated region
    $region6: #{graph_attention_encoder.1} parent=1 // pred_check
      _
    $region7: #{graph_attention_encoder.1} parent=1 // pred_check_branch
      %27 = sbr.rel (0) target = $region9
    $region8: #{graph_attention_encoder.1} parent=1 // pred_region
      _
    $region9: #{graph_attention_encoder.1} parent=1 // pred_fallthru
      _
    // Predicated region
    $region10: #{graph_attention_encoder.1} parent=1 // pred_check
      _
    $region11: #{graph_attention_encoder.1} parent=1 // pred_check_branch
      %29 = sbr.rel (0) target = $region13
    $region12: #{graph_attention_encoder.1} parent=1 // pred_region
      _
    $region13: #{graph_attention_encoder.1} parent=1 // pred_fallthru
      _
    // Predicated region
    $region14: #{graph_attention_encoder.1} parent=1 // pred_check
      _
    $region15: #{graph_attention_encoder.1} parent=1 // pred_check_branch
      %31 = sbr.rel (0) target = $region17
    $region16: #{graph_attention_encoder.1} parent=1 // pred_region
      _
    $region17: #{graph_attention_encoder.1} parent=1 // pred_fallthru
      _
    // Predicated region
    $region18: #{graph_attention_encoder.1} parent=1 // pred_check
      _
    $region19: #{graph_attention_encoder.1} parent=1 // pred_check_branch
      %33 = sbr.rel (0) target = $region21
    $region20: #{graph_attention_encoder.1} parent=1 // pred_region
      _
    $region21: #{graph_attention_encoder.1} parent=1 // pred_fallthru
      _
    // Predicated region
    $region22: #{graph_attention_encoder.1} parent=1 // pred_check
      _
    $region23: #{graph_attention_encoder.1} parent=1 // pred_check_branch
      %35 = sbr.rel (0) target = $region25
    $region24: #{graph_attention_encoder.1} parent=1 // pred_region
      _
    $region25: #{graph_attention_encoder.1} parent=1 // pred_fallthru
      _
    // Predicated region
    $region26: #{graph_attention_encoder.1} parent=1 // pred_check
      _
    $region27: #{graph_attention_encoder.1} parent=1 // pred_check_branch
      %37 = sbr.rel (0) target = $region29
    $region28: #{graph_attention_encoder.1} parent=1 // pred_region
      _
    $region29: #{graph_attention_encoder.1} parent=1 // pred_fallthru
      _
    // Predicated region
    $region30: #{graph_attention_encoder.1} parent=1 // pred_check
      _
    $region31: #{graph_attention_encoder.1} parent=1 // pred_check_branch
      %39 = sbr.rel (0) target = $region33
    $region32: #{graph_attention_encoder.1} parent=1 // pred_region
      _
    $region33: #{graph_attention_encoder.1} parent=1 // pred_fallthru
      _
    // Predicated region
    $region34: #{graph_attention_encoder.1} parent=1 // pred_check
      _
    $region35: #{graph_attention_encoder.1} parent=1 // pred_check_branch
      %41 = sbr.rel (0) target = $region37
    $region36: #{graph_attention_encoder.1} parent=1 // pred_region
      _
    $region37: #{graph_attention_encoder.1} parent=1 // pred_fallthru
      _
    // Predicated region
    $region38: #{graph_attention_encoder.1} parent=1 // pred_check
      _
    $region39: #{graph_attention_encoder.1} parent=1 // pred_check_branch
      %43 = sbr.rel (0) target = $region41
    $region40: #{graph_attention_encoder.1} parent=1 // pred_region
      _
    $region41: #{graph_attention_encoder.1} parent=1 // pred_fallthru
      _
    // Predicated region
    $region42: #{graph_attention_encoder.1} parent=1 // pred_check
      _
    $region43: #{graph_attention_encoder.1} parent=1 // pred_check_branch
      %45 = sbr.rel (0) target = $region45
    $region44: #{graph_attention_encoder.1} parent=1 // pred_region
      _
    $region45: #{graph_attention_encoder.1} parent=1 // pred_fallthru
      _
    // Predicated region
    $region46: #{graph_attention_encoder.1} parent=1 // pred_check
      _
    $region47: #{graph_attention_encoder.1} parent=1 // pred_check_branch
      %47 = sbr.rel (0) target = $region49
    $region48: #{graph_attention_encoder.1} parent=1 // pred_region
      _
    $region49: #{graph_attention_encoder.1} parent=1 // pred_fallthru
      _
    // Predicated region
    $region50: #{graph_attention_encoder.1} parent=1 // pred_check
      _
    $region51: #{graph_attention_encoder.1} parent=1 // pred_check_branch
      %49 = sbr.rel (0) target = $region53
    $region52: #{graph_attention_encoder.1} parent=1 // pred_region
      _
    $region53: #{graph_attention_encoder.1} parent=1 // pred_fallthru
      _
    // Predicated region
    $region54: #{graph_attention_encoder.1} parent=1 // pred_check
      _
    $region55: #{graph_attention_encoder.1} parent=1 // pred_check_branch
      %51 = sbr.rel (0) target = $region57
    $region56: #{graph_attention_encoder.1} parent=1 // pred_region
      _
    $region57: #{graph_attention_encoder.1} parent=1 // pred_fallthru
      _
    // Predicated region
    $region58: #{graph_attention_encoder.1} parent=1 // pred_check
      _
    $region59: #{graph_attention_encoder.1} parent=1 // pred_check_branch
      %53 = sbr.rel (0) target = $region61
    $region60: #{graph_attention_encoder.1} parent=1 // pred_region
      _
    $region61: #{graph_attention_encoder.1} parent=1 // pred_fallthru
      _
    // Predicated region
    $region62: #{graph_attention_encoder.1} parent=1 // pred_check
      _
    $region63: #{graph_attention_encoder.1} parent=1 // pred_check_branch
      %55 = sbr.rel (0) target = $region65
    $region64: #{graph_attention_encoder.1} parent=1 // pred_region
      _
    $region65: #{graph_attention_encoder.1} parent=1 // pred_fallthru
      _
    %v57 = vld [vmem:[%s0] sm:$0xff]
    %v58 = vld [vmem:[%s0 + $0x8] sm:$0xff]
    %v59 = vld [vmem:[%s2] sm:$0x7]
    %v60 = vld [vmem:[%s3] sm:$0x1]
    %62 = vset.pattern.permute.xlu0 0
    %63 = vperm.xlu0 %62, %v57
    %v64 = vpop.permute.xlu0 %63
    %67 = vset.pattern.permute.xlu0 0
    %68 = vperm.xlu0 %67, %v58
    %v69 = vpop.permute.xlu0 %68
    %v71 = vlaneseq
    %v72 = vshrl.u32 %v71, 7
    %v73 = vsub.s32 0, %v72
    %v74 = vrot.slane %v59, %v73
    %v75 = vmul.f32 %v64, %v74
    %v76 = vmul.f32 %v69, %v74
    %v78 = vlaneseq
    %v79 = vshrl.u32 %v78, 7
    %v80 = vsub.s32 0, %v79
    %v81 = vrot.slane %v60, %v80
    %v83 = vadd.f32 %v81, %v75
    %v84 = vadd.f32 %v81, %v76
    %85 = vset.pattern.permute.xlu0 1
    %86 = vperm.xlu0 %85, %v57
    %v87 = vpop.permute.xlu0 %86
    %89 = vset.pattern.permute.xlu0 1
    %90 = vperm.xlu0 %89, %v58
    %v91 = vpop.permute.xlu0 %90
    %v93 = vlaneseq
    %v94 = vshrl.u32 %v93, 7
    %v95 = vsub.s32 1, %v94
    %v96 = vrot.slane %v59, %v95
    %v97 = vmul.f32 %v87, %v96
    %v98 = vmul.f32 %v91, %v96
    %v99 = vadd.f32 %v83, %v97
    %v100 = vadd.f32 %v84, %v98
    %101 = vset.pattern.permute.xlu0 2
    %102 = vperm.xlu0 %101, %v57
    %v103 = vpop.permute.xlu0 %102
    %105 = vset.pattern.permute.xlu0 2
    %106 = vperm.xlu0 %105, %v58
    %v107 = vpop.permute.xlu0 %106
    %v109 = vlaneseq
    %v110 = vshrl.u32 %v109, 7
    %v111 = vsub.s32 2, %v110
    %v112 = vrot.slane %v59, %v111
    %v113 = vmul.f32 %v103, %v112
    %v114 = vmul.f32 %v107, %v112
    %v115 = vadd.f32 %v99, %v113
    %v116 = vadd.f32 %v100, %v114
    %v117 = vld [vmem:[%s1] sm:$0xff]
    %v118 = vld [vmem:[%s1 + $0x8] sm:$0xff]
    %v119 = vld [vmem:[%s4] sm:$0xf]
    %v120 = vld [vmem:[%s4 + $0x4] sm:$0xf]
    %v121 = vld [vmem:[%s4 + $0x8] sm:$0xf]
    %v122 = vld [vmem:[%s4 + $0xc] sm:$0xf]
    %v123 = vld [vmem:[%s4 + $0x10] sm:$0xf]
    %v124 = vld [vmem:[%s4 + $0x14] sm:$0xf]
    %v125 = vld [vmem:[%s4 + $0x18] sm:$0xf]
    %v126 = vld [vmem:[%s4 + $0x1c] sm:$0xf]
    %v127 = vld [vmem:[%s4 + $0x20] sm:$0xf]
    %v128 = vld [vmem:[%s4 + $0x24] sm:$0xf]
    %v129 = vld [vmem:[%s4 + $0x28] sm:$0xf]
    %v130 = vld [vmem:[%s4 + $0x2c] sm:$0xf]
    %v131 = vld [vmem:[%s4 + $0x30] sm:$0xf]
    %v132 = vld [vmem:[%s4 + $0x34] sm:$0xf]
    %v133 = vld [vmem:[%s4 + $0x38] sm:$0xf]
    %v134 = vld [vmem:[%s4 + $0x3c] sm:$0xf]
    %v135 = vld [vmem:[%s5] sm:$0xf]
    %v136 = vld [vmem:[%s5 + $0x4] sm:$0xf]
    %v137 = vld [vmem:[%s5 + $0x8] sm:$0xf]
    %v138 = vld [vmem:[%s5 + $0xc] sm:$0xf]
    %v139 = vld [vmem:[%s5 + $0x10] sm:$0xf]
    %v140 = vld [vmem:[%s5 + $0x14] sm:$0xf]
    %v141 = vld [vmem:[%s5 + $0x18] sm:$0xf]
    %v142 = vld [vmem:[%s5 + $0x1c] sm:$0xf]
    %v143 = vld [vmem:[%s5 + $0x20] sm:$0xf]
    %v144 = vld [vmem:[%s5 + $0x24] sm:$0xf]
    %v145 = vld [vmem:[%s5 + $0x28] sm:$0xf]
    %v146 = vld [vmem:[%s5 + $0x2c] sm:$0xf]
    %v147 = vld [vmem:[%s5 + $0x30] sm:$0xf]
    %v148 = vld [vmem:[%s5 + $0x34] sm:$0xf]
    %v149 = vld [vmem:[%s5 + $0x38] sm:$0xf]
    %v150 = vld [vmem:[%s5 + $0x3c] sm:$0xf]
    %v151 = vld [vmem:[%s6] sm:$0xf]
    %v152 = vld [vmem:[%s6 + $0x4] sm:$0xf]
    %v153 = vld [vmem:[%s6 + $0x8] sm:$0xf]
    %v154 = vld [vmem:[%s6 + $0xc] sm:$0xf]
    %v155 = vld [vmem:[%s6 + $0x10] sm:$0xf]
    %v156 = vld [vmem:[%s6 + $0x14] sm:$0xf]
    %v157 = vld [vmem:[%s6 + $0x18] sm:$0xf]
    %v158 = vld [vmem:[%s6 + $0x1c] sm:$0xf]
    %v159 = vld [vmem:[%s6 + $0x20] sm:$0xf]
    %v160 = vld [vmem:[%s6 + $0x24] sm:$0xf]
    %v161 = vld [vmem:[%s6 + $0x28] sm:$0xf]
    %v162 = vld [vmem:[%s6 + $0x2c] sm:$0xf]
    %v163 = vld [vmem:[%s6 + $0x30] sm:$0xf]
    %v164 = vld [vmem:[%s6 + $0x34] sm:$0xf]
    %v165 = vld [vmem:[%s6 + $0x38] sm:$0xf]
    %v166 = vld [vmem:[%s6 + $0x3c] sm:$0xf]
    %v167 = vld [vmem:[%s7] sm:$0xf]
    %v168 = vld [vmem:[%s7 + $0x4] sm:$0xf]
    %v169 = vld [vmem:[%s7 + $0x8] sm:$0xf]
    %v170 = vld [vmem:[%s7 + $0xc] sm:$0xf]
    %v171 = vpack.c.bf16 %v116, %v115
    %v176 = vunpack.c.l.b16 %v119
    %v177 = vunpack.c.l.b16 %v120
    %v178 = vunpack.c.l.b16 %v121
    %v179 = vunpack.c.l.b16 %v122
    %v180 = vpack.c.b16 %v177, %v176
    %v181 = vpack.c.b16 %v179, %v178
    %vm184 = vcmask 261120
    %v186 = vsel %vm184, %v171, 0
    %188 = vmatprep.subr.bf16.mxu0 0
    %189 = vmatpush1.bf16.msra.mxu0 %v180
    %190 = vmatprep.subr.bf16.mxu0 0
    %191 = vmatpush1.bf16.msra.mxu0 %v181
    %192 = vmatprep.subr.bf16.mxu0 0
    %193 = vmatpush1.bf16.msra.mxu0 0
    %194 = vmatprep.subr.bf16.mxu0 0
    %195 = vmatpush1.bf16.msra.mxu0 0
    %196 = vmatprep.subr.bf16.mxu0 0
    %197 = vmatpush1.bf16.msra.mxu0 0
    %198 = vmatprep.subr.bf16.mxu0 0
    %199 = vmatpush1.bf16.msra.mxu0 0
    %200 = vmatprep.subr.bf16.mxu0 0
    %201 = vmatpush1.bf16.msra.mxu0 0
    %202 = vmatprep.subr.bf16.mxu0 0
    %203 = vmatpush1.bf16.msra.mxu0 0
    %204 = vmatprep.subr.bf16.mxu0 0
    %205 = vmatpush1.bf16.msra.mxu0 0
    %206 = vmatprep.subr.bf16.mxu0 0
    %207 = vmatpush1.bf16.msra.mxu0 0
    %208 = vmatprep.subr.bf16.mxu0 0
    %209 = vmatpush1.bf16.msra.mxu0 0
    %210 = vmatprep.subr.bf16.mxu0 0
    %211 = vmatpush1.bf16.msra.mxu0 0
    %212 = vmatprep.subr.bf16.mxu0 0
    %213 = vmatpush1.bf16.msra.mxu0 0
    %214 = vmatprep.subr.bf16.mxu0 0
    %215 = vmatpush1.bf16.msra.mxu0 0
    %216 = vmatprep.subr.bf16.mxu0 0
    %217 = vmatpush1.bf16.msra.mxu0 0
    %218 = vmatprep.subr.bf16.mxu0 0
    %219 = vmatpush1.bf16.msra.mxu0 0
    %220 = vmatprep.mubr.bf16.mxu0 0
    %221 = vmatmul.mubr.bf16.gmra.mrb[0].mxu0 %v186
    %v222 = vpop.f32.mrb[0].mxu0
    %v223 = vadd.f32 0.0, %v222
    %v224 = vpop.f32.mrb[0].mxu0
    %v225 = vpop.f32.mrb[0].mxu0
    %v226 = vadd.f32 0.0, %v225
    %v227 = vpop.f32.mrb[0].mxu0
    %228 = vdwg.mxu0
    %v233 = vunpack.c.l.b16 %v123
    %v234 = vunpack.c.l.b16 %v124
    %v235 = vunpack.c.l.b16 %v125
    %v236 = vunpack.c.l.b16 %v126
    %v237 = vpack.c.b16 %v234, %v233
    %v238 = vpack.c.b16 %v236, %v235
    %241 = vmatprep.subr.bf16.mxu0 0
    %242 = vmatpush1.bf16.msra.mxu0 %v237
    %243 = vmatprep.subr.bf16.mxu0 0
    %244 = vmatpush1.bf16.msra.mxu0 %v238
    %245 = vmatprep.subr.bf16.mxu0 0
    %246 = vmatpush1.bf16.msra.mxu0 0
    %247 = vmatprep.subr.bf16.mxu0 0
    %248 = vmatpush1.bf16.msra.mxu0 0
    %249 = vmatprep.subr.bf16.mxu0 0
    %250 = vmatpush1.bf16.msra.mxu0 0
    %251 = vmatprep.subr.bf16.mxu0 0
    %252 = vmatpush1.bf16.msra.mxu0 0
    %253 = vmatprep.subr.bf16.mxu0 0
    %254 = vmatpush1.bf16.msra.mxu0 0
    %255 = vmatprep.subr.bf16.mxu0 0
    %256 = vmatpush1.bf16.msra.mxu0 0
    %257 = vmatprep.subr.bf16.mxu0 0
    %258 = vmatpush1.bf16.msra.mxu0 0
    %259 = vmatprep.subr.bf16.mxu0 0
    %260 = vmatpush1.bf16.msra.mxu0 0
    %261 = vmatprep.subr.bf16.mxu0 0
    %262 = vmatpush1.bf16.msra.mxu0 0
    %263 = vmatprep.subr.bf16.mxu0 0
    %264 = vmatpush1.bf16.msra.mxu0 0
    %265 = vmatprep.subr.bf16.mxu0 0
    %266 = vmatpush1.bf16.msra.mxu0 0
    %267 = vmatprep.subr.bf16.mxu0 0
    %268 = vmatpush1.bf16.msra.mxu0 0
    %269 = vmatprep.subr.bf16.mxu0 0
    %270 = vmatpush1.bf16.msra.mxu0 0
    %271 = vmatprep.subr.bf16.mxu0 0
    %272 = vmatpush1.bf16.msra.mxu0 0
    %273 = vmatprep.mubr.bf16.mxu0 0
    %274 = vmatmul.mubr.bf16.gmra.mrb[0].mxu0 %v186
    %v275 = vpop.f32.mrb[0].mxu0
    %v276 = vadd.f32 0.0, %v275
    %v277 = vpop.f32.mrb[0].mxu0
    %v278 = vpop.f32.mrb[0].mxu0
    %v279 = vadd.f32 0.0, %v278
    %v280 = vpop.f32.mrb[0].mxu0
    %281 = vdwg.mxu0
    %v286 = vunpack.c.l.b16 %v127
    %v287 = vunpack.c.l.b16 %v128
    %v288 = vunpack.c.l.b16 %v129
    %v289 = vunpack.c.l.b16 %v130
    %v290 = vpack.c.b16 %v287, %v286
    %v291 = vpack.c.b16 %v289, %v288
    %294 = vmatprep.subr.bf16.mxu0 0
    %295 = vmatpush1.bf16.msra.mxu0 %v290
    %296 = vmatprep.subr.bf16.mxu0 0
    %297 = vmatpush1.bf16.msra.mxu0 %v291
    %298 = vmatprep.subr.bf16.mxu0 0
    %299 = vmatpush1.bf16.msra.mxu0 0
    %300 = vmatprep.subr.bf16.mxu0 0
    %301 = vmatpush1.bf16.msra.mxu0 0
    %302 = vmatprep.subr.bf16.mxu0 0
    %303 = vmatpush1.bf16.msra.mxu0 0
    %304 = vmatprep.subr.bf16.mxu0 0
    %305 = vmatpush1.bf16.msra.mxu0 0
    %306 = vmatprep.subr.bf16.mxu0 0
    %307 = vmatpush1.bf16.msra.mxu0 0
    %308 = vmatprep.subr.bf16.mxu0 0
    %309 = vmatpush1.bf16.msra.mxu0 0
    %310 = vmatprep.subr.bf16.mxu0 0
    %311 = vmatpush1.bf16.msra.mxu0 0
    %312 = vmatprep.subr.bf16.mxu0 0
    %313 = vmatpush1.bf16.msra.mxu0 0
    %314 = vmatprep.subr.bf16.mxu0 0
    %315 = vmatpush1.bf16.msra.mxu0 0
    %316 = vmatprep.subr.bf16.mxu0 0
    %317 = vmatpush1.bf16.msra.mxu0 0
    %318 = vmatprep.subr.bf16.mxu0 0
    %319 = vmatpush1.bf16.msra.mxu0 0
    %320 = vmatprep.subr.bf16.mxu0 0
    %321 = vmatpush1.bf16.msra.mxu0 0
    %322 = vmatprep.subr.bf16.mxu0 0
    %323 = vmatpush1.bf16.msra.mxu0 0
    %324 = vmatprep.subr.bf16.mxu0 0
    %325 = vmatpush1.bf16.msra.mxu0 0
    %326 = vmatprep.mubr.bf16.mxu0 0
    %327 = vmatmul.mubr.bf16.gmra.mrb[0].mxu0 %v186
    %v328 = vpop.f32.mrb[0].mxu0
    %v329 = vadd.f32 0.0, %v328
    %v330 = vpop.f32.mrb[0].mxu0
    %v331 = vpop.f32.mrb[0].mxu0
    %v332 = vadd.f32 0.0, %v331
    %v333 = vpop.f32.mrb[0].mxu0
    %334 = vdwg.mxu0
    %v339 = vunpack.c.l.b16 %v131
    %v340 = vunpack.c.l.b16 %v132
    %v341 = vunpack.c.l.b16 %v133
    %v342 = vunpack.c.l.b16 %v134
    %v343 = vpack.c.b16 %v340, %v339
    %v344 = vpack.c.b16 %v342, %v341
    %347 = vmatprep.subr.bf16.mxu0 0
    %348 = vmatpush1.bf16.msra.mxu0 %v343
    %349 = vmatprep.subr.bf16.mxu0 0
    %350 = vmatpush1.bf16.msra.mxu0 %v344
    %351 = vmatprep.subr.bf16.mxu0 0
    %352 = vmatpush1.bf16.msra.mxu0 0
    %353 = vmatprep.subr.bf16.mxu0 0
    %354 = vmatpush1.bf16.msra.mxu0 0
    %355 = vmatprep.subr.bf16.mxu0 0
    %356 = vmatpush1.bf16.msra.mxu0 0
    %357 = vmatprep.subr.bf16.mxu0 0
    %358 = vmatpush1.bf16.msra.mxu0 0
    %359 = vmatprep.subr.bf16.mxu0 0
    %360 = vmatpush1.bf16.msra.mxu0 0
    %361 = vmatprep.subr.bf16.mxu0 0
    %362 = vmatpush1.bf16.msra.mxu0 0
    %363 = vmatprep.subr.bf16.mxu0 0
    %364 = vmatpush1.bf16.msra.mxu0 0
    %365 = vmatprep.subr.bf16.mxu0 0
    %366 = vmatpush1.bf16.msra.mxu0 0
    %367 = vmatprep.subr.bf16.mxu0 0
    %368 = vmatpush1.bf16.msra.mxu0 0
    %369 = vmatprep.subr.bf16.mxu0 0
    %370 = vmatpush1.bf16.msra.mxu0 0
    %371 = vmatprep.subr.bf16.mxu0 0
    %372 = vmatpush1.bf16.msra.mxu0 0
    %373 = vmatprep.subr.bf16.mxu0 0
    %374 = vmatpush1.bf16.msra.mxu0 0
    %375 = vmatprep.subr.bf16.mxu0 0
    %376 = vmatpush1.bf16.msra.mxu0 0
    %377 = vmatprep.subr.bf16.mxu0 0
    %378 = vmatpush1.bf16.msra.mxu0 0
    %379 = vmatprep.mubr.bf16.mxu0 0
    %380 = vmatmul.mubr.bf16.gmra.mrb[0].mxu0 %v186
    %v381 = vpop.f32.mrb[0].mxu0
    %v382 = vadd.f32 0.0, %v381
    %v383 = vpop.f32.mrb[0].mxu0
    %v384 = vpop.f32.mrb[0].mxu0
    %v385 = vadd.f32 0.0, %v384
    %v386 = vpop.f32.mrb[0].mxu0
    %387 = vdwg.mxu0
    %v392 = vunpack.c.l.b16 %v135
    %v393 = vunpack.c.l.b16 %v136
    %v394 = vunpack.c.l.b16 %v137
    %v395 = vunpack.c.l.b16 %v138
    %v396 = vpack.c.b16 %v393, %v392
    %v397 = vpack.c.b16 %v395, %v394
    %400 = vmatprep.subr.bf16.mxu0 0
    %401 = vmatpush1.bf16.msra.mxu0 %v396
    %402 = vmatprep.subr.bf16.mxu0 0
    %403 = vmatpush1.bf16.msra.mxu0 %v397
    %404 = vmatprep.subr.bf16.mxu0 0
    %405 = vmatpush1.bf16.msra.mxu0 0
    %406 = vmatprep.subr.bf16.mxu0 0
    %407 = vmatpush1.bf16.msra.mxu0 0
    %408 = vmatprep.subr.bf16.mxu0 0
    %409 = vmatpush1.bf16.msra.mxu0 0
    %410 = vmatprep.subr.bf16.mxu0 0
    %411 = vmatpush1.bf16.msra.mxu0 0
    %412 = vmatprep.subr.bf16.mxu0 0
    %413 = vmatpush1.bf16.msra.mxu0 0
    %414 = vmatprep.subr.bf16.mxu0 0
    %415 = vmatpush1.bf16.msra.mxu0 0
    %416 = vmatprep.subr.bf16.mxu0 0
    %417 = vmatpush1.bf16.msra.mxu0 0
    %418 = vmatprep.subr.bf16.mxu0 0
    %419 = vmatpush1.bf16.msra.mxu0 0
    %420 = vmatprep.subr.bf16.mxu0 0
    %421 = vmatpush1.bf16.msra.mxu0 0
    %422 = vmatprep.subr.bf16.mxu0 0
    %423 = vmatpush1.bf16.msra.mxu0 0
    %424 = vmatprep.subr.bf16.mxu0 0
    %425 = vmatpush1.bf16.msra.mxu0 0
    %426 = vmatprep.subr.bf16.mxu0 0
    %427 = vmatpush1.bf16.msra.mxu0 0
    %428 = vmatprep.subr.bf16.mxu0 0
    %429 = vmatpush1.bf16.msra.mxu0 0
    %430 = vmatprep.subr.bf16.mxu0 0
    %431 = vmatpush1.bf16.msra.mxu0 0
    %432 = vmatprep.mubr.bf16.mxu0 0
    %433 = vmatmul.mubr.bf16.gmra.mrb[0].mxu0 %v186
    %v434 = vpop.f32.mrb[0].mxu0
    %v435 = vadd.f32 0.0, %v434
    %v436 = vpop.f32.mrb[0].mxu0
    %v437 = vpop.f32.mrb[0].mxu0
    %v438 = vadd.f32 0.0, %v437
    %v439 = vpop.f32.mrb[0].mxu0
    %440 = vdwg.mxu0
    %v445 = vunpack.c.l.b16 %v139
    %v446 = vunpack.c.l.b16 %v140
    %v447 = vunpack.c.l.b16 %v141
    %v448 = vunpack.c.l.b16 %v142
    %v449 = vpack.c.b16 %v446, %v445
    %v450 = vpack.c.b16 %v448, %v447
    %453 = vmatprep.subr.bf16.mxu0 0
    %454 = vmatpush1.bf16.msra.mxu0 %v449
    %455 = vmatprep.subr.bf16.mxu0 0
    %456 = vmatpush1.bf16.msra.mxu0 %v450
    %457 = vmatprep.subr.bf16.mxu0 0
    %458 = vmatpush1.bf16.msra.mxu0 0
    %459 = vmatprep.subr.bf16.mxu0 0
    %460 = vmatpush1.bf16.msra.mxu0 0
    %461 = vmatprep.subr.bf16.mxu0 0
    %462 = vmatpush1.bf16.msra.mxu0 0
    %463 = vmatprep.subr.bf16.mxu0 0
    %464 = vmatpush1.bf16.msra.mxu0 0
    %465 = vmatprep.subr.bf16.mxu0 0
    %466 = vmatpush1.bf16.msra.mxu0 0
    %467 = vmatprep.subr.bf16.mxu0 0
    %468 = vmatpush1.bf16.msra.mxu0 0
    %469 = vmatprep.subr.bf16.mxu0 0
    %470 = vmatpush1.bf16.msra.mxu0 0
    %471 = vmatprep.subr.bf16.mxu0 0
    %472 = vmatpush1.bf16.msra.mxu0 0
    %473 = vmatprep.subr.bf16.mxu0 0
    %474 = vmatpush1.bf16.msra.mxu0 0
    %475 = vmatprep.subr.bf16.mxu0 0
    %476 = vmatpush1.bf16.msra.mxu0 0
    %477 = vmatprep.subr.bf16.mxu0 0
    %478 = vmatpush1.bf16.msra.mxu0 0
    %479 = vmatprep.subr.bf16.mxu0 0
    %480 = vmatpush1.bf16.msra.mxu0 0
    %481 = vmatprep.subr.bf16.mxu0 0
    %482 = vmatpush1.bf16.msra.mxu0 0
    %483 = vmatprep.subr.bf16.mxu0 0
    %484 = vmatpush1.bf16.msra.mxu0 0
    %485 = vmatprep.mubr.bf16.mxu0 0
    %486 = vmatmul.mubr.bf16.gmra.mrb[0].mxu0 %v186
    %v487 = vpop.f32.mrb[0].mxu0
    %v488 = vadd.f32 0.0, %v487
    %v489 = vpop.f32.mrb[0].mxu0
    %v490 = vpop.f32.mrb[0].mxu0
    %v491 = vadd.f32 0.0, %v490
    %v492 = vpop.f32.mrb[0].mxu0
    %493 = vdwg.mxu0
    %v498 = vunpack.c.l.b16 %v143
    %v499 = vunpack.c.l.b16 %v144
    %v500 = vunpack.c.l.b16 %v145
    %v501 = vunpack.c.l.b16 %v146
    %v502 = vpack.c.b16 %v499, %v498
    %v503 = vpack.c.b16 %v501, %v500
    %506 = vmatprep.subr.bf16.mxu0 0
    %507 = vmatpush1.bf16.msra.mxu0 %v502
    %508 = vmatprep.subr.bf16.mxu0 0
    %509 = vmatpush1.bf16.msra.mxu0 %v503
    %510 = vmatprep.subr.bf16.mxu0 0
    %511 = vmatpush1.bf16.msra.mxu0 0
    %512 = vmatprep.subr.bf16.mxu0 0
    %513 = vmatpush1.bf16.msra.mxu0 0
    %514 = vmatprep.subr.bf16.mxu0 0
    %515 = vmatpush1.bf16.msra.mxu0 0
    %516 = vmatprep.subr.bf16.mxu0 0
    %517 = vmatpush1.bf16.msra.mxu0 0
    %518 = vmatprep.subr.bf16.mxu0 0
    %519 = vmatpush1.bf16.msra.mxu0 0
    %520 = vmatprep.subr.bf16.mxu0 0
    %521 = vmatpush1.bf16.msra.mxu0 0
    %522 = vmatprep.subr.bf16.mxu0 0
    %523 = vmatpush1.bf16.msra.mxu0 0
    %524 = vmatprep.subr.bf16.mxu0 0
    %525 = vmatpush1.bf16.msra.mxu0 0
    %526 = vmatprep.subr.bf16.mxu0 0
    %527 = vmatpush1.bf16.msra.mxu0 0
    %528 = vmatprep.subr.bf16.mxu0 0
    %529 = vmatpush1.bf16.msra.mxu0 0
    %530 = vmatprep.subr.bf16.mxu0 0
    %531 = vmatpush1.bf16.msra.mxu0 0
    %532 = vmatprep.subr.bf16.mxu0 0
    %533 = vmatpush1.bf16.msra.mxu0 0
    %534 = vmatprep.subr.bf16.mxu0 0
    %535 = vmatpush1.bf16.msra.mxu0 0
    %536 = vmatprep.subr.bf16.mxu0 0
    %537 = vmatpush1.bf16.msra.mxu0 0
    %538 = vmatprep.mubr.bf16.mxu0 0
    %539 = vmatmul.mubr.bf16.gmra.mrb[0].mxu0 %v186
    %v540 = vpop.f32.mrb[0].mxu0
    %v541 = vadd.f32 0.0, %v540
    %v542 = vpop.f32.mrb[0].mxu0
    %v543 = vpop.f32.mrb[0].mxu0
    %v544 = vadd.f32 0.0, %v543
    %v545 = vpop.f32.mrb[0].mxu0
    %546 = vdwg.mxu0
    %v551 = vunpack.c.l.b16 %v147
    %v552 = vunpack.c.l.b16 %v148
    %v553 = vunpack.c.l.b16 %v149
    %v554 = vunpack.c.l.b16 %v150
    %v555 = vpack.c.b16 %v552, %v551
    %v556 = vpack.c.b16 %v554, %v553
    %559 = vmatprep.subr.bf16.mxu0 0
    %560 = vmatpush1.bf16.msra.mxu0 %v555
    %561 = vmatprep.subr.bf16.mxu0 0
    %562 = vmatpush1.bf16.msra.mxu0 %v556
    %563 = vmatprep.subr.bf16.mxu0 0
    %564 = vmatpush1.bf16.msra.mxu0 0
    %565 = vmatprep.subr.bf16.mxu0 0
    %566 = vmatpush1.bf16.msra.mxu0 0
    %567 = vmatprep.subr.bf16.mxu0 0
    %568 = vmatpush1.bf16.msra.mxu0 0
    %569 = vmatprep.subr.bf16.mxu0 0
    %570 = vmatpush1.bf16.msra.mxu0 0
    %571 = vmatprep.subr.bf16.mxu0 0
    %572 = vmatpush1.bf16.msra.mxu0 0
    %573 = vmatprep.subr.bf16.mxu0 0
    %574 = vmatpush1.bf16.msra.mxu0 0
    %575 = vmatprep.subr.bf16.mxu0 0
    %576 = vmatpush1.bf16.msra.mxu0 0
    %577 = vmatprep.subr.bf16.mxu0 0
    %578 = vmatpush1.bf16.msra.mxu0 0
    %579 = vmatprep.subr.bf16.mxu0 0
    %580 = vmatpush1.bf16.msra.mxu0 0
    %581 = vmatprep.subr.bf16.mxu0 0
    %582 = vmatpush1.bf16.msra.mxu0 0
    %583 = vmatprep.subr.bf16.mxu0 0
    %584 = vmatpush1.bf16.msra.mxu0 0
    %585 = vmatprep.subr.bf16.mxu0 0
    %586 = vmatpush1.bf16.msra.mxu0 0
    %587 = vmatprep.subr.bf16.mxu0 0
    %588 = vmatpush1.bf16.msra.mxu0 0
    %589 = vmatprep.subr.bf16.mxu0 0
    %590 = vmatpush1.bf16.msra.mxu0 0
    %591 = vmatprep.mubr.bf16.mxu0 0
    %592 = vmatmul.mubr.bf16.gmra.mrb[0].mxu0 %v186
    %v593 = vpop.f32.mrb[0].mxu0
    %v594 = vadd.f32 0.0, %v593
    %v595 = vpop.f32.mrb[0].mxu0
    %v596 = vpop.f32.mrb[0].mxu0
    %v597 = vadd.f32 0.0, %v596
    %v598 = vpop.f32.mrb[0].mxu0
    %599 = vdwg.mxu0
    %v604 = vunpack.c.l.b16 %v151
    %v605 = vunpack.c.l.b16 %v152
    %v606 = vunpack.c.l.b16 %v153
    %v607 = vunpack.c.l.b16 %v154
    %v608 = vpack.c.b16 %v605, %v604
    %v609 = vpack.c.b16 %v607, %v606
    %612 = vmatprep.subr.bf16.mxu0 0
    %613 = vmatpush1.bf16.msra.mxu0 %v608
    %614 = vmatprep.subr.bf16.mxu0 0
    %615 = vmatpush1.bf16.msra.mxu0 %v609
    %616 = vmatprep.subr.bf16.mxu0 0
    %617 = vmatpush1.bf16.msra.mxu0 0
    %618 = vmatprep.subr.bf16.mxu0 0
    %619 = vmatpush1.bf16.msra.mxu0 0
    %620 = vmatprep.subr.bf16.mxu0 0
    %621 = vmatpush1.bf16.msra.mxu0 0
    %622 = vmatprep.subr.bf16.mxu0 0
    %623 = vmatpush1.bf16.msra.mxu0 0
    %624 = vmatprep.subr.bf16.mxu0 0
    %625 = vmatpush1.bf16.msra.mxu0 0
    %626 = vmatprep.subr.bf16.mxu0 0
    %627 = vmatpush1.bf16.msra.mxu0 0
    %628 = vmatprep.subr.bf16.mxu0 0
    %629 = vmatpush1.bf16.msra.mxu0 0
    %630 = vmatprep.subr.bf16.mxu0 0
    %631 = vmatpush1.bf16.msra.mxu0 0
    %632 = vmatprep.subr.bf16.mxu0 0
    %633 = vmatpush1.bf16.msra.mxu0 0
    %634 = vmatprep.subr.bf16.mxu0 0
    %635 = vmatpush1.bf16.msra.mxu0 0
    %636 = vmatprep.subr.bf16.mxu0 0
    %637 = vmatpush1.bf16.msra.mxu0 0
    %638 = vmatprep.subr.bf16.mxu0 0
    %639 = vmatpush1.bf16.msra.mxu0 0
    %640 = vmatprep.subr.bf16.mxu0 0
    %641 = vmatpush1.bf16.msra.mxu0 0
    %642 = vmatprep.subr.bf16.mxu0 0
    %643 = vmatpush1.bf16.msra.mxu0 0
    %644 = vmatprep.mubr.bf16.mxu0 0
    %645 = vmatmul.mubr.bf16.gmra.mrb[0].mxu0 %v186
    %v646 = vpop.f32.mrb[0].mxu0
    %v647 = vadd.f32 0.0, %v646
    %v648 = vpop.f32.mrb[0].mxu0
    %v649 = vpop.f32.mrb[0].mxu0
    %v650 = vadd.f32 0.0, %v649
    %v651 = vpop.f32.mrb[0].mxu0
    %652 = vdwg.mxu0
    %v657 = vunpack.c.l.b16 %v155
    %v658 = vunpack.c.l.b16 %v156
    %v659 = vunpack.c.l.b16 %v157
    %v660 = vunpack.c.l.b16 %v158
    %v661 = vpack.c.b16 %v658, %v657
    %v662 = vpack.c.b16 %v660, %v659
    %665 = vmatprep.subr.bf16.mxu0 0
    %666 = vmatpush1.bf16.msra.mxu0 %v661
    %667 = vmatprep.subr.bf16.mxu0 0
    %668 = vmatpush1.bf16.msra.mxu0 %v662
    %669 = vmatprep.subr.bf16.mxu0 0
    %670 = vmatpush1.bf16.msra.mxu0 0
    %671 = vmatprep.subr.bf16.mxu0 0
    %672 = vmatpush1.bf16.msra.mxu0 0
    %673 = vmatprep.subr.bf16.mxu0 0
    %674 = vmatpush1.bf16.msra.mxu0 0
    %675 = vmatprep.subr.bf16.mxu0 0
    %676 = vmatpush1.bf16.msra.mxu0 0
    %677 = vmatprep.subr.bf16.mxu0 0
    %678 = vmatpush1.bf16.msra.mxu0 0
    %679 = vmatprep.subr.bf16.mxu0 0
    %680 = vmatpush1.bf16.msra.mxu0 0
    %681 = vmatprep.subr.bf16.mxu0 0
    %682 = vmatpush1.bf16.msra.mxu0 0
    %683 = vmatprep.subr.bf16.mxu0 0
    %684 = vmatpush1.bf16.msra.mxu0 0
    %685 = vmatprep.subr.bf16.mxu0 0
    %686 = vmatpush1.bf16.msra.mxu0 0
    %687 = vmatprep.subr.bf16.mxu0 0
    %688 = vmatpush1.bf16.msra.mxu0 0
    %689 = vmatprep.subr.bf16.mxu0 0
    %690 = vmatpush1.bf16.msra.mxu0 0
    %691 = vmatprep.subr.bf16.mxu0 0
    %692 = vmatpush1.bf16.msra.mxu0 0
    %693 = vmatprep.subr.bf16.mxu0 0
    %694 = vmatpush1.bf16.msra.mxu0 0
    %695 = vmatprep.subr.bf16.mxu0 0
    %696 = vmatpush1.bf16.msra.mxu0 0
    %697 = vmatprep.mubr.bf16.mxu0 0
    %698 = vmatmul.mubr.bf16.gmra.mrb[0].mxu0 %v186
    %v699 = vpop.f32.mrb[0].mxu0
    %v700 = vadd.f32 0.0, %v699
    %v701 = vpop.f32.mrb[0].mxu0
    %v702 = vpop.f32.mrb[0].mxu0
    %v703 = vadd.f32 0.0, %v702
    %v704 = vpop.f32.mrb[0].mxu0
    %705 = vdwg.mxu0
    %v710 = vunpack.c.l.b16 %v159
    %v711 = vunpack.c.l.b16 %v160
    %v712 = vunpack.c.l.b16 %v161
    %v713 = vunpack.c.l.b16 %v162
    %v714 = vpack.c.b16 %v711, %v710
    %v715 = vpack.c.b16 %v713, %v712
    %718 = vmatprep.subr.bf16.mxu0 0
    %719 = vmatpush1.bf16.msra.mxu0 %v714
    %720 = vmatprep.subr.bf16.mxu0 0
    %721 = vmatpush1.bf16.msra.mxu0 %v715
    %722 = vmatprep.subr.bf16.mxu0 0
    %723 = vmatpush1.bf16.msra.mxu0 0
    %724 = vmatprep.subr.bf16.mxu0 0
    %725 = vmatpush1.bf16.msra.mxu0 0
    %726 = vmatprep.subr.bf16.mxu0 0
    %727 = vmatpush1.bf16.msra.mxu0 0
    %728 = vmatprep.subr.bf16.mxu0 0
    %729 = vmatpush1.bf16.msra.mxu0 0
    %730 = vmatprep.subr.bf16.mxu0 0
    %731 = vmatpush1.bf16.msra.mxu0 0
    %732 = vmatprep.subr.bf16.mxu0 0
    %733 = vmatpush1.bf16.msra.mxu0 0
    %734 = vmatprep.subr.bf16.mxu0 0
    %735 = vmatpush1.bf16.msra.mxu0 0
    %736 = vmatprep.subr.bf16.mxu0 0
    %737 = vmatpush1.bf16.msra.mxu0 0
    %738 = vmatprep.subr.bf16.mxu0 0
    %739 = vmatpush1.bf16.msra.mxu0 0
    %740 = vmatprep.subr.bf16.mxu0 0
    %741 = vmatpush1.bf16.msra.mxu0 0
    %742 = vmatprep.subr.bf16.mxu0 0
    %743 = vmatpush1.bf16.msra.mxu0 0
    %744 = vmatprep.subr.bf16.mxu0 0
    %745 = vmatpush1.bf16.msra.mxu0 0
    %746 = vmatprep.subr.bf16.mxu0 0
    %747 = vmatpush1.bf16.msra.mxu0 0
    %748 = vmatprep.subr.bf16.mxu0 0
    %749 = vmatpush1.bf16.msra.mxu0 0
    %750 = vmatprep.mubr.bf16.mxu0 0
    %751 = vmatmul.mubr.bf16.gmra.mrb[0].mxu0 %v186
    %v752 = vpop.f32.mrb[0].mxu0
    %v753 = vadd.f32 0.0, %v752
    %v754 = vpop.f32.mrb[0].mxu0
    %v755 = vpop.f32.mrb[0].mxu0
    %v756 = vadd.f32 0.0, %v755
    %v757 = vpop.f32.mrb[0].mxu0
    %758 = vdwg.mxu0
    %v763 = vunpack.c.l.b16 %v163
    %v764 = vunpack.c.l.b16 %v164
    %v765 = vunpack.c.l.b16 %v165
    %v766 = vunpack.c.l.b16 %v166
    %v767 = vpack.c.b16 %v764, %v763
    %v768 = vpack.c.b16 %v766, %v765
    %771 = vmatprep.subr.bf16.mxu0 0
    %772 = vmatpush1.bf16.msra.mxu0 %v767
    %773 = vmatprep.subr.bf16.mxu0 0
    %774 = vmatpush1.bf16.msra.mxu0 %v768
    %775 = vmatprep.subr.bf16.mxu0 0
    %776 = vmatpush1.bf16.msra.mxu0 0
    %777 = vmatprep.subr.bf16.mxu0 0
    %778 = vmatpush1.bf16.msra.mxu0 0
    %779 = vmatprep.subr.bf16.mxu0 0
    %780 = vmatpush1.bf16.msra.mxu0 0
    %781 = vmatprep.subr.bf16.mxu0 0
    %782 = vmatpush1.bf16.msra.mxu0 0
    %783 = vmatprep.subr.bf16.mxu0 0
    %784 = vmatpush1.bf16.msra.mxu0 0
    %785 = vmatprep.subr.bf16.mxu0 0
    %786 = vmatpush1.bf16.msra.mxu0 0
    %787 = vmatprep.subr.bf16.mxu0 0
    %788 = vmatpush1.bf16.msra.mxu0 0
    %789 = vmatprep.subr.bf16.mxu0 0
    %790 = vmatpush1.bf16.msra.mxu0 0
    %791 = vmatprep.subr.bf16.mxu0 0
    %792 = vmatpush1.bf16.msra.mxu0 0
    %793 = vmatprep.subr.bf16.mxu0 0
    %794 = vmatpush1.bf16.msra.mxu0 0
    %795 = vmatprep.subr.bf16.mxu0 0
    %796 = vmatpush1.bf16.msra.mxu0 0
    %797 = vmatprep.subr.bf16.mxu0 0
    %798 = vmatpush1.bf16.msra.mxu0 0
    %799 = vmatprep.subr.bf16.mxu0 0
    %800 = vmatpush1.bf16.msra.mxu0 0
    %801 = vmatprep.subr.bf16.mxu0 0
    %802 = vmatpush1.bf16.msra.mxu0 0
    %803 = vmatprep.mubr.bf16.mxu0 0
    %804 = vmatmul.mubr.bf16.gmra.mrb[0].mxu0 %v186
    %v805 = vpop.f32.mrb[0].mxu0
    %v806 = vadd.f32 0.0, %v805
    %v807 = vpop.f32.mrb[0].mxu0
    %v808 = vpop.f32.mrb[0].mxu0
    %v809 = vadd.f32 0.0, %v808
    %v810 = vpop.f32.mrb[0].mxu0
    %811 = vdwg.mxu0
    %v812 = vpack.c.bf16 %v226, %v223
    %v813 = vpack.c.bf16 %v279, %v276
    %v814 = vpack.c.bf16 %v332, %v329
    %v815 = vpack.c.bf16 %v385, %v382
    %v816 = vpack.c.bf16 %v438, %v435
    %v817 = vpack.c.bf16 %v491, %v488
    %v818 = vpack.c.bf16 %v544, %v541
    %v819 = vpack.c.bf16 %v597, %v594
    %vm820 = vcmask 64512
    %v822 = vsel %vm820, %v812, 0
    %v825 = vsel %vm820, %v816, 0
    %827 = vmatprep.subr.bf16.mxu0 0
    %828 = vmatpush1.bf16.xpose.msra.mxu0 %v825
    %829 = vmatprep.subr.bf16.mxu0 0
    %830 = vmatpush1.bf16.xpose.msra.mxu0 0
    %831 = vmatprep.subr.bf16.mxu0 0
    %832 = vmatpush1.bf16.xpose.msra.mxu0 0
    %833 = vmatprep.subr.bf16.mxu0 0
    %834 = vmatpush1.bf16.xpose.msra.mxu0 0
    %835 = vmatprep.subr.bf16.mxu0 0
    %836 = vmatpush1.bf16.xpose.msra.mxu0 0
    %837 = vmatprep.subr.bf16.mxu0 0
    %838 = vmatpush1.bf16.xpose.msra.mxu0 0
    %839 = vmatprep.subr.bf16.mxu0 0
    %840 = vmatpush1.bf16.xpose.msra.mxu0 0
    %841 = vmatprep.subr.bf16.mxu0 0
    %842 = vmatpush1.bf16.xpose.msra.mxu0 0
    %843 = vmatprep.subr.bf16.mxu0 0
    %844 = vmatpush1.bf16.xpose.msra.mxu0 0
    %845 = vmatprep.subr.bf16.mxu0 0
    %846 = vmatpush1.bf16.xpose.msra.mxu0 0
    %847 = vmatprep.subr.bf16.mxu0 0
    %848 = vmatpush1.bf16.xpose.msra.mxu0 0
    %849 = vmatprep.subr.bf16.mxu0 0
    %850 = vmatpush1.bf16.xpose.msra.mxu0 0
    %851 = vmatprep.subr.bf16.mxu0 0
    %852 = vmatpush1.bf16.xpose.msra.mxu0 0
    %853 = vmatprep.subr.bf16.mxu0 0
    %854 = vmatpush1.bf16.xpose.msra.mxu0 0
    %855 = vmatprep.subr.bf16.mxu0 0
    %856 = vmatpush1.bf16.xpose.msra.mxu0 0
    %857 = vmatprep.subr.bf16.mxu0 0
    %858 = vmatpush1.bf16.xpose.msra.mxu0 0
    %859 = vmatprep.mubr.bf16.mxu0 0
    %860 = vmatmul.mubr.bf16.gmra.mrb[0].mxu0 %v822
    %v861 = vpop.f32.mrb[0].mxu0
    %v862 = vadd.f32 0.0, %v861
    %v863 = vpop.f32.mrb[0].mxu0
    %v864 = vpop.f32.mrb[0].mxu0
    %v865 = vadd.f32 0.0, %v864
    %v866 = vpop.f32.mrb[0].mxu0
    %867 = vdwg.mxu0
    %v869 = vsel %vm820, %v813, 0
    %v872 = vsel %vm820, %v817, 0
    %874 = vmatprep.subr.bf16.mxu0 0
    %875 = vmatpush1.bf16.xpose.msra.mxu0 %v872
    %876 = vmatprep.subr.bf16.mxu0 0
    %877 = vmatpush1.bf16.xpose.msra.mxu0 0
    %878 = vmatprep.subr.bf16.mxu0 0
    %879 = vmatpush1.bf16.xpose.msra.mxu0 0
    %880 = vmatprep.subr.bf16.mxu0 0
    %881 = vmatpush1.bf16.xpose.msra.mxu0 0
    %882 = vmatprep.subr.bf16.mxu0 0
    %883 = vmatpush1.bf16.xpose.msra.mxu0 0
    %884 = vmatprep.subr.bf16.mxu0 0
    %885 = vmatpush1.bf16.xpose.msra.mxu0 0
    %886 = vmatprep.subr.bf16.mxu0 0
    %887 = vmatpush1.bf16.xpose.msra.mxu0 0
    %888 = vmatprep.subr.bf16.mxu0 0
    %889 = vmatpush1.bf16.xpose.msra.mxu0 0
    %890 = vmatprep.subr.bf16.mxu0 0
    %891 = vmatpush1.bf16.xpose.msra.mxu0 0
    %892 = vmatprep.subr.bf16.mxu0 0
    %893 = vmatpush1.bf16.xpose.msra.mxu0 0
    %894 = vmatprep.subr.bf16.mxu0 0
    %895 = vmatpush1.bf16.xpose.msra.mxu0 0
    %896 = vmatprep.subr.bf16.mxu0 0
    %897 = vmatpush1.bf16.xpose.msra.mxu0 0
    %898 = vmatprep.subr.bf16.mxu0 0
    %899 = vmatpush1.bf16.xpose.msra.mxu0 0
    %900 = vmatprep.subr.bf16.mxu0 0
    %901 = vmatpush1.bf16.xpose.msra.mxu0 0
    %902 = vmatprep.subr.bf16.mxu0 0
    %903 = vmatpush1.bf16.xpose.msra.mxu0 0
    %904 = vmatprep.subr.bf16.mxu0 0
    %905 = vmatpush1.bf16.xpose.msra.mxu0 0
    %906 = vmatprep.mubr.bf16.mxu0 0
    %907 = vmatmul.mubr.bf16.gmra.mrb[0].mxu0 %v869
    %v908 = vpop.f32.mrb[0].mxu0
    %v909 = vadd.f32 0.0, %v908
    %v910 = vpop.f32.mrb[0].mxu0
    %v911 = vpop.f32.mrb[0].mxu0
    %v912 = vadd.f32 0.0, %v911
    %v913 = vpop.f32.mrb[0].mxu0
    %914 = vdwg.mxu0
    %v916 = vsel %vm820, %v814, 0
    %v919 = vsel %vm820, %v818, 0
    %921 = vmatprep.subr.bf16.mxu0 0
    %922 = vmatpush1.bf16.xpose.msra.mxu0 %v919
    %923 = vmatprep.subr.bf16.mxu0 0
    %924 = vmatpush1.bf16.xpose.msra.mxu0 0
    %925 = vmatprep.subr.bf16.mxu0 0
    %926 = vmatpush1.bf16.xpose.msra.mxu0 0
    %927 = vmatprep.subr.bf16.mxu0 0
    %928 = vmatpush1.bf16.xpose.msra.mxu0 0
    %929 = vmatprep.subr.bf16.mxu0 0
    %930 = vmatpush1.bf16.xpose.msra.mxu0 0
    %931 = vmatprep.subr.bf16.mxu0 0
    %932 = vmatpush1.bf16.xpose.msra.mxu0 0
    %933 = vmatprep.subr.bf16.mxu0 0
    %934 = vmatpush1.bf16.xpose.msra.mxu0 0
    %935 = vmatprep.subr.bf16.mxu0 0
    %936 = vmatpush1.bf16.xpose.msra.mxu0 0
    %937 = vmatprep.subr.bf16.mxu0 0
    %938 = vmatpush1.bf16.xpose.msra.mxu0 0
    %939 = vmatprep.subr.bf16.mxu0 0
    %940 = vmatpush1.bf16.xpose.msra.mxu0 0
    %941 = vmatprep.subr.bf16.mxu0 0
    %942 = vmatpush1.bf16.xpose.msra.mxu0 0
    %943 = vmatprep.subr.bf16.mxu0 0
    %944 = vmatpush1.bf16.xpose.msra.mxu0 0
    %945 = vmatprep.subr.bf16.mxu0 0
    %946 = vmatpush1.bf16.xpose.msra.mxu0 0
    %947 = vmatprep.subr.bf16.mxu0 0
    %948 = vmatpush1.bf16.xpose.msra.mxu0 0
    %949 = vmatprep.subr.bf16.mxu0 0
    %950 = vmatpush1.bf16.xpose.msra.mxu0 0
    %951 = vmatprep.subr.bf16.mxu0 0
    %952 = vmatpush1.bf16.xpose.msra.mxu0 0
    %953 = vmatprep.mubr.bf16.mxu0 0
    %954 = vmatmul.mubr.bf16.gmra.mrb[0].mxu0 %v916
    %v955 = vpop.f32.mrb[0].mxu0
    %v956 = vadd.f32 0.0, %v955
    %v957 = vpop.f32.mrb[0].mxu0
    %v958 = vpop.f32.mrb[0].mxu0
    %v959 = vadd.f32 0.0, %v958
    %v960 = vpop.f32.mrb[0].mxu0
    %961 = vdwg.mxu0
    %v963 = vsel %vm820, %v815, 0
    %v966 = vsel %vm820, %v819, 0
    %968 = vmatprep.subr.bf16.mxu0 0
    %969 = vmatpush1.bf16.xpose.msra.mxu0 %v966
    %970 = vmatprep.subr.bf16.mxu0 0
    %971 = vmatpush1.bf16.xpose.msra.mxu0 0
    %972 = vmatprep.subr.bf16.mxu0 0
    %973 = vmatpush1.bf16.xpose.msra.mxu0 0
    %974 = vmatprep.subr.bf16.mxu0 0
    %975 = vmatpush1.bf16.xpose.msra.mxu0 0
    %976 = vmatprep.subr.bf16.mxu0 0
    %977 = vmatpush1.bf16.xpose.msra.mxu0 0
    %978 = vmatprep.subr.bf16.mxu0 0
    %979 = vmatpush1.bf16.xpose.msra.mxu0 0
    %980 = vmatprep.subr.bf16.mxu0 0
    %981 = vmatpush1.bf16.xpose.msra.mxu0 0
    %982 = vmatprep.subr.bf16.mxu0 0
    %983 = vmatpush1.bf16.xpose.msra.mxu0 0
    %984 = vmatprep.subr.bf16.mxu0 0
    %985 = vmatpush1.bf16.xpose.msra.mxu0 0
    %986 = vmatprep.subr.bf16.mxu0 0
    %987 = vmatpush1.bf16.xpose.msra.mxu0 0
    %988 = vmatprep.subr.bf16.mxu0 0
    %989 = vmatpush1.bf16.xpose.msra.mxu0 0
    %990 = vmatprep.subr.bf16.mxu0 0
    %991 = vmatpush1.bf16.xpose.msra.mxu0 0
    %992 = vmatprep.subr.bf16.mxu0 0
    %993 = vmatpush1.bf16.xpose.msra.mxu0 0
    %994 = vmatprep.subr.bf16.mxu0 0
    %995 = vmatpush1.bf16.xpose.msra.mxu0 0
    %996 = vmatprep.subr.bf16.mxu0 0
    %997 = vmatpush1.bf16.xpose.msra.mxu0 0
    %998 = vmatprep.subr.bf16.mxu0 0
    %999 = vmatpush1.bf16.xpose.msra.mxu0 0
    %1000 = vmatprep.mubr.bf16.mxu0 0
    %1001 = vmatmul.mubr.bf16.gmra.mrb[0].mxu0 %v963
    %v1002 = vpop.f32.mrb[0].mxu0
    %v1003 = vadd.f32 0.0, %v1002
    %v1004 = vpop.f32.mrb[0].mxu0
    %v1005 = vpop.f32.mrb[0].mxu0
    %v1006 = vadd.f32 0.0, %v1005
    %v1007 = vpop.f32.mrb[0].mxu0
    %1008 = vdwg.mxu0
    %v1009 = vmul.f32 %v862, 0.35355338
    %v1010 = vmul.f32 %v865, 0.35355338
    %v1011 = vmul.f32 %v909, 0.35355338
    %v1012 = vmul.f32 %v912, 0.35355338
    %v1013 = vmul.f32 %v956, 0.35355338
    %v1014 = vmul.f32 %v959, 0.35355338
    %v1015 = vmul.f32 %v1003, 0.35355338
    %v1016 = vmul.f32 %v1006, 0.35355338
    %v1017 = vadd.f32 %v1009, %v117
    %v1018 = vadd.f32 %v1010, %v118
    %v1019 = vadd.f32 %v1011, %v117
    %v1020 = vadd.f32 %v1012, %v118
    %v1021 = vadd.f32 %v1013, %v117
    %v1022 = vadd.f32 %v1014, %v118
    %v1023 = vadd.f32 %v1015, %v117
    %v1024 = vadd.f32 %v1016, %v118
    %vm1025 = vcmask 130048
    %v1026 = vsel %vm1025, %v1017, -inf
    %1027 = vmax.xlane.f32.xlu0 %v1026
    %v1028 = vpop.xlane.xlu0 %1027
    %v1029 = vsel %vm1025, %v1018, -inf
    %1030 = vmax.xlane.f32.xlu0 %v1029
    %v1031 = vpop.xlane.xlu0 %1030
    %v1032 = vsel %vm1025, %v1019, -inf
    %1033 = vmax.xlane.f32.xlu0 %v1032
    %v1034 = vpop.xlane.xlu0 %1033
    %v1035 = vsel %vm1025, %v1020, -inf
    %1036 = vmax.xlane.f32.xlu0 %v1035
    %v1037 = vpop.xlane.xlu0 %1036
    %v1038 = vsel %vm1025, %v1021, -inf
    %1039 = vmax.xlane.f32.xlu0 %v1038
    %v1040 = vpop.xlane.xlu0 %1039
    %v1041 = vsel %vm1025, %v1022, -inf
    %1042 = vmax.xlane.f32.xlu0 %v1041
    %v1043 = vpop.xlane.xlu0 %1042
    %v1044 = vsel %vm1025, %v1023, -inf
    %1045 = vmax.xlane.f32.xlu0 %v1044
    %v1046 = vpop.xlane.xlu0 %1045
    %v1047 = vsel %vm1025, %v1024, -inf
    %1048 = vmax.xlane.f32.xlu0 %v1047
    %v1049 = vpop.xlane.xlu0 %1048
    %v1050 = vsub.f32 %v1017, %v1028
    %v1051 = vsub.f32 %v1018, %v1031
    %v1052 = vsub.f32 %v1019, %v1034
    %v1053 = vsub.f32 %v1020, %v1037
    %v1054 = vsub.f32 %v1021, %v1040
    %v1055 = vsub.f32 %v1022, %v1043
    %v1056 = vsub.f32 %v1023, %v1046
    %v1057 = vsub.f32 %v1024, %v1049
    %v1058 = vmul.f32 %v1050, 1.442695
    %v1059 = vpow.pop %v1058
    %v1060 = vmul.f32 %v1051, 1.442695
    %v1061 = vpow.pop %v1060
    %v1062 = vmul.f32 %v1052, 1.442695
    %v1063 = vpow.pop %v1062
    %v1064 = vmul.f32 %v1053, 1.442695
    %v1065 = vpow.pop %v1064
    %v1066 = vmul.f32 %v1054, 1.442695
    %v1067 = vpow.pop %v1066
    %v1068 = vmul.f32 %v1055, 1.442695
    %v1069 = vpow.pop %v1068
    %v1070 = vmul.f32 %v1056, 1.442695
    %v1071 = vpow.pop %v1070
    %v1072 = vmul.f32 %v1057, 1.442695
    %v1073 = vpow.pop %v1072
    %v1074 = vsel %vm1025, %v1059, 0.0
    %1075 = vadd.xlane.f32.xlu0 %v1074
    %v1076 = vpop.xlane.xlu0 %1075
    %v1077 = vsel %vm1025, %v1061, 0.0
    %1078 = vadd.xlane.f32.xlu0 %v1077
    %v1079 = vpop.xlane.xlu0 %1078
    %v1080 = vsel %vm1025, %v1063, 0.0
    %1081 = vadd.xlane.f32.xlu0 %v1080
    %v1082 = vpop.xlane.xlu0 %1081
    %v1083 = vsel %vm1025, %v1065, 0.0
    %1084 = vadd.xlane.f32.xlu0 %v1083
    %v1085 = vpop.xlane.xlu0 %1084
    %v1086 = vsel %vm1025, %v1067, 0.0
    %1087 = vadd.xlane.f32.xlu0 %v1086
    %v1088 = vpop.xlane.xlu0 %1087
    %v1089 = vsel %vm1025, %v1069, 0.0
    %1090 = vadd.xlane.f32.xlu0 %v1089
    %v1091 = vpop.xlane.xlu0 %1090
    %v1092 = vsel %vm1025, %v1071, 0.0
    %1093 = vadd.xlane.f32.xlu0 %v1092
    %v1094 = vpop.xlane.xlu0 %1093
    %v1095 = vsel %vm1025, %v1073, 0.0
    %1096 = vadd.xlane.f32.xlu0 %v1095
    %v1097 = vpop.xlane.xlu0 %1096
    %v1098 = vrcp.pop %v1076
    %v1099 = vrcp.pop %v1079
    %v1100 = vrcp.pop %v1082
    %v1101 = vrcp.pop %v1085
    %v1102 = vrcp.pop %v1088
    %v1103 = vrcp.pop %v1091
    %v1104 = vrcp.pop %v1094
    %v1105 = vrcp.pop %v1097
    %v1106 = vmul.f32 %v1059, %v1098
    %v1107 = vmul.f32 %v1061, %v1099
    %v1108 = vmul.f32 %v1063, %v1100
    %v1109 = vmul.f32 %v1065, %v1101
    %v1110 = vmul.f32 %v1067, %v1102
    %v1111 = vmul.f32 %v1069, %v1103
    %v1112 = vmul.f32 %v1071, %v1104
    %v1113 = vmul.f32 %v1073, %v1105
    %v1114 = vpack.c.bf16 %v1107, %v1106
    %v1115 = vpack.c.bf16 %v1109, %v1108
    %v1116 = vpack.c.bf16 %v1111, %v1110
    %v1117 = vpack.c.bf16 %v1113, %v1112
    %v1118 = vpack.c.bf16 %v650, %v647
    %v1119 = vpack.c.bf16 %v703, %v700
    %v1120 = vpack.c.bf16 %v756, %v753
    %v1121 = vpack.c.bf16 %v809, %v806
    %v1123 = vsel %vm1025, %v1114, 0
    %1125 = vmatprep.subr.bf16.mxu0 0
    %1126 = vmatpush1.bf16.msra.mxu0 %v1118
    %1127 = vmatprep.subr.bf16.mxu0 0
    %1128 = vmatpush1.bf16.msra.mxu0 0
    %1129 = vmatprep.subr.bf16.mxu0 0
    %1130 = vmatpush1.bf16.msra.mxu0 0
    %1131 = vmatprep.subr.bf16.mxu0 0
    %1132 = vmatpush1.bf16.msra.mxu0 0
    %1133 = vmatprep.subr.bf16.mxu0 0
    %1134 = vmatpush1.bf16.msra.mxu0 0
    %1135 = vmatprep.subr.bf16.mxu0 0
    %1136 = vmatpush1.bf16.msra.mxu0 0
    %1137 = vmatprep.subr.bf16.mxu0 0
    %1138 = vmatpush1.bf16.msra.mxu0 0
    %1139 = vmatprep.subr.bf16.mxu0 0
    %1140 = vmatpush1.bf16.msra.mxu0 0
    %1141 = vmatprep.subr.bf16.mxu0 0
    %1142 = vmatpush1.bf16.msra.mxu0 0
    %1143 = vmatprep.subr.bf16.mxu0 0
    %1144 = vmatpush1.bf16.msra.mxu0 0
    %1145 = vmatprep.subr.bf16.mxu0 0
    %1146 = vmatpush1.bf16.msra.mxu0 0
    %1147 = vmatprep.subr.bf16.mxu0 0
    %1148 = vmatpush1.bf16.msra.mxu0 0
    %1149 = vmatprep.subr.bf16.mxu0 0
    %1150 = vmatpush1.bf16.msra.mxu0 0
    %1151 = vmatprep.subr.bf16.mxu0 0
    %1152 = vmatpush1.bf16.msra.mxu0 0
    %1153 = vmatprep.subr.bf16.mxu0 0
    %1154 = vmatpush1.bf16.msra.mxu0 0
    %1155 = vmatprep.subr.bf16.mxu0 0
    %1156 = vmatpush1.bf16.msra.mxu0 0
    %1157 = vmatprep.mubr.bf16.mxu0 0
    %1158 = vmatmul.mubr.bf16.gmra.mrb[0].mxu0 %v1123
    %v1159 = vpop.f32.mrb[0].mxu0
    %v1160 = vadd.f32 0.0, %v1159
    %v1161 = vpop.f32.mrb[0].mxu0
    %v1162 = vpop.f32.mrb[0].mxu0
    %v1163 = vadd.f32 0.0, %v1162
    %v1164 = vpop.f32.mrb[0].mxu0
    %1165 = vdwg.mxu0
    %v1167 = vsel %vm1025, %v1115, 0
    %1169 = vmatprep.subr.bf16.mxu0 0
    %1170 = vmatpush1.bf16.msra.mxu0 %v1119
    %1171 = vmatprep.subr.bf16.mxu0 0
    %1172 = vmatpush1.bf16.msra.mxu0 0
    %1173 = vmatprep.subr.bf16.mxu0 0
    %1174 = vmatpush1.bf16.msra.mxu0 0
    %1175 = vmatprep.subr.bf16.mxu0 0
    %1176 = vmatpush1.bf16.msra.mxu0 0
    %1177 = vmatprep.subr.bf16.mxu0 0
    %1178 = vmatpush1.bf16.msra.mxu0 0
    %1179 = vmatprep.subr.bf16.mxu0 0
    %1180 = vmatpush1.bf16.msra.mxu0 0
    %1181 = vmatprep.subr.bf16.mxu0 0
    %1182 = vmatpush1.bf16.msra.mxu0 0
    %1183 = vmatprep.subr.bf16.mxu0 0
    %1184 = vmatpush1.bf16.msra.mxu0 0
    %1185 = vmatprep.subr.bf16.mxu0 0
    %1186 = vmatpush1.bf16.msra.mxu0 0
    %1187 = vmatprep.subr.bf16.mxu0 0
    %1188 = vmatpush1.bf16.msra.mxu0 0
    %1189 = vmatprep.subr.bf16.mxu0 0
    %1190 = vmatpush1.bf16.msra.mxu0 0
    %1191 = vmatprep.subr.bf16.mxu0 0
    %1192 = vmatpush1.bf16.msra.mxu0 0
    %1193 = vmatprep.subr.bf16.mxu0 0
    %1194 = vmatpush1.bf16.msra.mxu0 0
    %1195 = vmatprep.subr.bf16.mxu0 0
    %1196 = vmatpush1.bf16.msra.mxu0 0
    %1197 = vmatprep.subr.bf16.mxu0 0
    %1198 = vmatpush1.bf16.msra.mxu0 0
    %1199 = vmatprep.subr.bf16.mxu0 0
    %1200 = vmatpush1.bf16.msra.mxu0 0
    %1201 = vmatprep.mubr.bf16.mxu0 0
    %1202 = vmatmul.mubr.bf16.gmra.mrb[0].mxu0 %v1167
    %v1203 = vpop.f32.mrb[0].mxu0
    %v1204 = vadd.f32 0.0, %v1203
    %v1205 = vpop.f32.mrb[0].mxu0
    %v1206 = vpop.f32.mrb[0].mxu0
    %v1207 = vadd.f32 0.0, %v1206
    %v1208 = vpop.f32.mrb[0].mxu0
    %1209 = vdwg.mxu0
    %v1211 = vsel %vm1025, %v1116, 0
    %1213 = vmatprep.subr.bf16.mxu0 0
    %1214 = vmatpush1.bf16.msra.mxu0 %v1120
    %1215 = vmatprep.subr.bf16.mxu0 0
    %1216 = vmatpush1.bf16.msra.mxu0 0
    %1217 = vmatprep.subr.bf16.mxu0 0
    %1218 = vmatpush1.bf16.msra.mxu0 0
    %1219 = vmatprep.subr.bf16.mxu0 0
    %1220 = vmatpush1.bf16.msra.mxu0 0
    %1221 = vmatprep.subr.bf16.mxu0 0
    %1222 = vmatpush1.bf16.msra.mxu0 0
    %1223 = vmatprep.subr.bf16.mxu0 0
    %1224 = vmatpush1.bf16.msra.mxu0 0
    %1225 = vmatprep.subr.bf16.mxu0 0
    %1226 = vmatpush1.bf16.msra.mxu0 0
    %1227 = vmatprep.subr.bf16.mxu0 0
    %1228 = vmatpush1.bf16.msra.mxu0 0
    %1229 = vmatprep.subr.bf16.mxu0 0
    %1230 = vmatpush1.bf16.msra.mxu0 0
    %1231 = vmatprep.subr.bf16.mxu0 0
    %1232 = vmatpush1.bf16.msra.mxu0 0
    %1233 = vmatprep.subr.bf16.mxu0 0
    %1234 = vmatpush1.bf16.msra.mxu0 0
    %1235 = vmatprep.subr.bf16.mxu0 0
    %1236 = vmatpush1.bf16.msra.mxu0 0
    %1237 = vmatprep.subr.bf16.mxu0 0
    %1238 = vmatpush1.bf16.msra.mxu0 0
    %1239 = vmatprep.subr.bf16.mxu0 0
    %1240 = vmatpush1.bf16.msra.mxu0 0
    %1241 = vmatprep.subr.bf16.mxu0 0
    %1242 = vmatpush1.bf16.msra.mxu0 0
    %1243 = vmatprep.subr.bf16.mxu0 0
    %1244 = vmatpush1.bf16.msra.mxu0 0
    %1245 = vmatprep.mubr.bf16.mxu0 0
    %1246 = vmatmul.mubr.bf16.gmra.mrb[0].mxu0 %v1211
    %v1247 = vpop.f32.mrb[0].mxu0
    %v1248 = vadd.f32 0.0, %v1247
    %v1249 = vpop.f32.mrb[0].mxu0
    %v1250 = vpop.f32.mrb[0].mxu0
    %v1251 = vadd.f32 0.0, %v1250
    %v1252 = vpop.f32.mrb[0].mxu0
    %1253 = vdwg.mxu0
    %v1255 = vsel %vm1025, %v1117, 0
    %1257 = vmatprep.subr.bf16.mxu0 0
    %1258 = vmatpush1.bf16.msra.mxu0 %v1121
    %1259 = vmatprep.subr.bf16.mxu0 0
    %1260 = vmatpush1.bf16.msra.mxu0 0
    %1261 = vmatprep.subr.bf16.mxu0 0
    %1262 = vmatpush1.bf16.msra.mxu0 0
    %1263 = vmatprep.subr.bf16.mxu0 0
    %1264 = vmatpush1.bf16.msra.mxu0 0
    %1265 = vmatprep.subr.bf16.mxu0 0
    %1266 = vmatpush1.bf16.msra.mxu0 0
    %1267 = vmatprep.subr.bf16.mxu0 0
    %1268 = vmatpush1.bf16.msra.mxu0 0
    %1269 = vmatprep.subr.bf16.mxu0 0
    %1270 = vmatpush1.bf16.msra.mxu0 0
    %1271 = vmatprep.subr.bf16.mxu0 0
    %1272 = vmatpush1.bf16.msra.mxu0 0
    %1273 = vmatprep.subr.bf16.mxu0 0
    %1274 = vmatpush1.bf16.msra.mxu0 0
    %1275 = vmatprep.subr.bf16.mxu0 0
    %1276 = vmatpush1.bf16.msra.mxu0 0
    %1277 = vmatprep.subr.bf16.mxu0 0
    %1278 = vmatpush1.bf16.msra.mxu0 0
    %1279 = vmatprep.subr.bf16.mxu0 0
    %1280 = vmatpush1.bf16.msra.mxu0 0
    %1281 = vmatprep.subr.bf16.mxu0 0
    %1282 = vmatpush1.bf16.msra.mxu0 0
    %1283 = vmatprep.subr.bf16.mxu0 0
    %1284 = vmatpush1.bf16.msra.mxu0 0
    %1285 = vmatprep.subr.bf16.mxu0 0
    %1286 = vmatpush1.bf16.msra.mxu0 0
    %1287 = vmatprep.subr.bf16.mxu0 0
    %1288 = vmatpush1.bf16.msra.mxu0 0
    %1289 = vmatprep.mubr.bf16.mxu0 0
    %1290 = vmatmul.mubr.bf16.gmra.mrb[0].mxu0 %v1255
    %v1291 = vpop.f32.mrb[0].mxu0
    %v1292 = vadd.f32 0.0, %v1291
    %v1293 = vpop.f32.mrb[0].mxu0
    %v1294 = vpop.f32.mrb[0].mxu0
    %v1295 = vadd.f32 0.0, %v1294
    %v1296 = vpop.f32.mrb[0].mxu0
    %1297 = vdwg.mxu0
    %v1298 = vpack.c.bf16 %v1163, %v1160
    %v1299 = vpack.c.bf16 %v1207, %v1204
    %v1300 = vpack.c.bf16 %v1251, %v1248
    %v1301 = vpack.c.bf16 %v1295, %v1292
    %v1303 = vsel %vm820, %v1298, 0
    %vm1305 = vcmask 1043456
    %v1307 = vsel %vm1305, %v167, 0
    %1309 = vmatprep.subr.bf16.mxu0 0
    %1310 = vmatpush1.bf16.msra.mxu0 %v1307
    %1311 = vmatprep.subr.bf16.mxu0 0
    %1312 = vmatpush1.bf16.msra.mxu0 0
    %1313 = vmatprep.subr.bf16.mxu0 0
    %1314 = vmatpush1.bf16.msra.mxu0 0
    %1315 = vmatprep.subr.bf16.mxu0 0
    %1316 = vmatpush1.bf16.msra.mxu0 0
    %1317 = vmatprep.subr.bf16.mxu0 0
    %1318 = vmatpush1.bf16.msra.mxu0 0
    %1319 = vmatprep.subr.bf16.mxu0 0
    %1320 = vmatpush1.bf16.msra.mxu0 0
    %1321 = vmatprep.subr.bf16.mxu0 0
    %1322 = vmatpush1.bf16.msra.mxu0 0
    %1323 = vmatprep.subr.bf16.mxu0 0
    %1324 = vmatpush1.bf16.msra.mxu0 0
    %1325 = vmatprep.subr.bf16.mxu0 0
    %1326 = vmatpush1.bf16.msra.mxu0 0
    %1327 = vmatprep.subr.bf16.mxu0 0
    %1328 = vmatpush1.bf16.msra.mxu0 0
    %1329 = vmatprep.subr.bf16.mxu0 0
    %1330 = vmatpush1.bf16.msra.mxu0 0
    %1331 = vmatprep.subr.bf16.mxu0 0
    %1332 = vmatpush1.bf16.msra.mxu0 0
    %1333 = vmatprep.subr.bf16.mxu0 0
    %1334 = vmatpush1.bf16.msra.mxu0 0
    %1335 = vmatprep.subr.bf16.mxu0 0
    %1336 = vmatpush1.bf16.msra.mxu0 0
    %1337 = vmatprep.subr.bf16.mxu0 0
    %1338 = vmatpush1.bf16.msra.mxu0 0
    %1339 = vmatprep.subr.bf16.mxu0 0
    %1340 = vmatpush1.bf16.msra.mxu0 0
    %1341 = vmatprep.mubr.bf16.mxu0 0
    %1342 = vmatmul.mubr.bf16.gmra.mrb[0].mxu0 %v1303
    %v1343 = vpop.f32.mrb[0].mxu0
    %v1344 = vadd.f32 0.0, %v1343
    %v1345 = vpop.f32.mrb[0].mxu0
    %v1346 = vpop.f32.mrb[0].mxu0
    %v1347 = vadd.f32 0.0, %v1346
    %v1348 = vpop.f32.mrb[0].mxu0
    %1349 = vdwg.mxu0
    %v1351 = vsel %vm820, %v1299, 0
    %v1354 = vsel %vm1305, %v168, 0
    %1356 = vmatprep.subr.bf16.mxu0 0
    %1357 = vmatpush1.bf16.msra.mxu0 %v1354
    %1358 = vmatprep.subr.bf16.mxu0 0
    %1359 = vmatpush1.bf16.msra.mxu0 0
    %1360 = vmatprep.subr.bf16.mxu0 0
    %1361 = vmatpush1.bf16.msra.mxu0 0
    %1362 = vmatprep.subr.bf16.mxu0 0
    %1363 = vmatpush1.bf16.msra.mxu0 0
    %1364 = vmatprep.subr.bf16.mxu0 0
    %1365 = vmatpush1.bf16.msra.mxu0 0
    %1366 = vmatprep.subr.bf16.mxu0 0
    %1367 = vmatpush1.bf16.msra.mxu0 0
    %1368 = vmatprep.subr.bf16.mxu0 0
    %1369 = vmatpush1.bf16.msra.mxu0 0
    %1370 = vmatprep.subr.bf16.mxu0 0
    %1371 = vmatpush1.bf16.msra.mxu0 0
    %1372 = vmatprep.subr.bf16.mxu0 0
    %1373 = vmatpush1.bf16.msra.mxu0 0
    %1374 = vmatprep.subr.bf16.mxu0 0
    %1375 = vmatpush1.bf16.msra.mxu0 0
    %1376 = vmatprep.subr.bf16.mxu0 0
    %1377 = vmatpush1.bf16.msra.mxu0 0
    %1378 = vmatprep.subr.bf16.mxu0 0
    %1379 = vmatpush1.bf16.msra.mxu0 0
    %1380 = vmatprep.subr.bf16.mxu0 0
    %1381 = vmatpush1.bf16.msra.mxu0 0
    %1382 = vmatprep.subr.bf16.mxu0 0
    %1383 = vmatpush1.bf16.msra.mxu0 0
    %1384 = vmatprep.subr.bf16.mxu0 0
    %1385 = vmatpush1.bf16.msra.mxu0 0
    %1386 = vmatprep.subr.bf16.mxu0 0
    %1387 = vmatpush1.bf16.msra.mxu0 0
    %1388 = vmatprep.mubr.bf16.mxu0 0
    %1389 = vmatmul.mubr.bf16.gmra.mrb[0].mxu0 %v1351
    %v1390 = vpop.f32.mrb[0].mxu0
    %v1391 = vadd.f32 0.0, %v1390
    %v1392 = vpop.f32.mrb[0].mxu0
    %v1393 = vpop.f32.mrb[0].mxu0
    %v1394 = vadd.f32 0.0, %v1393
    %v1395 = vpop.f32.mrb[0].mxu0
    %1396 = vdwg.mxu0
    %v1398 = vsel %vm820, %v1300, 0
    %v1401 = vsel %vm1305, %v169, 0
    %1403 = vmatprep.subr.bf16.mxu0 0
    %1404 = vmatpush1.bf16.msra.mxu0 %v1401
    %1405 = vmatprep.subr.bf16.mxu0 0
    %1406 = vmatpush1.bf16.msra.mxu0 0
    %1407 = vmatprep.subr.bf16.mxu0 0
    %1408 = vmatpush1.bf16.msra.mxu0 0
    %1409 = vmatprep.subr.bf16.mxu0 0
    %1410 = vmatpush1.bf16.msra.mxu0 0
    %1411 = vmatprep.subr.bf16.mxu0 0
    %1412 = vmatpush1.bf16.msra.mxu0 0
    %1413 = vmatprep.subr.bf16.mxu0 0
    %1414 = vmatpush1.bf16.msra.mxu0 0
    %1415 = vmatprep.subr.bf16.mxu0 0
    %1416 = vmatpush1.bf16.msra.mxu0 0
    %1417 = vmatprep.subr.bf16.mxu0 0
    %1418 = vmatpush1.bf16.msra.mxu0 0
    %1419 = vmatprep.subr.bf16.mxu0 0
    %1420 = vmatpush1.bf16.msra.mxu0 0
    %1421 = vmatprep.subr.bf16.mxu0 0
    %1422 = vmatpush1.bf16.msra.mxu0 0
    %1423 = vmatprep.subr.bf16.mxu0 0
    %1424 = vmatpush1.bf16.msra.mxu0 0
    %1425 = vmatprep.subr.bf16.mxu0 0
    %1426 = vmatpush1.bf16.msra.mxu0 0
    %1427 = vmatprep.subr.bf16.mxu0 0
    %1428 = vmatpush1.bf16.msra.mxu0 0
    %1429 = vmatprep.subr.bf16.mxu0 0
    %1430 = vmatpush1.bf16.msra.mxu0 0
    %1431 = vmatprep.subr.bf16.mxu0 0
    %1432 = vmatpush1.bf16.msra.mxu0 0
    %1433 = vmatprep.subr.bf16.mxu0 0
    %1434 = vmatpush1.bf16.msra.mxu0 0
    %1435 = vmatprep.mubr.bf16.mxu0 0
    %1436 = vmatmul.mubr.bf16.gmra.mrb[0].mxu0 %v1398
    %v1437 = vpop.f32.mrb[0].mxu0
    %v1438 = vadd.f32 0.0, %v1437
    %v1439 = vpop.f32.mrb[0].mxu0
    %v1440 = vpop.f32.mrb[0].mxu0
    %v1441 = vadd.f32 0.0, %v1440
    %v1442 = vpop.f32.mrb[0].mxu0
    %1443 = vdwg.mxu0
    %v1445 = vsel %vm820, %v1301, 0
    %v1448 = vsel %vm1305, %v170, 0
    %1450 = vmatprep.subr.bf16.mxu0 0
    %1451 = vmatpush1.bf16.msra.mxu0 %v1448
    %1452 = vmatprep.subr.bf16.mxu0 0
    %1453 = vmatpush1.bf16.msra.mxu0 0
    %1454 = vmatprep.subr.bf16.mxu0 0
    %1455 = vmatpush1.bf16.msra.mxu0 0
    %1456 = vmatprep.subr.bf16.mxu0 0
    %1457 = vmatpush1.bf16.msra.mxu0 0
    %1458 = vmatprep.subr.bf16.mxu0 0
    %1459 = vmatpush1.bf16.msra.mxu0 0
    %1460 = vmatprep.subr.bf16.mxu0 0
    %1461 = vmatpush1.bf16.msra.mxu0 0
    %1462 = vmatprep.subr.bf16.mxu0 0
    %1463 = vmatpush1.bf16.msra.mxu0 0
    %1464 = vmatprep.subr.bf16.mxu0 0
    %1465 = vmatpush1.bf16.msra.mxu0 0
    %1466 = vmatprep.subr.bf16.mxu0 0
    %1467 = vmatpush1.bf16.msra.mxu0 0
    %1468 = vmatprep.subr.bf16.mxu0 0
    %1469 = vmatpush1.bf16.msra.mxu0 0
    %1470 = vmatprep.subr.bf16.mxu0 0
    %1471 = vmatpush1.bf16.msra.mxu0 0
    %1472 = vmatprep.subr.bf16.mxu0 0
    %1473 = vmatpush1.bf16.msra.mxu0 0
    %1474 = vmatprep.subr.bf16.mxu0 0
    %1475 = vmatpush1.bf16.msra.mxu0 0
    %1476 = vmatprep.subr.bf16.mxu0 0
    %1477 = vmatpush1.bf16.msra.mxu0 0
    %1478 = vmatprep.subr.bf16.mxu0 0
    %1479 = vmatpush1.bf16.msra.mxu0 0
    %1480 = vmatprep.subr.bf16.mxu0 0
    %1481 = vmatpush1.bf16.msra.mxu0 0
    %1482 = vmatprep.mubr.bf16.mxu0 0
    %1483 = vmatmul.mubr.bf16.gmra.mrb[0].mxu0 %v1445
    %v1484 = vpop.f32.mrb[0].mxu0
    %v1485 = vadd.f32 0.0, %v1484
    %v1486 = vpop.f32.mrb[0].mxu0
    %v1487 = vpop.f32.mrb[0].mxu0
    %v1488 = vadd.f32 0.0, %v1487
    %v1489 = vpop.f32.mrb[0].mxu0
    %1490 = vdwg.mxu0
    %v1491 = vsel %vm184, %v1344, 0.0
    %v1492 = vsel %vm184, %v1391, 0.0
    %v1493 = vadd.f32 %v1491, %v1492
    %v1494 = vsel %vm184, %v1438, 0.0
    %v1495 = vadd.f32 %v1493, %v1494
    %v1496 = vsel %vm184, %v1485, 0.0
    %v1497 = vadd.f32 %v1495, %v1496
    %v1498 = vsel %vm184, %v1347, 0.0
    %v1499 = vsel %vm184, %v1394, 0.0
    %v1500 = vadd.f32 %v1498, %v1499
    %v1501 = vsel %vm184, %v1441, 0.0
    %v1502 = vadd.f32 %v1500, %v1501
    %v1503 = vsel %vm184, %v1488, 0.0
    %v1504 = vadd.f32 %v1502, %v1503
    %v1505 = vadd.f32 %v115, %v1497
    %v1506 = vadd.f32 %v116, %v1504
    %v1507 = vld [vmem:[%s8] sm:$0x1]
    %v1508 = vld [vmem:[%s9] sm:$0x1]
    %v1509 = vsel %vm184, %v1505, 0.0
    %v1510 = vsel %vm184, %v1506, 0.0
    %v1511 = vadd.f32 %v1509, %v1510
    %v1512 = vrot.slane %v1511, 4
    %v1513 = vadd.f32 %v1511, %v1512
    %v1514 = vrot.slane %v1513, 2
    %v1515 = vadd.f32 %v1513, %v1514
    %v1516 = vrot.slane %v1515, 1
    %v1517 = vadd.f32 %v1515, %v1516
    %v1518 = vrcp.pop 16.0
    %v1519 = vmul.f32 %v1517, %v1518
    %v1520 = vsub.f32 %v1505, %v1519
    %v1521 = vsub.f32 %v1506, %v1519
    %v1522 = vmul.f32 %v1520, %v1520
    %v1523 = vmul.f32 %v1521, %v1521
    %v1524 = vsel %vm184, %v1522, 0.0
    %v1525 = vsel %vm184, %v1523, 0.0
    %v1526 = vadd.f32 %v1524, %v1525
    %v1527 = vrot.slane %v1526, 4
    %v1528 = vadd.f32 %v1526, %v1527
    %v1529 = vrot.slane %v1528, 2
    %v1530 = vadd.f32 %v1528, %v1529
    %v1531 = vrot.slane %v1530, 1
    %v1532 = vadd.f32 %v1530, %v1531
    %v1533 = vmul.f32 %v1532, %v1518
    %v1534 = vadd.f32 %v1533, 1e-05
    %v1535 = vrsqrt.pop %v1534
    %v1536 = vmul.f32 %v1520, %v1535
    %v1537 = vmul.f32 %v1521, %v1535
    %v1539 = vlaneseq
    %v1540 = vshrl.u32 %v1539, 7
    %v1541 = vsub.s32 0, %v1540
    %v1542 = vrot.slane %v1507, %v1541
    %v1544 = vmul.f32 %v1536, %v1542
    %v1545 = vmul.f32 %v1537, %v1542
    %v1547 = vlaneseq
    %v1548 = vshrl.u32 %v1547, 7
    %v1549 = vsub.s32 0, %v1548
    %v1550 = vrot.slane %v1508, %v1549
    %v1552 = vadd.f32 %v1544, %v1550
    %v1553 = vadd.f32 %v1545, %v1550
    %v1554 = vpack.c.bf16 %v1553, %v1552
    %v1555 = vld [vmem:[%s10] sm:$0xf]
    %v1556 = vld [vmem:[%s10 + $0x4] sm:$0xf]
    %v1557 = vld [vmem:[%s10 + $0x8] sm:$0xf]
    %v1558 = vld [vmem:[%s10 + $0xc] sm:$0xf]
    %v1559 = vld [vmem:[%s11] sm:$0x1]
    %v1561 = vlaneseq
    %v1562 = vshrl.u32 %v1561, 7
    %v1563 = vsub.s32 0, %v1562
    %v1564 = vrot.slane %v1559, %v1563
    %v1570 = vunpack.c.l.b16 %v1555
    %v1571 = vunpack.c.l.b16 %v1556
    %v1572 = vunpack.c.l.b16 %v1557
    %v1573 = vunpack.c.l.b16 %v1558
    %v1574 = vpack.c.b16 %v1571, %v1570
    %v1575 = vpack.c.b16 %v1573, %v1572
    %v1579 = vsel %vm184, %v1554, 0
    %1581 = vmatprep.subr.bf16.mxu0 0
    %1582 = vmatpush1.bf16.msra.mxu0 %v1574
    %1583 = vmatprep.subr.bf16.mxu0 0
    %1584 = vmatpush1.bf16.msra.mxu0 %v1575
    %1585 = vmatprep.subr.bf16.mxu0 0
    %1586 = vmatpush1.bf16.msra.mxu0 0
    %1587 = vmatprep.subr.bf16.mxu0 0
    %1588 = vmatpush1.bf16.msra.mxu0 0
    %1589 = vmatprep.subr.bf16.mxu0 0
    %1590 = vmatpush1.bf16.msra.mxu0 0
    %1591 = vmatprep.subr.bf16.mxu0 0
    %1592 = vmatpush1.bf16.msra.mxu0 0
    %1593 = vmatprep.subr.bf16.mxu0 0
    %1594 = vmatpush1.bf16.msra.mxu0 0
    %1595 = vmatprep.subr.bf16.mxu0 0
    %1596 = vmatpush1.bf16.msra.mxu0 0
    %1597 = vmatprep.subr.bf16.mxu0 0
    %1598 = vmatpush1.bf16.msra.mxu0 0
    %1599 = vmatprep.subr.bf16.mxu0 0
    %1600 = vmatpush1.bf16.msra.mxu0 0
    %1601 = vmatprep.subr.bf16.mxu0 0
    %1602 = vmatpush1.bf16.msra.mxu0 0
    %1603 = vmatprep.subr.bf16.mxu0 0
    %1604 = vmatpush1.bf16.msra.mxu0 0
    %1605 = vmatprep.subr.bf16.mxu0 0
    %1606 = vmatpush1.bf16.msra.mxu0 0
    %1607 = vmatprep.subr.bf16.mxu0 0
    %1608 = vmatpush1.bf16.msra.mxu0 0
    %1609 = vmatprep.subr.bf16.mxu0 0
    %1610 = vmatpush1.bf16.msra.mxu0 0
    %1611 = vmatprep.subr.bf16.mxu0 0
    %1612 = vmatpush1.bf16.msra.mxu0 0
    %1613 = vmatprep.mubr.bf16.mxu0 0
    %1614 = vmatmul.mubr.bf16.gmra.mrb[0].mxu0 %v1579
    %v1615 = vpop.f32.mrb[0].mxu0
    %v1616 = vadd.f32 %v1564, %v1615
    %v1617 = vpop.f32.mrb[0].mxu0
    %v1618 = vpop.f32.mrb[0].mxu0
    %v1619 = vadd.f32 %v1564, %v1618
    %v1620 = vpop.f32.mrb[0].mxu0
    %1621 = vdwg.mxu0
    %v1622 = vmax.f32 %v1616, 0.0
    %v1623 = vmax.f32 %v1619, 0.0
    %v1624 = vpack.c.bf16 %v1623, %v1622
    %v1625 = vld [vmem:[%s12] sm:$0xf]
    %v1626 = vld [vmem:[%s12 + $0x4] sm:$0xf]
    %v1627 = vld [vmem:[%s12 + $0x8] sm:$0xf]
    %v1628 = vld [vmem:[%s12 + $0xc] sm:$0xf]
    %v1629 = vld [vmem:[%s12 + $0x10] sm:$0xf]
    %v1630 = vld [vmem:[%s12 + $0x14] sm:$0xf]
    %v1631 = vld [vmem:[%s12 + $0x18] sm:$0xf]
    %v1632 = vld [vmem:[%s12 + $0x1c] sm:$0xf]
    %v1633 = vld [vmem:[%s13] sm:$0x1]
    %v1635 = vlaneseq
    %v1636 = vshrl.u32 %v1635, 7
    %v1637 = vsub.s32 0, %v1636
    %v1638 = vrot.slane %v1633, %v1637
    %v1648 = vunpack.c.l.b16 %v1625
    %v1649 = vunpack.c.l.b16 %v1626
    %v1650 = vunpack.c.l.b16 %v1627
    %v1651 = vunpack.c.l.b16 %v1628
    %v1652 = vunpack.c.l.b16 %v1629
    %v1653 = vunpack.c.l.b16 %v1630
    %v1654 = vunpack.c.l.b16 %v1631
    %v1655 = vunpack.c.l.b16 %v1632
    %v1656 = vpack.c.b16 %v1649, %v1648
    %v1657 = vpack.c.b16 %v1651, %v1650
    %v1658 = vpack.c.b16 %v1653, %v1652
    %v1659 = vpack.c.b16 %v1655, %v1654
    %vm1664 = vcmask 523264
    %v1666 = vsel %vm1664, %v1624, 0
    %1668 = vmatprep.subr.bf16.mxu0 0
    %1669 = vmatpush1.bf16.msra.mxu0 %v1656
    %1670 = vmatprep.subr.bf16.mxu0 0
    %1671 = vmatpush1.bf16.msra.mxu0 %v1657
    %1672 = vmatprep.subr.bf16.mxu0 0
    %1673 = vmatpush1.bf16.msra.mxu0 %v1658
    %1674 = vmatprep.subr.bf16.mxu0 0
    %1675 = vmatpush1.bf16.msra.mxu0 %v1659
    %1676 = vmatprep.subr.bf16.mxu0 0
    %1677 = vmatpush1.bf16.msra.mxu0 0
    %1678 = vmatprep.subr.bf16.mxu0 0
    %1679 = vmatpush1.bf16.msra.mxu0 0
    %1680 = vmatprep.subr.bf16.mxu0 0
    %1681 = vmatpush1.bf16.msra.mxu0 0
    %1682 = vmatprep.subr.bf16.mxu0 0
    %1683 = vmatpush1.bf16.msra.mxu0 0
    %1684 = vmatprep.subr.bf16.mxu0 0
    %1685 = vmatpush1.bf16.msra.mxu0 0
    %1686 = vmatprep.subr.bf16.mxu0 0
    %1687 = vmatpush1.bf16.msra.mxu0 0
    %1688 = vmatprep.subr.bf16.mxu0 0
    %1689 = vmatpush1.bf16.msra.mxu0 0
    %1690 = vmatprep.subr.bf16.mxu0 0
    %1691 = vmatpush1.bf16.msra.mxu0 0
    %1692 = vmatprep.subr.bf16.mxu0 0
    %1693 = vmatpush1.bf16.msra.mxu0 0
    %1694 = vmatprep.subr.bf16.mxu0 0
    %1695 = vmatpush1.bf16.msra.mxu0 0
    %1696 = vmatprep.subr.bf16.mxu0 0
    %1697 = vmatpush1.bf16.msra.mxu0 0
    %1698 = vmatprep.subr.bf16.mxu0 0
    %1699 = vmatpush1.bf16.msra.mxu0 0
    %1700 = vmatprep.mubr.bf16.mxu0 0
    %1701 = vmatmul.mubr.bf16.gmra.mrb[0].mxu0 %v1666
    %v1702 = vpop.f32.mrb[0].mxu0
    %v1703 = vadd.f32 %v1638, %v1702
    %v1704 = vpop.f32.mrb[0].mxu0
    %v1705 = vpop.f32.mrb[0].mxu0
    %v1706 = vadd.f32 %v1638, %v1705
    %v1707 = vpop.f32.mrb[0].mxu0
    %1708 = vdwg.mxu0
    %v1709 = vadd.f32 %v1552, %v1703
    %v1710 = vadd.f32 %v1553, %v1706
    %v1711 = vld [vmem:[%s14] sm:$0x1]
    %v1712 = vld [vmem:[%s15] sm:$0x1]
    %v1713 = vsel %vm184, %v1709, 0.0
    %v1714 = vsel %vm184, %v1710, 0.0
    %v1715 = vadd.f32 %v1713, %v1714
    %v1716 = vrot.slane %v1715, 4
    %v1717 = vadd.f32 %v1715, %v1716
    %v1718 = vrot.slane %v1717, 2
    %v1719 = vadd.f32 %v1717, %v1718
    %v1720 = vrot.slane %v1719, 1
    %v1721 = vadd.f32 %v1719, %v1720
    %v1722 = vmul.f32 %v1721, %v1518
    %v1723 = vsub.f32 %v1709, %v1722
    %v1724 = vsub.f32 %v1710, %v1722
    %v1725 = vmul.f32 %v1723, %v1723
    %v1726 = vmul.f32 %v1724, %v1724
    %v1727 = vsel %vm184, %v1725, 0.0
    %v1728 = vsel %vm184, %v1726, 0.0
    %v1729 = vadd.f32 %v1727, %v1728
    %v1730 = vrot.slane %v1729, 4
    %v1731 = vadd.f32 %v1729, %v1730
    %v1732 = vrot.slane %v1731, 2
    %v1733 = vadd.f32 %v1731, %v1732
    %v1734 = vrot.slane %v1733, 1
    %v1735 = vadd.f32 %v1733, %v1734
    %v1736 = vmul.f32 %v1735, %v1518
    %v1737 = vadd.f32 %v1736, 1e-05
    %v1738 = vrsqrt.pop %v1737
    %v1739 = vmul.f32 %v1723, %v1738
    %v1740 = vmul.f32 %v1724, %v1738
    %v1742 = vlaneseq
    %v1743 = vshrl.u32 %v1742, 7
    %v1744 = vsub.s32 0, %v1743
    %v1745 = vrot.slane %v1711, %v1744
    %v1747 = vmul.f32 %v1739, %v1745
    %v1748 = vmul.f32 %v1740, %v1745
    %v1750 = vlaneseq
    %v1751 = vshrl.u32 %v1750, 7
    %v1752 = vsub.s32 0, %v1751
    %v1753 = vrot.slane %v1712, %v1752
    %v1755 = vadd.f32 %v1747, %v1753
    %v1756 = vadd.f32 %v1748, %v1753
    %s1757 = scalar_lea.vmem %s4, 64
    %v1758 = vld [vmem:[%s1757] sm:$0xf]
    %v1759 = vld [vmem:[%s1757 + $0x4] sm:$0xf]
    %v1760 = vld [vmem:[%s1757 + $0x8] sm:$0xf]
    %v1761 = vld [vmem:[%s1757 + $0xc] sm:$0xf]
    %v1762 = vld [vmem:[%s1757 + $0x10] sm:$0xf]
    %v1763 = vld [vmem:[%s1757 + $0x14] sm:$0xf]
    %v1764 = vld [vmem:[%s1757 + $0x18] sm:$0xf]
    %v1765 = vld [vmem:[%s1757 + $0x1c] sm:$0xf]
    %v1766 = vld [vmem:[%s1757 + $0x20] sm:$0xf]
    %v1767 = vld [vmem:[%s1757 + $0x24] sm:$0xf]
    %v1768 = vld [vmem:[%s1757 + $0x28] sm:$0xf]
    %v1769 = vld [vmem:[%s1757 + $0x2c] sm:$0xf]
    %v1770 = vld [vmem:[%s1757 + $0x30] sm:$0xf]
    %v1771 = vld [vmem:[%s1757 + $0x34] sm:$0xf]
    %v1772 = vld [vmem:[%s1757 + $0x38] sm:$0xf]
    %v1773 = vld [vmem:[%s1757 + $0x3c] sm:$0xf]
    %s1774 = scalar_lea.vmem %s5, 64
    %v1775 = vld [vmem:[%s1774] sm:$0xf]
    %v1776 = vld [vmem:[%s1774 + $0x4] sm:$0xf]
    %v1777 = vld [vmem:[%s1774 + $0x8] sm:$0xf]
    %v1778 = vld [vmem:[%s1774 + $0xc] sm:$0xf]
    %v1779 = vld [vmem:[%s1774 + $0x10] sm:$0xf]
    %v1780 = vld [vmem:[%s1774 + $0x14] sm:$0xf]
    %v1781 = vld [vmem:[%s1774 + $0x18] sm:$0xf]
    %v1782 = vld [vmem:[%s1774 + $0x1c] sm:$0xf]
    %v1783 = vld [vmem:[%s1774 + $0x20] sm:$0xf]
    %v1784 = vld [vmem:[%s1774 + $0x24] sm:$0xf]
    %v1785 = vld [vmem:[%s1774 + $0x28] sm:$0xf]
    %v1786 = vld [vmem:[%s1774 + $0x2c] sm:$0xf]
    %v1787 = vld [vmem:[%s1774 + $0x30] sm:$0xf]
    %v1788 = vld [vmem:[%s1774 + $0x34] sm:$0xf]
    %v1789 = vld [vmem:[%s1774 + $0x38] sm:$0xf]
    %v1790 = vld [vmem:[%s1774 + $0x3c] sm:$0xf]
    %s1791 = scalar_lea.vmem %s6, 64
    %v1792 = vld [vmem:[%s1791] sm:$0xf]
    %v1793 = vld [vmem:[%s1791 + $0x4] sm:$0xf]
    %v1794 = vld [vmem:[%s1791 + $0x8] sm:$0xf]
    %v1795 = vld [vmem:[%s1791 + $0xc] sm:$0xf]
    %v1796 = vld [vmem:[%s1791 + $0x10] sm:$0xf]
    %v1797 = vld [vmem:[%s1791 + $0x14] sm:$0xf]
    %v1798 = vld [vmem:[%s1791 + $0x18] sm:$0xf]
    %v1799 = vld [vmem:[%s1791 + $0x1c] sm:$0xf]
    %v1800 = vld [vmem:[%s1791 + $0x20] sm:$0xf]
    %v1801 = vld [vmem:[%s1791 + $0x24] sm:$0xf]
    %v1802 = vld [vmem:[%s1791 + $0x28] sm:$0xf]
    %v1803 = vld [vmem:[%s1791 + $0x2c] sm:$0xf]
    %v1804 = vld [vmem:[%s1791 + $0x30] sm:$0xf]
    %v1805 = vld [vmem:[%s1791 + $0x34] sm:$0xf]
    %v1806 = vld [vmem:[%s1791 + $0x38] sm:$0xf]
    %v1807 = vld [vmem:[%s1791 + $0x3c] sm:$0xf]
    %s1808 = scalar_lea.vmem %s7, 16
    %v1809 = vld [vmem:[%s1808] sm:$0xf]
    %v1810 = vld [vmem:[%s1808 + $0x4] sm:$0xf]
    %v1811 = vld [vmem:[%s1808 + $0x8] sm:$0xf]
    %v1812 = vld [vmem:[%s1808 + $0xc] sm:$0xf]
    %v1813 = vpack.c.bf16 %v1756, %v1755
    %v1818 = vunpack.c.l.b16 %v1758
    %v1819 = vunpack.c.l.b16 %v1759
    %v1820 = vunpack.c.l.b16 %v1760
    %v1821 = vunpack.c.l.b16 %v1761
    %v1822 = vpack.c.b16 %v1819, %v1818
    %v1823 = vpack.c.b16 %v1821, %v1820
    %v1827 = vsel %vm184, %v1813, 0
    %1829 = vmatprep.subr.bf16.mxu0 0
    %1830 = vmatpush1.bf16.msra.mxu0 %v1822
    %1831 = vmatprep.subr.bf16.mxu0 0
    %1832 = vmatpush1.bf16.msra.mxu0 %v1823
    %1833 = vmatprep.subr.bf16.mxu0 0
    %1834 = vmatpush1.bf16.msra.mxu0 0
    %1835 = vmatprep.subr.bf16.mxu0 0
    %1836 = vmatpush1.bf16.msra.mxu0 0
    %1837 = vmatprep.subr.bf16.mxu0 0
    %1838 = vmatpush1.bf16.msra.mxu0 0
    %1839 = vmatprep.subr.bf16.mxu0 0
    %1840 = vmatpush1.bf16.msra.mxu0 0
    %1841 = vmatprep.subr.bf16.mxu0 0
    %1842 = vmatpush1.bf16.msra.mxu0 0
    %1843 = vmatprep.subr.bf16.mxu0 0
    %1844 = vmatpush1.bf16.msra.mxu0 0
    %1845 = vmatprep.subr.bf16.mxu0 0
    %1846 = vmatpush1.bf16.msra.mxu0 0
    %1847 = vmatprep.subr.bf16.mxu0 0
    %1848 = vmatpush1.bf16.msra.mxu0 0
    %1849 = vmatprep.subr.bf16.mxu0 0
    %1850 = vmatpush1.bf16.msra.mxu0 0
    %1851 = vmatprep.subr.bf16.mxu0 0
    %1852 = vmatpush1.bf16.msra.mxu0 0
    %1853 = vmatprep.subr.bf16.mxu0 0
    %1854 = vmatpush1.bf16.msra.mxu0 0
    %1855 = vmatprep.subr.bf16.mxu0 0
    %1856 = vmatpush1.bf16.msra.mxu0 0
    %1857 = vmatprep.subr.bf16.mxu0 0
    %1858 = vmatpush1.bf16.msra.mxu0 0
    %1859 = vmatprep.subr.bf16.mxu0 0
    %1860 = vmatpush1.bf16.msra.mxu0 0
    %1861 = vmatprep.mubr.bf16.mxu0 0
    %1862 = vmatmul.mubr.bf16.gmra.mrb[0].mxu0 %v1827
    %v1863 = vpop.f32.mrb[0].mxu0
    %v1864 = vadd.f32 0.0, %v1863
    %v1865 = vpop.f32.mrb[0].mxu0
    %v1866 = vpop.f32.mrb[0].mxu0
    %v1867 = vadd.f32 0.0, %v1866
    %v1868 = vpop.f32.mrb[0].mxu0
    %1869 = vdwg.mxu0
    %v1874 = vunpack.c.l.b16 %v1762
    %v1875 = vunpack.c.l.b16 %v1763
    %v1876 = vunpack.c.l.b16 %v1764
    %v1877 = vunpack.c.l.b16 %v1765
    %v1878 = vpack.c.b16 %v1875, %v1874
    %v1879 = vpack.c.b16 %v1877, %v1876
    %1882 = vmatprep.subr.bf16.mxu0 0
    %1883 = vmatpush1.bf16.msra.mxu0 %v1878
    %1884 = vmatprep.subr.bf16.mxu0 0
    %1885 = vmatpush1.bf16.msra.mxu0 %v1879
    %1886 = vmatprep.subr.bf16.mxu0 0
    %1887 = vmatpush1.bf16.msra.mxu0 0
    %1888 = vmatprep.subr.bf16.mxu0 0
    %1889 = vmatpush1.bf16.msra.mxu0 0
    %1890 = vmatprep.subr.bf16.mxu0 0
    %1891 = vmatpush1.bf16.msra.mxu0 0
    %1892 = vmatprep.subr.bf16.mxu0 0
    %1893 = vmatpush1.bf16.msra.mxu0 0
    %1894 = vmatprep.subr.bf16.mxu0 0
    %1895 = vmatpush1.bf16.msra.mxu0 0
    %1896 = vmatprep.subr.bf16.mxu0 0
    %1897 = vmatpush1.bf16.msra.mxu0 0
    %1898 = vmatprep.subr.bf16.mxu0 0
    %1899 = vmatpush1.bf16.msra.mxu0 0
    %1900 = vmatprep.subr.bf16.mxu0 0
    %1901 = vmatpush1.bf16.msra.mxu0 0
    %1902 = vmatprep.subr.bf16.mxu0 0
    %1903 = vmatpush1.bf16.msra.mxu0 0
    %1904 = vmatprep.subr.bf16.mxu0 0
    %1905 = vmatpush1.bf16.msra.mxu0 0
    %1906 = vmatprep.subr.bf16.mxu0 0
    %1907 = vmatpush1.bf16.msra.mxu0 0
    %1908 = vmatprep.subr.bf16.mxu0 0
    %1909 = vmatpush1.bf16.msra.mxu0 0
    %1910 = vmatprep.subr.bf16.mxu0 0
    %1911 = vmatpush1.bf16.msra.mxu0 0
    %1912 = vmatprep.subr.bf16.mxu0 0
    %1913 = vmatpush1.bf16.msra.mxu0 0
    %1914 = vmatprep.mubr.bf16.mxu0 0
    %1915 = vmatmul.mubr.bf16.gmra.mrb[0].mxu0 %v1827
    %v1916 = vpop.f32.mrb[0].mxu0
    %v1917 = vadd.f32 0.0, %v1916
    %v1918 = vpop.f32.mrb[0].mxu0
    %v1919 = vpop.f32.mrb[0].mxu0
    %v1920 = vadd.f32 0.0, %v1919
    %v1921 = vpop.f32.mrb[0].mxu0
    %1922 = vdwg.mxu0
    %v1927 = vunpack.c.l.b16 %v1766
    %v1928 = vunpack.c.l.b16 %v1767
    %v1929 = vunpack.c.l.b16 %v1768
    %v1930 = vunpack.c.l.b16 %v1769
    %v1931 = vpack.c.b16 %v1928, %v1927
    %v1932 = vpack.c.b16 %v1930, %v1929
    %1935 = vmatprep.subr.bf16.mxu0 0
    %1936 = vmatpush1.bf16.msra.mxu0 %v1931
    %1937 = vmatprep.subr.bf16.mxu0 0
    %1938 = vmatpush1.bf16.msra.mxu0 %v1932
    %1939 = vmatprep.subr.bf16.mxu0 0
    %1940 = vmatpush1.bf16.msra.mxu0 0
    %1941 = vmatprep.subr.bf16.mxu0 0
    %1942 = vmatpush1.bf16.msra.mxu0 0
    %1943 = vmatprep.subr.bf16.mxu0 0
    %1944 = vmatpush1.bf16.msra.mxu0 0
    %1945 = vmatprep.subr.bf16.mxu0 0
    %1946 = vmatpush1.bf16.msra.mxu0 0
    %1947 = vmatprep.subr.bf16.mxu0 0
    %1948 = vmatpush1.bf16.msra.mxu0 0
    %1949 = vmatprep.subr.bf16.mxu0 0
    %1950 = vmatpush1.bf16.msra.mxu0 0
    %1951 = vmatprep.subr.bf16.mxu0 0
    %1952 = vmatpush1.bf16.msra.mxu0 0
    %1953 = vmatprep.subr.bf16.mxu0 0
    %1954 = vmatpush1.bf16.msra.mxu0 0
    %1955 = vmatprep.subr.bf16.mxu0 0
    %1956 = vmatpush1.bf16.msra.mxu0 0
    %1957 = vmatprep.subr.bf16.mxu0 0
    %1958 = vmatpush1.bf16.msra.mxu0 0
    %1959 = vmatprep.subr.bf16.mxu0 0
    %1960 = vmatpush1.bf16.msra.mxu0 0
    %1961 = vmatprep.subr.bf16.mxu0 0
    %1962 = vmatpush1.bf16.msra.mxu0 0
    %1963 = vmatprep.subr.bf16.mxu0 0
    %1964 = vmatpush1.bf16.msra.mxu0 0
    %1965 = vmatprep.subr.bf16.mxu0 0
    %1966 = vmatpush1.bf16.msra.mxu0 0
    %1967 = vmatprep.mubr.bf16.mxu0 0
    %1968 = vmatmul.mubr.bf16.gmra.mrb[0].mxu0 %v1827
    %v1969 = vpop.f32.mrb[0].mxu0
    %v1970 = vadd.f32 0.0, %v1969
    %v1971 = vpop.f32.mrb[0].mxu0
    %v1972 = vpop.f32.mrb[0].mxu0
    %v1973 = vadd.f32 0.0, %v1972
    %v1974 = vpop.f32.mrb[0].mxu0
    %1975 = vdwg.mxu0
    %v1980 = vunpack.c.l.b16 %v1770
    %v1981 = vunpack.c.l.b16 %v1771
    %v1982 = vunpack.c.l.b16 %v1772
    %v1983 = vunpack.c.l.b16 %v1773
    %v1984 = vpack.c.b16 %v1981, %v1980
    %v1985 = vpack.c.b16 %v1983, %v1982
    %1988 = vmatprep.subr.bf16.mxu0 0
    %1989 = vmatpush1.bf16.msra.mxu0 %v1984
    %1990 = vmatprep.subr.bf16.mxu0 0
    %1991 = vmatpush1.bf16.msra.mxu0 %v1985
    %1992 = vmatprep.subr.bf16.mxu0 0
    %1993 = vmatpush1.bf16.msra.mxu0 0
    %1994 = vmatprep.subr.bf16.mxu0 0
    %1995 = vmatpush1.bf16.msra.mxu0 0
    %1996 = vmatprep.subr.bf16.mxu0 0
    %1997 = vmatpush1.bf16.msra.mxu0 0
    %1998 = vmatprep.subr.bf16.mxu0 0
    %1999 = vmatpush1.bf16.msra.mxu0 0
    %2000 = vmatprep.subr.bf16.mxu0 0
    %2001 = vmatpush1.bf16.msra.mxu0 0
    %2002 = vmatprep.subr.bf16.mxu0 0
    %2003 = vmatpush1.bf16.msra.mxu0 0
    %2004 = vmatprep.subr.bf16.mxu0 0
    %2005 = vmatpush1.bf16.msra.mxu0 0
    %2006 = vmatprep.subr.bf16.mxu0 0
    %2007 = vmatpush1.bf16.msra.mxu0 0
    %2008 = vmatprep.subr.bf16.mxu0 0
    %2009 = vmatpush1.bf16.msra.mxu0 0
    %2010 = vmatprep.subr.bf16.mxu0 0
    %2011 = vmatpush1.bf16.msra.mxu0 0
    %2012 = vmatprep.subr.bf16.mxu0 0
    %2013 = vmatpush1.bf16.msra.mxu0 0
    %2014 = vmatprep.subr.bf16.mxu0 0
    %2015 = vmatpush1.bf16.msra.mxu0 0
    %2016 = vmatprep.subr.bf16.mxu0 0
    %2017 = vmatpush1.bf16.msra.mxu0 0
    %2018 = vmatprep.subr.bf16.mxu0 0
    %2019 = vmatpush1.bf16.msra.mxu0 0
    %2020 = vmatprep.mubr.bf16.mxu0 0
    %2021 = vmatmul.mubr.bf16.gmra.mrb[0].mxu0 %v1827
    %v2022 = vpop.f32.mrb[0].mxu0
    %v2023 = vadd.f32 0.0, %v2022
    %v2024 = vpop.f32.mrb[0].mxu0
    %v2025 = vpop.f32.mrb[0].mxu0
    %v2026 = vadd.f32 0.0, %v2025
    %v2027 = vpop.f32.mrb[0].mxu0
    %2028 = vdwg.mxu0
    %v2033 = vunpack.c.l.b16 %v1775
    %v2034 = vunpack.c.l.b16 %v1776
    %v2035 = vunpack.c.l.b16 %v1777
    %v2036 = vunpack.c.l.b16 %v1778
    %v2037 = vpack.c.b16 %v2034, %v2033
    %v2038 = vpack.c.b16 %v2036, %v2035
    %2041 = vmatprep.subr.bf16.mxu0 0
    %2042 = vmatpush1.bf16.msra.mxu0 %v2037
    %2043 = vmatprep.subr.bf16.mxu0 0
    %2044 = vmatpush1.bf16.msra.mxu0 %v2038
    %2045 = vmatprep.subr.bf16.mxu0 0
    %2046 = vmatpush1.bf16.msra.mxu0 0
    %2047 = vmatprep.subr.bf16.mxu0 0
    %2048 = vmatpush1.bf16.msra.mxu0 0
    %2049 = vmatprep.subr.bf16.mxu0 0
    %2050 = vmatpush1.bf16.msra.mxu0 0
    %2051 = vmatprep.subr.bf16.mxu0 0
    %2052 = vmatpush1.bf16.msra.mxu0 0
    %2053 = vmatprep.subr.bf16.mxu0 0
    %2054 = vmatpush1.bf16.msra.mxu0 0
    %2055 = vmatprep.subr.bf16.mxu0 0
    %2056 = vmatpush1.bf16.msra.mxu0 0
    %2057 = vmatprep.subr.bf16.mxu0 0
    %2058 = vmatpush1.bf16.msra.mxu0 0
    %2059 = vmatprep.subr.bf16.mxu0 0
    %2060 = vmatpush1.bf16.msra.mxu0 0
    %2061 = vmatprep.subr.bf16.mxu0 0
    %2062 = vmatpush1.bf16.msra.mxu0 0
    %2063 = vmatprep.subr.bf16.mxu0 0
    %2064 = vmatpush1.bf16.msra.mxu0 0
    %2065 = vmatprep.subr.bf16.mxu0 0
    %2066 = vmatpush1.bf16.msra.mxu0 0
    %2067 = vmatprep.subr.bf16.mxu0 0
    %2068 = vmatpush1.bf16.msra.mxu0 0
    %2069 = vmatprep.subr.bf16.mxu0 0
    %2070 = vmatpush1.bf16.msra.mxu0 0
    %2071 = vmatprep.subr.bf16.mxu0 0
    %2072 = vmatpush1.bf16.msra.mxu0 0
    %2073 = vmatprep.mubr.bf16.mxu0 0
    %2074 = vmatmul.mubr.bf16.gmra.mrb[0].mxu0 %v1827
    %v2075 = vpop.f32.mrb[0].mxu0
    %v2076 = vadd.f32 0.0, %v2075
    %v2077 = vpop.f32.mrb[0].mxu0
    %v2078 = vpop.f32.mrb[0].mxu0
    %v2079 = vadd.f32 0.0, %v2078
    %v2080 = vpop.f32.mrb[0].mxu0
    %2081 = vdwg.mxu0
    %v2086 = vunpack.c.l.b16 %v1779
    %v2087 = vunpack.c.l.b16 %v1780
    %v2088 = vunpack.c.l.b16 %v1781
    %v2089 = vunpack.c.l.b16 %v1782
    %v2090 = vpack.c.b16 %v2087, %v2086
    %v2091 = vpack.c.b16 %v2089, %v2088
    %2094 = vmatprep.subr.bf16.mxu0 0
    %2095 = vmatpush1.bf16.msra.mxu0 %v2090
    %2096 = vmatprep.subr.bf16.mxu0 0
    %2097 = vmatpush1.bf16.msra.mxu0 %v2091
    %2098 = vmatprep.subr.bf16.mxu0 0
    %2099 = vmatpush1.bf16.msra.mxu0 0
    %2100 = vmatprep.subr.bf16.mxu0 0
    %2101 = vmatpush1.bf16.msra.mxu0 0
    %2102 = vmatprep.subr.bf16.mxu0 0
    %2103 = vmatpush1.bf16.msra.mxu0 0
    %2104 = vmatprep.subr.bf16.mxu0 0
    %2105 = vmatpush1.bf16.msra.mxu0 0
    %2106 = vmatprep.subr.bf16.mxu0 0
    %2107 = vmatpush1.bf16.msra.mxu0 0
    %2108 = vmatprep.subr.bf16.mxu0 0
    %2109 = vmatpush1.bf16.msra.mxu0 0
    %2110 = vmatprep.subr.bf16.mxu0 0
    %2111 = vmatpush1.bf16.msra.mxu0 0
    %2112 = vmatprep.subr.bf16.mxu0 0
    %2113 = vmatpush1.bf16.msra.mxu0 0
    %2114 = vmatprep.subr.bf16.mxu0 0
    %2115 = vmatpush1.bf16.msra.mxu0 0
    %2116 = vmatprep.subr.bf16.mxu0 0
    %2117 = vmatpush1.bf16.msra.mxu0 0
    %2118 = vmatprep.subr.bf16.mxu0 0
    %2119 = vmatpush1.bf16.msra.mxu0 0
    %2120 = vmatprep.subr.bf16.mxu0 0
    %2121 = vmatpush1.bf16.msra.mxu0 0
    %2122 = vmatprep.subr.bf16.mxu0 0
    %2123 = vmatpush1.bf16.msra.mxu0 0
    %2124 = vmatprep.subr.bf16.mxu0 0
    %2125 = vmatpush1.bf16.msra.mxu0 0
    %2126 = vmatprep.mubr.bf16.mxu0 0
    %2127 = vmatmul.mubr.bf16.gmra.mrb[0].mxu0 %v1827
    %v2128 = vpop.f32.mrb[0].mxu0
    %v2129 = vadd.f32 0.0, %v2128
    %v2130 = vpop.f32.mrb[0].mxu0
    %v2131 = vpop.f32.mrb[0].mxu0
    %v2132 = vadd.f32 0.0, %v2131
    %v2133 = vpop.f32.mrb[0].mxu0
    %2134 = vdwg.mxu0
    %v2139 = vunpack.c.l.b16 %v1783
    %v2140 = vunpack.c.l.b16 %v1784
    %v2141 = vunpack.c.l.b16 %v1785
    %v2142 = vunpack.c.l.b16 %v1786
    %v2143 = vpack.c.b16 %v2140, %v2139
    %v2144 = vpack.c.b16 %v2142, %v2141
    %2147 = vmatprep.subr.bf16.mxu0 0
    %2148 = vmatpush1.bf16.msra.mxu0 %v2143
    %2149 = vmatprep.subr.bf16.mxu0 0
    %2150 = vmatpush1.bf16.msra.mxu0 %v2144
    %2151 = vmatprep.subr.bf16.mxu0 0
    %2152 = vmatpush1.bf16.msra.mxu0 0
    %2153 = vmatprep.subr.bf16.mxu0 0
    %2154 = vmatpush1.bf16.msra.mxu0 0
    %2155 = vmatprep.subr.bf16.mxu0 0
    %2156 = vmatpush1.bf16.msra.mxu0 0
    %2157 = vmatprep.subr.bf16.mxu0 0
    %2158 = vmatpush1.bf16.msra.mxu0 0
    %2159 = vmatprep.subr.bf16.mxu0 0
    %2160 = vmatpush1.bf16.msra.mxu0 0
    %2161 = vmatprep.subr.bf16.mxu0 0
    %2162 = vmatpush1.bf16.msra.mxu0 0
    %2163 = vmatprep.subr.bf16.mxu0 0
    %2164 = vmatpush1.bf16.msra.mxu0 0
    %2165 = vmatprep.subr.bf16.mxu0 0
    %2166 = vmatpush1.bf16.msra.mxu0 0
    %2167 = vmatprep.subr.bf16.mxu0 0
    %2168 = vmatpush1.bf16.msra.mxu0 0
    %2169 = vmatprep.subr.bf16.mxu0 0
    %2170 = vmatpush1.bf16.msra.mxu0 0
    %2171 = vmatprep.subr.bf16.mxu0 0
    %2172 = vmatpush1.bf16.msra.mxu0 0
    %2173 = vmatprep.subr.bf16.mxu0 0
    %2174 = vmatpush1.bf16.msra.mxu0 0
    %2175 = vmatprep.subr.bf16.mxu0 0
    %2176 = vmatpush1.bf16.msra.mxu0 0
    %2177 = vmatprep.subr.bf16.mxu0 0
    %2178 = vmatpush1.bf16.msra.mxu0 0
    %2179 = vmatprep.mubr.bf16.mxu0 0
    %2180 = vmatmul.mubr.bf16.gmra.mrb[0].mxu0 %v1827
    %v2181 = vpop.f32.mrb[0].mxu0
    %v2182 = vadd.f32 0.0, %v2181
    %v2183 = vpop.f32.mrb[0].mxu0
    %v2184 = vpop.f32.mrb[0].mxu0
    %v2185 = vadd.f32 0.0, %v2184
    %v2186 = vpop.f32.mrb[0].mxu0
    %2187 = vdwg.mxu0
    %v2192 = vunpack.c.l.b16 %v1787
    %v2193 = vunpack.c.l.b16 %v1788
    %v2194 = vunpack.c.l.b16 %v1789
    %v2195 = vunpack.c.l.b16 %v1790
    %v2196 = vpack.c.b16 %v2193, %v2192
    %v2197 = vpack.c.b16 %v2195, %v2194
    %2200 = vmatprep.subr.bf16.mxu0 0
    %2201 = vmatpush1.bf16.msra.mxu0 %v2196
    %2202 = vmatprep.subr.bf16.mxu0 0
    %2203 = vmatpush1.bf16.msra.mxu0 %v2197
    %2204 = vmatprep.subr.bf16.mxu0 0
    %2205 = vmatpush1.bf16.msra.mxu0 0
    %2206 = vmatprep.subr.bf16.mxu0 0
    %2207 = vmatpush1.bf16.msra.mxu0 0
    %2208 = vmatprep.subr.bf16.mxu0 0
    %2209 = vmatpush1.bf16.msra.mxu0 0
    %2210 = vmatprep.subr.bf16.mxu0 0
    %2211 = vmatpush1.bf16.msra.mxu0 0
    %2212 = vmatprep.subr.bf16.mxu0 0
    %2213 = vmatpush1.bf16.msra.mxu0 0
    %2214 = vmatprep.subr.bf16.mxu0 0
    %2215 = vmatpush1.bf16.msra.mxu0 0
    %2216 = vmatprep.subr.bf16.mxu0 0
    %2217 = vmatpush1.bf16.msra.mxu0 0
    %2218 = vmatprep.subr.bf16.mxu0 0
    %2219 = vmatpush1.bf16.msra.mxu0 0
    %2220 = vmatprep.subr.bf16.mxu0 0
    %2221 = vmatpush1.bf16.msra.mxu0 0
    %2222 = vmatprep.subr.bf16.mxu0 0
    %2223 = vmatpush1.bf16.msra.mxu0 0
    %2224 = vmatprep.subr.bf16.mxu0 0
    %2225 = vmatpush1.bf16.msra.mxu0 0
    %2226 = vmatprep.subr.bf16.mxu0 0
    %2227 = vmatpush1.bf16.msra.mxu0 0
    %2228 = vmatprep.subr.bf16.mxu0 0
    %2229 = vmatpush1.bf16.msra.mxu0 0
    %2230 = vmatprep.subr.bf16.mxu0 0
    %2231 = vmatpush1.bf16.msra.mxu0 0
    %2232 = vmatprep.mubr.bf16.mxu0 0
    %2233 = vmatmul.mubr.bf16.gmra.mrb[0].mxu0 %v1827
    %v2234 = vpop.f32.mrb[0].mxu0
    %v2235 = vadd.f32 0.0, %v2234
    %v2236 = vpop.f32.mrb[0].mxu0
    %v2237 = vpop.f32.mrb[0].mxu0
    %v2238 = vadd.f32 0.0, %v2237
    %v2239 = vpop.f32.mrb[0].mxu0
    %2240 = vdwg.mxu0
    %v2245 = vunpack.c.l.b16 %v1792
    %v2246 = vunpack.c.l.b16 %v1793
    %v2247 = vunpack.c.l.b16 %v1794
    %v2248 = vunpack.c.l.b16 %v1795
    %v2249 = vpack.c.b16 %v2246, %v2245
    %v2250 = vpack.c.b16 %v2248, %v2247
    %2253 = vmatprep.subr.bf16.mxu0 0
    %2254 = vmatpush1.bf16.msra.mxu0 %v2249
    %2255 = vmatprep.subr.bf16.mxu0 0
    %2256 = vmatpush1.bf16.msra.mxu0 %v2250
    %2257 = vmatprep.subr.bf16.mxu0 0
    %2258 = vmatpush1.bf16.msra.mxu0 0
    %2259 = vmatprep.subr.bf16.mxu0 0
    %2260 = vmatpush1.bf16.msra.mxu0 0
    %2261 = vmatprep.subr.bf16.mxu0 0
    %2262 = vmatpush1.bf16.msra.mxu0 0
    %2263 = vmatprep.subr.bf16.mxu0 0
    %2264 = vmatpush1.bf16.msra.mxu0 0
    %2265 = vmatprep.subr.bf16.mxu0 0
    %2266 = vmatpush1.bf16.msra.mxu0 0
    %2267 = vmatprep.subr.bf16.mxu0 0
    %2268 = vmatpush1.bf16.msra.mxu0 0
    %2269 = vmatprep.subr.bf16.mxu0 0
    %2270 = vmatpush1.bf16.msra.mxu0 0
    %2271 = vmatprep.subr.bf16.mxu0 0
    %2272 = vmatpush1.bf16.msra.mxu0 0
    %2273 = vmatprep.subr.bf16.mxu0 0
    %2274 = vmatpush1.bf16.msra.mxu0 0
    %2275 = vmatprep.subr.bf16.mxu0 0
    %2276 = vmatpush1.bf16.msra.mxu0 0
    %2277 = vmatprep.subr.bf16.mxu0 0
    %2278 = vmatpush1.bf16.msra.mxu0 0
    %2279 = vmatprep.subr.bf16.mxu0 0
    %2280 = vmatpush1.bf16.msra.mxu0 0
    %2281 = vmatprep.subr.bf16.mxu0 0
    %2282 = vmatpush1.bf16.msra.mxu0 0
    %2283 = vmatprep.subr.bf16.mxu0 0
    %2284 = vmatpush1.bf16.msra.mxu0 0
    %2285 = vmatprep.mubr.bf16.mxu0 0
    %2286 = vmatmul.mubr.bf16.gmra.mrb[0].mxu0 %v1827
    %v2287 = vpop.f32.mrb[0].mxu0
    %v2288 = vadd.f32 0.0, %v2287
    %v2289 = vpop.f32.mrb[0].mxu0
    %v2290 = vpop.f32.mrb[0].mxu0
    %v2291 = vadd.f32 0.0, %v2290
    %v2292 = vpop.f32.mrb[0].mxu0
    %2293 = vdwg.mxu0
    %v2298 = vunpack.c.l.b16 %v1796
    %v2299 = vunpack.c.l.b16 %v1797
    %v2300 = vunpack.c.l.b16 %v1798
    %v2301 = vunpack.c.l.b16 %v1799
    %v2302 = vpack.c.b16 %v2299, %v2298
    %v2303 = vpack.c.b16 %v2301, %v2300
    %2306 = vmatprep.subr.bf16.mxu0 0
    %2307 = vmatpush1.bf16.msra.mxu0 %v2302
    %2308 = vmatprep.subr.bf16.mxu0 0
    %2309 = vmatpush1.bf16.msra.mxu0 %v2303
    %2310 = vmatprep.subr.bf16.mxu0 0
    %2311 = vmatpush1.bf16.msra.mxu0 0
    %2312 = vmatprep.subr.bf16.mxu0 0
    %2313 = vmatpush1.bf16.msra.mxu0 0
    %2314 = vmatprep.subr.bf16.mxu0 0
    %2315 = vmatpush1.bf16.msra.mxu0 0
    %2316 = vmatprep.subr.bf16.mxu0 0
    %2317 = vmatpush1.bf16.msra.mxu0 0
    %2318 = vmatprep.subr.bf16.mxu0 0
    %2319 = vmatpush1.bf16.msra.mxu0 0
    %2320 = vmatprep.subr.bf16.mxu0 0
    %2321 = vmatpush1.bf16.msra.mxu0 0
    %2322 = vmatprep.subr.bf16.mxu0 0
    %2323 = vmatpush1.bf16.msra.mxu0 0
    %2324 = vmatprep.subr.bf16.mxu0 0
    %2325 = vmatpush1.bf16.msra.mxu0 0
    %2326 = vmatprep.subr.bf16.mxu0 0
    %2327 = vmatpush1.bf16.msra.mxu0 0
    %2328 = vmatprep.subr.bf16.mxu0 0
    %2329 = vmatpush1.bf16.msra.mxu0 0
    %2330 = vmatprep.subr.bf16.mxu0 0
    %2331 = vmatpush1.bf16.msra.mxu0 0
    %2332 = vmatprep.subr.bf16.mxu0 0
    %2333 = vmatpush1.bf16.msra.mxu0 0
    %2334 = vmatprep.subr.bf16.mxu0 0
    %2335 = vmatpush1.bf16.msra.mxu0 0
    %2336 = vmatprep.subr.bf16.mxu0 0
    %2337 = vmatpush1.bf16.msra.mxu0 0
    %2338 = vmatprep.mubr.bf16.mxu0 0
    %2339 = vmatmul.mubr.bf16.gmra.mrb[0].mxu0 %v1827
    %v2340 = vpop.f32.mrb[0].mxu0
    %v2341 = vadd.f32 0.0, %v2340
    %v2342 = vpop.f32.mrb[0].mxu0
    %v2343 = vpop.f32.mrb[0].mxu0
    %v2344 = vadd.f32 0.0, %v2343
    %v2345 = vpop.f32.mrb[0].mxu0
    %2346 = vdwg.mxu0
    %v2351 = vunpack.c.l.b16 %v1800
    %v2352 = vunpack.c.l.b16 %v1801
    %v2353 = vunpack.c.l.b16 %v1802
    %v2354 = vunpack.c.l.b16 %v1803
    %v2355 = vpack.c.b16 %v2352, %v2351
    %v2356 = vpack.c.b16 %v2354, %v2353
    %2359 = vmatprep.subr.bf16.mxu0 0
    %2360 = vmatpush1.bf16.msra.mxu0 %v2355
    %2361 = vmatprep.subr.bf16.mxu0 0
    %2362 = vmatpush1.bf16.msra.mxu0 %v2356
    %2363 = vmatprep.subr.bf16.mxu0 0
    %2364 = vmatpush1.bf16.msra.mxu0 0
    %2365 = vmatprep.subr.bf16.mxu0 0
    %2366 = vmatpush1.bf16.msra.mxu0 0
    %2367 = vmatprep.subr.bf16.mxu0 0
    %2368 = vmatpush1.bf16.msra.mxu0 0
    %2369 = vmatprep.subr.bf16.mxu0 0
    %2370 = vmatpush1.bf16.msra.mxu0 0
    %2371 = vmatprep.subr.bf16.mxu0 0
    %2372 = vmatpush1.bf16.msra.mxu0 0
    %2373 = vmatprep.subr.bf16.mxu0 0
    %2374 = vmatpush1.bf16.msra.mxu0 0
    %2375 = vmatprep.subr.bf16.mxu0 0
    %2376 = vmatpush1.bf16.msra.mxu0 0
    %2377 = vmatprep.subr.bf16.mxu0 0
    %2378 = vmatpush1.bf16.msra.mxu0 0
    %2379 = vmatprep.subr.bf16.mxu0 0
    %2380 = vmatpush1.bf16.msra.mxu0 0
    %2381 = vmatprep.subr.bf16.mxu0 0
    %2382 = vmatpush1.bf16.msra.mxu0 0
    %2383 = vmatprep.subr.bf16.mxu0 0
    %2384 = vmatpush1.bf16.msra.mxu0 0
    %2385 = vmatprep.subr.bf16.mxu0 0
    %2386 = vmatpush1.bf16.msra.mxu0 0
    %2387 = vmatprep.subr.bf16.mxu0 0
    %2388 = vmatpush1.bf16.msra.mxu0 0
    %2389 = vmatprep.subr.bf16.mxu0 0
    %2390 = vmatpush1.bf16.msra.mxu0 0
    %2391 = vmatprep.mubr.bf16.mxu0 0
    %2392 = vmatmul.mubr.bf16.gmra.mrb[0].mxu0 %v1827
    %v2393 = vpop.f32.mrb[0].mxu0
    %v2394 = vadd.f32 0.0, %v2393
    %v2395 = vpop.f32.mrb[0].mxu0
    %v2396 = vpop.f32.mrb[0].mxu0
    %v2397 = vadd.f32 0.0, %v2396
    %v2398 = vpop.f32.mrb[0].mxu0
    %2399 = vdwg.mxu0
    %v2404 = vunpack.c.l.b16 %v1804
    %v2405 = vunpack.c.l.b16 %v1805
    %v2406 = vunpack.c.l.b16 %v1806
    %v2407 = vunpack.c.l.b16 %v1807
    %v2408 = vpack.c.b16 %v2405, %v2404
    %v2409 = vpack.c.b16 %v2407, %v2406
    %2412 = vmatprep.subr.bf16.mxu0 0
    %2413 = vmatpush1.bf16.msra.mxu0 %v2408
    %2414 = vmatprep.subr.bf16.mxu0 0
    %2415 = vmatpush1.bf16.msra.mxu0 %v2409
    %2416 = vmatprep.subr.bf16.mxu0 0
    %2417 = vmatpush1.bf16.msra.mxu0 0
    %2418 = vmatprep.subr.bf16.mxu0 0
    %2419 = vmatpush1.bf16.msra.mxu0 0
    %2420 = vmatprep.subr.bf16.mxu0 0
    %2421 = vmatpush1.bf16.msra.mxu0 0
    %2422 = vmatprep.subr.bf16.mxu0 0
    %2423 = vmatpush1.bf16.msra.mxu0 0
    %2424 = vmatprep.subr.bf16.mxu0 0
    %2425 = vmatpush1.bf16.msra.mxu0 0
    %2426 = vmatprep.subr.bf16.mxu0 0
    %2427 = vmatpush1.bf16.msra.mxu0 0
    %2428 = vmatprep.subr.bf16.mxu0 0
    %2429 = vmatpush1.bf16.msra.mxu0 0
    %2430 = vmatprep.subr.bf16.mxu0 0
    %2431 = vmatpush1.bf16.msra.mxu0 0
    %2432 = vmatprep.subr.bf16.mxu0 0
    %2433 = vmatpush1.bf16.msra.mxu0 0
    %2434 = vmatprep.subr.bf16.mxu0 0
    %2435 = vmatpush1.bf16.msra.mxu0 0
    %2436 = vmatprep.subr.bf16.mxu0 0
    %2437 = vmatpush1.bf16.msra.mxu0 0
    %2438 = vmatprep.subr.bf16.mxu0 0
    %2439 = vmatpush1.bf16.msra.mxu0 0
    %2440 = vmatprep.subr.bf16.mxu0 0
    %2441 = vmatpush1.bf16.msra.mxu0 0
    %2442 = vmatprep.subr.bf16.mxu0 0
    %2443 = vmatpush1.bf16.msra.mxu0 0
    %2444 = vmatprep.mubr.bf16.mxu0 0
    %2445 = vmatmul.mubr.bf16.gmra.mrb[0].mxu0 %v1827
    %v2446 = vpop.f32.mrb[0].mxu0
    %v2447 = vadd.f32 0.0, %v2446
    %v2448 = vpop.f32.mrb[0].mxu0
    %v2449 = vpop.f32.mrb[0].mxu0
    %v2450 = vadd.f32 0.0, %v2449
    %v2451 = vpop.f32.mrb[0].mxu0
    %2452 = vdwg.mxu0
    %v2453 = vpack.c.bf16 %v1867, %v1864
    %v2454 = vpack.c.bf16 %v1920, %v1917
    %v2455 = vpack.c.bf16 %v1973, %v1970
    %v2456 = vpack.c.bf16 %v2026, %v2023
    %v2457 = vpack.c.bf16 %v2079, %v2076
    %v2458 = vpack.c.bf16 %v2132, %v2129
    %v2459 = vpack.c.bf16 %v2185, %v2182
    %v2460 = vpack.c.bf16 %v2238, %v2235
    %v2462 = vsel %vm820, %v2453, 0
    %v2465 = vsel %vm820, %v2457, 0
    %2467 = vmatprep.subr.bf16.mxu0 0
    %2468 = vmatpush1.bf16.xpose.msra.mxu0 %v2465
    %2469 = vmatprep.subr.bf16.mxu0 0
    %2470 = vmatpush1.bf16.xpose.msra.mxu0 0
    %2471 = vmatprep.subr.bf16.mxu0 0
    %2472 = vmatpush1.bf16.xpose.msra.mxu0 0
    %2473 = vmatprep.subr.bf16.mxu0 0
    %2474 = vmatpush1.bf16.xpose.msra.mxu0 0
    %2475 = vmatprep.subr.bf16.mxu0 0
    %2476 = vmatpush1.bf16.xpose.msra.mxu0 0
    %2477 = vmatprep.subr.bf16.mxu0 0
    %2478 = vmatpush1.bf16.xpose.msra.mxu0 0
    %2479 = vmatprep.subr.bf16.mxu0 0
    %2480 = vmatpush1.bf16.xpose.msra.mxu0 0
    %2481 = vmatprep.subr.bf16.mxu0 0
    %2482 = vmatpush1.bf16.xpose.msra.mxu0 0
    %2483 = vmatprep.subr.bf16.mxu0 0
    %2484 = vmatpush1.bf16.xpose.msra.mxu0 0
    %2485 = vmatprep.subr.bf16.mxu0 0
    %2486 = vmatpush1.bf16.xpose.msra.mxu0 0
    %2487 = vmatprep.subr.bf16.mxu0 0
    %2488 = vmatpush1.bf16.xpose.msra.mxu0 0
    %2489 = vmatprep.subr.bf16.mxu0 0
    %2490 = vmatpush1.bf16.xpose.msra.mxu0 0
    %2491 = vmatprep.subr.bf16.mxu0 0
    %2492 = vmatpush1.bf16.xpose.msra.mxu0 0
    %2493 = vmatprep.subr.bf16.mxu0 0
    %2494 = vmatpush1.bf16.xpose.msra.mxu0 0
    %2495 = vmatprep.subr.bf16.mxu0 0
    %2496 = vmatpush1.bf16.xpose.msra.mxu0 0
    %2497 = vmatprep.subr.bf16.mxu0 0
    %2498 = vmatpush1.bf16.xpose.msra.mxu0 0
    %2499 = vmatprep.mubr.bf16.mxu0 0
    %2500 = vmatmul.mubr.bf16.gmra.mrb[0].mxu0 %v2462
    %v2501 = vpop.f32.mrb[0].mxu0
    %v2502 = vadd.f32 0.0, %v2501
    %v2503 = vpop.f32.mrb[0].mxu0
    %v2504 = vpop.f32.mrb[0].mxu0
    %v2505 = vadd.f32 0.0, %v2504
    %v2506 = vpop.f32.mrb[0].mxu0
    %2507 = vdwg.mxu0
    %v2509 = vsel %vm820, %v2454, 0
    %v2512 = vsel %vm820, %v2458, 0
    %2514 = vmatprep.subr.bf16.mxu0 0
    %2515 = vmatpush1.bf16.xpose.msra.mxu0 %v2512
    %2516 = vmatprep.subr.bf16.mxu0 0
    %2517 = vmatpush1.bf16.xpose.msra.mxu0 0
    %2518 = vmatprep.subr.bf16.mxu0 0
    %2519 = vmatpush1.bf16.xpose.msra.mxu0 0
    %2520 = vmatprep.subr.bf16.mxu0 0
    %2521 = vmatpush1.bf16.xpose.msra.mxu0 0
    %2522 = vmatprep.subr.bf16.mxu0 0
    %2523 = vmatpush1.bf16.xpose.msra.mxu0 0
    %2524 = vmatprep.subr.bf16.mxu0 0
    %2525 = vmatpush1.bf16.xpose.msra.mxu0 0
    %2526 = vmatprep.subr.bf16.mxu0 0
    %2527 = vmatpush1.bf16.xpose.msra.mxu0 0
    %2528 = vmatprep.subr.bf16.mxu0 0
    %2529 = vmatpush1.bf16.xpose.msra.mxu0 0
    %2530 = vmatprep.subr.bf16.mxu0 0
    %2531 = vmatpush1.bf16.xpose.msra.mxu0 0
    %2532 = vmatprep.subr.bf16.mxu0 0
    %2533 = vmatpush1.bf16.xpose.msra.mxu0 0
    %2534 = vmatprep.subr.bf16.mxu0 0
    %2535 = vmatpush1.bf16.xpose.msra.mxu0 0
    %2536 = vmatprep.subr.bf16.mxu0 0
    %2537 = vmatpush1.bf16.xpose.msra.mxu0 0
    %2538 = vmatprep.subr.bf16.mxu0 0
    %2539 = vmatpush1.bf16.xpose.msra.mxu0 0
    %2540 = vmatprep.subr.bf16.mxu0 0
    %2541 = vmatpush1.bf16.xpose.msra.mxu0 0
    %2542 = vmatprep.subr.bf16.mxu0 0
    %2543 = vmatpush1.bf16.xpose.msra.mxu0 0
    %2544 = vmatprep.subr.bf16.mxu0 0
    %2545 = vmatpush1.bf16.xpose.msra.mxu0 0
    %2546 = vmatprep.mubr.bf16.mxu0 0
    %2547 = vmatmul.mubr.bf16.gmra.mrb[0].mxu0 %v2509
    %v2548 = vpop.f32.mrb[0].mxu0
    %v2549 = vadd.f32 0.0, %v2548
    %v2550 = vpop.f32.mrb[0].mxu0
    %v2551 = vpop.f32.mrb[0].mxu0
    %v2552 = vadd.f32 0.0, %v2551
    %v2553 = vpop.f32.mrb[0].mxu0
    %2554 = vdwg.mxu0
    %v2556 = vsel %vm820, %v2455, 0
    %v2559 = vsel %vm820, %v2459, 0
    %2561 = vmatprep.subr.bf16.mxu0 0
    %2562 = vmatpush1.bf16.xpose.msra.mxu0 %v2559
    %2563 = vmatprep.subr.bf16.mxu0 0
    %2564 = vmatpush1.bf16.xpose.msra.mxu0 0
    %2565 = vmatprep.subr.bf16.mxu0 0
    %2566 = vmatpush1.bf16.xpose.msra.mxu0 0
    %2567 = vmatprep.subr.bf16.mxu0 0
    %2568 = vmatpush1.bf16.xpose.msra.mxu0 0
    %2569 = vmatprep.subr.bf16.mxu0 0
    %2570 = vmatpush1.bf16.xpose.msra.mxu0 0
    %2571 = vmatprep.subr.bf16.mxu0 0
    %2572 = vmatpush1.bf16.xpose.msra.mxu0 0
    %2573 = vmatprep.subr.bf16.mxu0 0
    %2574 = vmatpush1.bf16.xpose.msra.mxu0 0
    %2575 = vmatprep.subr.bf16.mxu0 0
    %2576 = vmatpush1.bf16.xpose.msra.mxu0 0
    %2577 = vmatprep.subr.bf16.mxu0 0
    %2578 = vmatpush1.bf16.xpose.msra.mxu0 0
    %2579 = vmatprep.subr.bf16.mxu0 0
    %2580 = vmatpush1.bf16.xpose.msra.mxu0 0
    %2581 = vmatprep.subr.bf16.mxu0 0
    %2582 = vmatpush1.bf16.xpose.msra.mxu0 0
    %2583 = vmatprep.subr.bf16.mxu0 0
    %2584 = vmatpush1.bf16.xpose.msra.mxu0 0
    %2585 = vmatprep.subr.bf16.mxu0 0
    %2586 = vmatpush1.bf16.xpose.msra.mxu0 0
    %2587 = vmatprep.subr.bf16.mxu0 0
    %2588 = vmatpush1.bf16.xpose.msra.mxu0 0
    %2589 = vmatprep.subr.bf16.mxu0 0
    %2590 = vmatpush1.bf16.xpose.msra.mxu0 0
    %2591 = vmatprep.subr.bf16.mxu0 0
    %2592 = vmatpush1.bf16.xpose.msra.mxu0 0
    %2593 = vmatprep.mubr.bf16.mxu0 0
    %2594 = vmatmul.mubr.bf16.gmra.mrb[0].mxu0 %v2556
    %v2595 = vpop.f32.mrb[0].mxu0
    %v2596 = vadd.f32 0.0, %v2595
    %v2597 = vpop.f32.mrb[0].mxu0
    %v2598 = vpop.f32.mrb[0].mxu0
    %v2599 = vadd.f32 0.0, %v2598
    %v2600 = vpop.f32.mrb[0].mxu0
    %2601 = vdwg.mxu0
    %v2603 = vsel %vm820, %v2456, 0
    %v2606 = vsel %vm820, %v2460, 0
    %2608 = vmatprep.subr.bf16.mxu0 0
    %2609 = vmatpush1.bf16.xpose.msra.mxu0 %v2606
    %2610 = vmatprep.subr.bf16.mxu0 0
    %2611 = vmatpush1.bf16.xpose.msra.mxu0 0
    %2612 = vmatprep.subr.bf16.mxu0 0
    %2613 = vmatpush1.bf16.xpose.msra.mxu0 0
    %2614 = vmatprep.subr.bf16.mxu0 0
    %2615 = vmatpush1.bf16.xpose.msra.mxu0 0
    %2616 = vmatprep.subr.bf16.mxu0 0
    %2617 = vmatpush1.bf16.xpose.msra.mxu0 0
    %2618 = vmatprep.subr.bf16.mxu0 0
    %2619 = vmatpush1.bf16.xpose.msra.mxu0 0
    %2620 = vmatprep.subr.bf16.mxu0 0
    %2621 = vmatpush1.bf16.xpose.msra.mxu0 0
    %2622 = vmatprep.subr.bf16.mxu0 0
    %2623 = vmatpush1.bf16.xpose.msra.mxu0 0
    %2624 = vmatprep.subr.bf16.mxu0 0
    %2625 = vmatpush1.bf16.xpose.msra.mxu0 0
    %2626 = vmatprep.subr.bf16.mxu0 0
    %2627 = vmatpush1.bf16.xpose.msra.mxu0 0
    %2628 = vmatprep.subr.bf16.mxu0 0
    %2629 = vmatpush1.bf16.xpose.msra.mxu0 0
    %2630 = vmatprep.subr.bf16.mxu0 0
    %2631 = vmatpush1.bf16.xpose.msra.mxu0 0
    %2632 = vmatprep.subr.bf16.mxu0 0
    %2633 = vmatpush1.bf16.xpose.msra.mxu0 0
    %2634 = vmatprep.subr.bf16.mxu0 0
    %2635 = vmatpush1.bf16.xpose.msra.mxu0 0
    %2636 = vmatprep.subr.bf16.mxu0 0
    %2637 = vmatpush1.bf16.xpose.msra.mxu0 0
    %2638 = vmatprep.subr.bf16.mxu0 0
    %2639 = vmatpush1.bf16.xpose.msra.mxu0 0
    %2640 = vmatprep.mubr.bf16.mxu0 0
    %2641 = vmatmul.mubr.bf16.gmra.mrb[0].mxu0 %v2603
    %v2642 = vpop.f32.mrb[0].mxu0
    %v2643 = vadd.f32 0.0, %v2642
    %v2644 = vpop.f32.mrb[0].mxu0
    %v2645 = vpop.f32.mrb[0].mxu0
    %v2646 = vadd.f32 0.0, %v2645
    %v2647 = vpop.f32.mrb[0].mxu0
    %2648 = vdwg.mxu0
    %v2649 = vmul.f32 %v2502, 0.35355338
    %v2650 = vmul.f32 %v2505, 0.35355338
    %v2651 = vmul.f32 %v2549, 0.35355338
    %v2652 = vmul.f32 %v2552, 0.35355338
    %v2653 = vmul.f32 %v2596, 0.35355338
    %v2654 = vmul.f32 %v2599, 0.35355338
    %v2655 = vmul.f32 %v2643, 0.35355338
    %v2656 = vmul.f32 %v2646, 0.35355338
    %v2657 = vadd.f32 %v2649, %v117
    %v2658 = vadd.f32 %v2650, %v118
    %v2659 = vadd.f32 %v2651, %v117
    %v2660 = vadd.f32 %v2652, %v118
    %v2661 = vadd.f32 %v2653, %v117
    %v2662 = vadd.f32 %v2654, %v118
    %v2663 = vadd.f32 %v2655, %v117
    %v2664 = vadd.f32 %v2656, %v118
    %v2665 = vsel %vm1025, %v2657, -inf
    %2666 = vmax.xlane.f32.xlu0 %v2665
    %v2667 = vpop.xlane.xlu0 %2666
    %v2668 = vsel %vm1025, %v2658, -inf
    %2669 = vmax.xlane.f32.xlu0 %v2668
    %v2670 = vpop.xlane.xlu0 %2669
    %v2671 = vsel %vm1025, %v2659, -inf
    %2672 = vmax.xlane.f32.xlu0 %v2671
    %v2673 = vpop.xlane.xlu0 %2672
    %v2674 = vsel %vm1025, %v2660, -inf
    %2675 = vmax.xlane.f32.xlu0 %v2674
    %v2676 = vpop.xlane.xlu0 %2675
    %v2677 = vsel %vm1025, %v2661, -inf
    %2678 = vmax.xlane.f32.xlu0 %v2677
    %v2679 = vpop.xlane.xlu0 %2678
    %v2680 = vsel %vm1025, %v2662, -inf
    %2681 = vmax.xlane.f32.xlu0 %v2680
    %v2682 = vpop.xlane.xlu0 %2681
    %v2683 = vsel %vm1025, %v2663, -inf
    %2684 = vmax.xlane.f32.xlu0 %v2683
    %v2685 = vpop.xlane.xlu0 %2684
    %v2686 = vsel %vm1025, %v2664, -inf
    %2687 = vmax.xlane.f32.xlu0 %v2686
    %v2688 = vpop.xlane.xlu0 %2687
    %v2689 = vsub.f32 %v2657, %v2667
    %v2690 = vsub.f32 %v2658, %v2670
    %v2691 = vsub.f32 %v2659, %v2673
    %v2692 = vsub.f32 %v2660, %v2676
    %v2693 = vsub.f32 %v2661, %v2679
    %v2694 = vsub.f32 %v2662, %v2682
    %v2695 = vsub.f32 %v2663, %v2685
    %v2696 = vsub.f32 %v2664, %v2688
    %v2697 = vmul.f32 %v2689, 1.442695
    %v2698 = vpow.pop %v2697
    %v2699 = vmul.f32 %v2690, 1.442695
    %v2700 = vpow.pop %v2699
    %v2701 = vmul.f32 %v2691, 1.442695
    %v2702 = vpow.pop %v2701
    %v2703 = vmul.f32 %v2692, 1.442695
    %v2704 = vpow.pop %v2703
    %v2705 = vmul.f32 %v2693, 1.442695
    %v2706 = vpow.pop %v2705
    %v2707 = vmul.f32 %v2694, 1.442695
    %v2708 = vpow.pop %v2707
    %v2709 = vmul.f32 %v2695, 1.442695
    %v2710 = vpow.pop %v2709
    %v2711 = vmul.f32 %v2696, 1.442695
    %v2712 = vpow.pop %v2711
    %v2713 = vsel %vm1025, %v2698, 0.0
    %2714 = vadd.xlane.f32.xlu0 %v2713
    %v2715 = vpop.xlane.xlu0 %2714
    %v2716 = vsel %vm1025, %v2700, 0.0
    %2717 = vadd.xlane.f32.xlu0 %v2716
    %v2718 = vpop.xlane.xlu0 %2717
    %v2719 = vsel %vm1025, %v2702, 0.0
    %2720 = vadd.xlane.f32.xlu0 %v2719
    %v2721 = vpop.xlane.xlu0 %2720
    %v2722 = vsel %vm1025, %v2704, 0.0
    %2723 = vadd.xlane.f32.xlu0 %v2722
    %v2724 = vpop.xlane.xlu0 %2723
    %v2725 = vsel %vm1025, %v2706, 0.0
    %2726 = vadd.xlane.f32.xlu0 %v2725
    %v2727 = vpop.xlane.xlu0 %2726
    %v2728 = vsel %vm1025, %v2708, 0.0
    %2729 = vadd.xlane.f32.xlu0 %v2728
    %v2730 = vpop.xlane.xlu0 %2729
    %v2731 = vsel %vm1025, %v2710, 0.0
    %2732 = vadd.xlane.f32.xlu0 %v2731
    %v2733 = vpop.xlane.xlu0 %2732
    %v2734 = vsel %vm1025, %v2712, 0.0
    %2735 = vadd.xlane.f32.xlu0 %v2734
    %v2736 = vpop.xlane.xlu0 %2735
    %v2737 = vrcp.pop %v2715
    %v2738 = vrcp.pop %v2718
    %v2739 = vrcp.pop %v2721
    %v2740 = vrcp.pop %v2724
    %v2741 = vrcp.pop %v2727
    %v2742 = vrcp.pop %v2730
    %v2743 = vrcp.pop %v2733
    %v2744 = vrcp.pop %v2736
    %v2745 = vmul.f32 %v2698, %v2737
    %v2746 = vmul.f32 %v2700, %v2738
    %v2747 = vmul.f32 %v2702, %v2739
    %v2748 = vmul.f32 %v2704, %v2740
    %v2749 = vmul.f32 %v2706, %v2741
    %v2750 = vmul.f32 %v2708, %v2742
    %v2751 = vmul.f32 %v2710, %v2743
    %v2752 = vmul.f32 %v2712, %v2744
    %v2753 = vpack.c.bf16 %v2746, %v2745
    %v2754 = vpack.c.bf16 %v2748, %v2747
    %v2755 = vpack.c.bf16 %v2750, %v2749
    %v2756 = vpack.c.bf16 %v2752, %v2751
    %v2757 = vpack.c.bf16 %v2291, %v2288
    %v2758 = vpack.c.bf16 %v2344, %v2341
    %v2759 = vpack.c.bf16 %v2397, %v2394
    %v2760 = vpack.c.bf16 %v2450, %v2447
    %v2762 = vsel %vm1025, %v2753, 0
    %2764 = vmatprep.subr.bf16.mxu0 0
    %2765 = vmatpush1.bf16.msra.mxu0 %v2757
    %2766 = vmatprep.subr.bf16.mxu0 0
    %2767 = vmatpush1.bf16.msra.mxu0 0
    %2768 = vmatprep.subr.bf16.mxu0 0
    %2769 = vmatpush1.bf16.msra.mxu0 0
    %2770 = vmatprep.subr.bf16.mxu0 0
    %2771 = vmatpush1.bf16.msra.mxu0 0
    %2772 = vmatprep.subr.bf16.mxu0 0
    %2773 = vmatpush1.bf16.msra.mxu0 0
    %2774 = vmatprep.subr.bf16.mxu0 0
    %2775 = vmatpush1.bf16.msra.mxu0 0
    %2776 = vmatprep.subr.bf16.mxu0 0
    %2777 = vmatpush1.bf16.msra.mxu0 0
    %2778 = vmatprep.subr.bf16.mxu0 0
    %2779 = vmatpush1.bf16.msra.mxu0 0
    %2780 = vmatprep.subr.bf16.mxu0 0
    %2781 = vmatpush1.bf16.msra.mxu0 0
    %2782 = vmatprep.subr.bf16.mxu0 0
    %2783 = vmatpush1.bf16.msra.mxu0 0
    %2784 = vmatprep.subr.bf16.mxu0 0
    %2785 = vmatpush1.bf16.msra.mxu0 0
    %2786 = vmatprep.subr.bf16.mxu0 0
    %2787 = vmatpush1.bf16.msra.mxu0 0
    %2788 = vmatprep.subr.bf16.mxu0 0
    %2789 = vmatpush1.bf16.msra.mxu0 0
    %2790 = vmatprep.subr.bf16.mxu0 0
    %2791 = vmatpush1.bf16.msra.mxu0 0
    %2792 = vmatprep.subr.bf16.mxu0 0
    %2793 = vmatpush1.bf16.msra.mxu0 0
    %2794 = vmatprep.subr.bf16.mxu0 0
    %2795 = vmatpush1.bf16.msra.mxu0 0
    %2796 = vmatprep.mubr.bf16.mxu0 0
    %2797 = vmatmul.mubr.bf16.gmra.mrb[0].mxu0 %v2762
    %v2798 = vpop.f32.mrb[0].mxu0
    %v2799 = vadd.f32 0.0, %v2798
    %v2800 = vpop.f32.mrb[0].mxu0
    %v2801 = vpop.f32.mrb[0].mxu0
    %v2802 = vadd.f32 0.0, %v2801
    %v2803 = vpop.f32.mrb[0].mxu0
    %2804 = vdwg.mxu0
    %v2806 = vsel %vm1025, %v2754, 0
    %2808 = vmatprep.subr.bf16.mxu0 0
    %2809 = vmatpush1.bf16.msra.mxu0 %v2758
    %2810 = vmatprep.subr.bf16.mxu0 0
    %2811 = vmatpush1.bf16.msra.mxu0 0
    %2812 = vmatprep.subr.bf16.mxu0 0
    %2813 = vmatpush1.bf16.msra.mxu0 0
    %2814 = vmatprep.subr.bf16.mxu0 0
    %2815 = vmatpush1.bf16.msra.mxu0 0
    %2816 = vmatprep.subr.bf16.mxu0 0
    %2817 = vmatpush1.bf16.msra.mxu0 0
    %2818 = vmatprep.subr.bf16.mxu0 0
    %2819 = vmatpush1.bf16.msra.mxu0 0
    %2820 = vmatprep.subr.bf16.mxu0 0
    %2821 = vmatpush1.bf16.msra.mxu0 0
    %2822 = vmatprep.subr.bf16.mxu0 0
    %2823 = vmatpush1.bf16.msra.mxu0 0
    %2824 = vmatprep.subr.bf16.mxu0 0
    %2825 = vmatpush1.bf16.msra.mxu0 0
    %2826 = vmatprep.subr.bf16.mxu0 0
    %2827 = vmatpush1.bf16.msra.mxu0 0
    %2828 = vmatprep.subr.bf16.mxu0 0
    %2829 = vmatpush1.bf16.msra.mxu0 0
    %2830 = vmatprep.subr.bf16.mxu0 0
    %2831 = vmatpush1.bf16.msra.mxu0 0
    %2832 = vmatprep.subr.bf16.mxu0 0
    %2833 = vmatpush1.bf16.msra.mxu0 0
    %2834 = vmatprep.subr.bf16.mxu0 0
    %2835 = vmatpush1.bf16.msra.mxu0 0
    %2836 = vmatprep.subr.bf16.mxu0 0
    %2837 = vmatpush1.bf16.msra.mxu0 0
    %2838 = vmatprep.subr.bf16.mxu0 0
    %2839 = vmatpush1.bf16.msra.mxu0 0
    %2840 = vmatprep.mubr.bf16.mxu0 0
    %2841 = vmatmul.mubr.bf16.gmra.mrb[0].mxu0 %v2806
    %v2842 = vpop.f32.mrb[0].mxu0
    %v2843 = vadd.f32 0.0, %v2842
    %v2844 = vpop.f32.mrb[0].mxu0
    %v2845 = vpop.f32.mrb[0].mxu0
    %v2846 = vadd.f32 0.0, %v2845
    %v2847 = vpop.f32.mrb[0].mxu0
    %2848 = vdwg.mxu0
    %v2850 = vsel %vm1025, %v2755, 0
    %2852 = vmatprep.subr.bf16.mxu0 0
    %2853 = vmatpush1.bf16.msra.mxu0 %v2759
    %2854 = vmatprep.subr.bf16.mxu0 0
    %2855 = vmatpush1.bf16.msra.mxu0 0
    %2856 = vmatprep.subr.bf16.mxu0 0
    %2857 = vmatpush1.bf16.msra.mxu0 0
    %2858 = vmatprep.subr.bf16.mxu0 0
    %2859 = vmatpush1.bf16.msra.mxu0 0
    %2860 = vmatprep.subr.bf16.mxu0 0
    %2861 = vmatpush1.bf16.msra.mxu0 0
    %2862 = vmatprep.subr.bf16.mxu0 0
    %2863 = vmatpush1.bf16.msra.mxu0 0
    %2864 = vmatprep.subr.bf16.mxu0 0
    %2865 = vmatpush1.bf16.msra.mxu0 0
    %2866 = vmatprep.subr.bf16.mxu0 0
    %2867 = vmatpush1.bf16.msra.mxu0 0
    %2868 = vmatprep.subr.bf16.mxu0 0
    %2869 = vmatpush1.bf16.msra.mxu0 0
    %2870 = vmatprep.subr.bf16.mxu0 0
    %2871 = vmatpush1.bf16.msra.mxu0 0
    %2872 = vmatprep.subr.bf16.mxu0 0
    %2873 = vmatpush1.bf16.msra.mxu0 0
    %2874 = vmatprep.subr.bf16.mxu0 0
    %2875 = vmatpush1.bf16.msra.mxu0 0
    %2876 = vmatprep.subr.bf16.mxu0 0
    %2877 = vmatpush1.bf16.msra.mxu0 0
    %2878 = vmatprep.subr.bf16.mxu0 0
    %2879 = vmatpush1.bf16.msra.mxu0 0
    %2880 = vmatprep.subr.bf16.mxu0 0
    %2881 = vmatpush1.bf16.msra.mxu0 0
    %2882 = vmatprep.subr.bf16.mxu0 0
    %2883 = vmatpush1.bf16.msra.mxu0 0
    %2884 = vmatprep.mubr.bf16.mxu0 0
    %2885 = vmatmul.mubr.bf16.gmra.mrb[0].mxu0 %v2850
    %v2886 = vpop.f32.mrb[0].mxu0
    %v2887 = vadd.f32 0.0, %v2886
    %v2888 = vpop.f32.mrb[0].mxu0
    %v2889 = vpop.f32.mrb[0].mxu0
    %v2890 = vadd.f32 0.0, %v2889
    %v2891 = vpop.f32.mrb[0].mxu0
    %2892 = vdwg.mxu0
    %v2894 = vsel %vm1025, %v2756, 0
    %2896 = vmatprep.subr.bf16.mxu0 0
    %2897 = vmatpush1.bf16.msra.mxu0 %v2760
    %2898 = vmatprep.subr.bf16.mxu0 0
    %2899 = vmatpush1.bf16.msra.mxu0 0
    %2900 = vmatprep.subr.bf16.mxu0 0
    %2901 = vmatpush1.bf16.msra.mxu0 0
    %2902 = vmatprep.subr.bf16.mxu0 0
    %2903 = vmatpush1.bf16.msra.mxu0 0
    %2904 = vmatprep.subr.bf16.mxu0 0
    %2905 = vmatpush1.bf16.msra.mxu0 0
    %2906 = vmatprep.subr.bf16.mxu0 0
    %2907 = vmatpush1.bf16.msra.mxu0 0
    %2908 = vmatprep.subr.bf16.mxu0 0
    %2909 = vmatpush1.bf16.msra.mxu0 0
    %2910 = vmatprep.subr.bf16.mxu0 0
    %2911 = vmatpush1.bf16.msra.mxu0 0
    %2912 = vmatprep.subr.bf16.mxu0 0
    %2913 = vmatpush1.bf16.msra.mxu0 0
    %2914 = vmatprep.subr.bf16.mxu0 0
    %2915 = vmatpush1.bf16.msra.mxu0 0
    %2916 = vmatprep.subr.bf16.mxu0 0
    %2917 = vmatpush1.bf16.msra.mxu0 0
    %2918 = vmatprep.subr.bf16.mxu0 0
    %2919 = vmatpush1.bf16.msra.mxu0 0
    %2920 = vmatprep.subr.bf16.mxu0 0
    %2921 = vmatpush1.bf16.msra.mxu0 0
    %2922 = vmatprep.subr.bf16.mxu0 0
    %2923 = vmatpush1.bf16.msra.mxu0 0
    %2924 = vmatprep.subr.bf16.mxu0 0
    %2925 = vmatpush1.bf16.msra.mxu0 0
    %2926 = vmatprep.subr.bf16.mxu0 0
    %2927 = vmatpush1.bf16.msra.mxu0 0
    %2928 = vmatprep.mubr.bf16.mxu0 0
    %2929 = vmatmul.mubr.bf16.gmra.mrb[0].mxu0 %v2894
    %v2930 = vpop.f32.mrb[0].mxu0
    %v2931 = vadd.f32 0.0, %v2930
    %v2932 = vpop.f32.mrb[0].mxu0
    %v2933 = vpop.f32.mrb[0].mxu0
    %v2934 = vadd.f32 0.0, %v2933
    %v2935 = vpop.f32.mrb[0].mxu0
    %2936 = vdwg.mxu0
    %v2937 = vpack.c.bf16 %v2802, %v2799
    %v2938 = vpack.c.bf16 %v2846, %v2843
    %v2939 = vpack.c.bf16 %v2890, %v2887
    %v2940 = vpack.c.bf16 %v2934, %v2931
    %v2942 = vsel %vm820, %v2937, 0
    %v2945 = vsel %vm1305, %v1809, 0
    %2947 = vmatprep.subr.bf16.mxu0 0
    %2948 = vmatpush1.bf16.msra.mxu0 %v2945
    %2949 = vmatprep.subr.bf16.mxu0 0
    %2950 = vmatpush1.bf16.msra.mxu0 0
    %2951 = vmatprep.subr.bf16.mxu0 0
    %2952 = vmatpush1.bf16.msra.mxu0 0
    %2953 = vmatprep.subr.bf16.mxu0 0
    %2954 = vmatpush1.bf16.msra.mxu0 0
    %2955 = vmatprep.subr.bf16.mxu0 0
    %2956 = vmatpush1.bf16.msra.mxu0 0
    %2957 = vmatprep.subr.bf16.mxu0 0
    %2958 = vmatpush1.bf16.msra.mxu0 0
    %2959 = vmatprep.subr.bf16.mxu0 0
    %2960 = vmatpush1.bf16.msra.mxu0 0
    %2961 = vmatprep.subr.bf16.mxu0 0
    %2962 = vmatpush1.bf16.msra.mxu0 0
    %2963 = vmatprep.subr.bf16.mxu0 0
    %2964 = vmatpush1.bf16.msra.mxu0 0
    %2965 = vmatprep.subr.bf16.mxu0 0
    %2966 = vmatpush1.bf16.msra.mxu0 0
    %2967 = vmatprep.subr.bf16.mxu0 0
    %2968 = vmatpush1.bf16.msra.mxu0 0
    %2969 = vmatprep.subr.bf16.mxu0 0
    %2970 = vmatpush1.bf16.msra.mxu0 0
    %2971 = vmatprep.subr.bf16.mxu0 0
    %2972 = vmatpush1.bf16.msra.mxu0 0
    %2973 = vmatprep.subr.bf16.mxu0 0
    %2974 = vmatpush1.bf16.msra.mxu0 0
    %2975 = vmatprep.subr.bf16.mxu0 0
    %2976 = vmatpush1.bf16.msra.mxu0 0
    %2977 = vmatprep.subr.bf16.mxu0 0
    %2978 = vmatpush1.bf16.msra.mxu0 0
    %2979 = vmatprep.mubr.bf16.mxu0 0
    %2980 = vmatmul.mubr.bf16.gmra.mrb[0].mxu0 %v2942
    %v2981 = vpop.f32.mrb[0].mxu0
    %v2982 = vadd.f32 0.0, %v2981
    %v2983 = vpop.f32.mrb[0].mxu0
    %v2984 = vpop.f32.mrb[0].mxu0
    %v2985 = vadd.f32 0.0, %v2984
    %v2986 = vpop.f32.mrb[0].mxu0
    %2987 = vdwg.mxu0
    %v2989 = vsel %vm820, %v2938, 0
    %v2992 = vsel %vm1305, %v1810, 0
    %2994 = vmatprep.subr.bf16.mxu0 0
    %2995 = vmatpush1.bf16.msra.mxu0 %v2992
    %2996 = vmatprep.subr.bf16.mxu0 0
    %2997 = vmatpush1.bf16.msra.mxu0 0
    %2998 = vmatprep.subr.bf16.mxu0 0
    %2999 = vmatpush1.bf16.msra.mxu0 0
    %3000 = vmatprep.subr.bf16.mxu0 0
    %3001 = vmatpush1.bf16.msra.mxu0 0
    %3002 = vmatprep.subr.bf16.mxu0 0
    %3003 = vmatpush1.bf16.msra.mxu0 0
    %3004 = vmatprep.subr.bf16.mxu0 0
    %3005 = vmatpush1.bf16.msra.mxu0 0
    %3006 = vmatprep.subr.bf16.mxu0 0
    %3007 = vmatpush1.bf16.msra.mxu0 0
    %3008 = vmatprep.subr.bf16.mxu0 0
    %3009 = vmatpush1.bf16.msra.mxu0 0
    %3010 = vmatprep.subr.bf16.mxu0 0
    %3011 = vmatpush1.bf16.msra.mxu0 0
    %3012 = vmatprep.subr.bf16.mxu0 0
    %3013 = vmatpush1.bf16.msra.mxu0 0
    %3014 = vmatprep.subr.bf16.mxu0 0
    %3015 = vmatpush1.bf16.msra.mxu0 0
    %3016 = vmatprep.subr.bf16.mxu0 0
    %3017 = vmatpush1.bf16.msra.mxu0 0
    %3018 = vmatprep.subr.bf16.mxu0 0
    %3019 = vmatpush1.bf16.msra.mxu0 0
    %3020 = vmatprep.subr.bf16.mxu0 0
    %3021 = vmatpush1.bf16.msra.mxu0 0
    %3022 = vmatprep.subr.bf16.mxu0 0
    %3023 = vmatpush1.bf16.msra.mxu0 0
    %3024 = vmatprep.subr.bf16.mxu0 0
    %3025 = vmatpush1.bf16.msra.mxu0 0
    %3026 = vmatprep.mubr.bf16.mxu0 0
    %3027 = vmatmul.mubr.bf16.gmra.mrb[0].mxu0 %v2989
    %v3028 = vpop.f32.mrb[0].mxu0
    %v3029 = vadd.f32 0.0, %v3028
    %v3030 = vpop.f32.mrb[0].mxu0
    %v3031 = vpop.f32.mrb[0].mxu0
    %v3032 = vadd.f32 0.0, %v3031
    %v3033 = vpop.f32.mrb[0].mxu0
    %3034 = vdwg.mxu0
    %v3036 = vsel %vm820, %v2939, 0
    %v3039 = vsel %vm1305, %v1811, 0
    %3041 = vmatprep.subr.bf16.mxu0 0
    %3042 = vmatpush1.bf16.msra.mxu0 %v3039
    %3043 = vmatprep.subr.bf16.mxu0 0
    %3044 = vmatpush1.bf16.msra.mxu0 0
    %3045 = vmatprep.subr.bf16.mxu0 0
    %3046 = vmatpush1.bf16.msra.mxu0 0
    %3047 = vmatprep.subr.bf16.mxu0 0
    %3048 = vmatpush1.bf16.msra.mxu0 0
    %3049 = vmatprep.subr.bf16.mxu0 0
    %3050 = vmatpush1.bf16.msra.mxu0 0
    %3051 = vmatprep.subr.bf16.mxu0 0
    %3052 = vmatpush1.bf16.msra.mxu0 0
    %3053 = vmatprep.subr.bf16.mxu0 0
    %3054 = vmatpush1.bf16.msra.mxu0 0
    %3055 = vmatprep.subr.bf16.mxu0 0
    %3056 = vmatpush1.bf16.msra.mxu0 0
    %3057 = vmatprep.subr.bf16.mxu0 0
    %3058 = vmatpush1.bf16.msra.mxu0 0
    %3059 = vmatprep.subr.bf16.mxu0 0
    %3060 = vmatpush1.bf16.msra.mxu0 0
    %3061 = vmatprep.subr.bf16.mxu0 0
    %3062 = vmatpush1.bf16.msra.mxu0 0
    %3063 = vmatprep.subr.bf16.mxu0 0
    %3064 = vmatpush1.bf16.msra.mxu0 0
    %3065 = vmatprep.subr.bf16.mxu0 0
    %3066 = vmatpush1.bf16.msra.mxu0 0
    %3067 = vmatprep.subr.bf16.mxu0 0
    %3068 = vmatpush1.bf16.msra.mxu0 0
    %3069 = vmatprep.subr.bf16.mxu0 0
    %3070 = vmatpush1.bf16.msra.mxu0 0
    %3071 = vmatprep.subr.bf16.mxu0 0
    %3072 = vmatpush1.bf16.msra.mxu0 0
    %3073 = vmatprep.mubr.bf16.mxu0 0
    %3074 = vmatmul.mubr.bf16.gmra.mrb[0].mxu0 %v3036
    %v3075 = vpop.f32.mrb[0].mxu0
    %v3076 = vadd.f32 0.0, %v3075
    %v3077 = vpop.f32.mrb[0].mxu0
    %v3078 = vpop.f32.mrb[0].mxu0
    %v3079 = vadd.f32 0.0, %v3078
    %v3080 = vpop.f32.mrb[0].mxu0
    %3081 = vdwg.mxu0
    %v3083 = vsel %vm820, %v2940, 0
    %v3086 = vsel %vm1305, %v1812, 0
    %3088 = vmatprep.subr.bf16.mxu0 0
    %3089 = vmatpush1.bf16.msra.mxu0 %v3086
    %3090 = vmatprep.subr.bf16.mxu0 0
    %3091 = vmatpush1.bf16.msra.mxu0 0
    %3092 = vmatprep.subr.bf16.mxu0 0
    %3093 = vmatpush1.bf16.msra.mxu0 0
    %3094 = vmatprep.subr.bf16.mxu0 0
    %3095 = vmatpush1.bf16.msra.mxu0 0
    %3096 = vmatprep.subr.bf16.mxu0 0
    %3097 = vmatpush1.bf16.msra.mxu0 0
    %3098 = vmatprep.subr.bf16.mxu0 0
    %3099 = vmatpush1.bf16.msra.mxu0 0
    %3100 = vmatprep.subr.bf16.mxu0 0
    %3101 = vmatpush1.bf16.msra.mxu0 0
    %3102 = vmatprep.subr.bf16.mxu0 0
    %3103 = vmatpush1.bf16.msra.mxu0 0
    %3104 = vmatprep.subr.bf16.mxu0 0
    %3105 = vmatpush1.bf16.msra.mxu0 0
    %3106 = vmatprep.subr.bf16.mxu0 0
    %3107 = vmatpush1.bf16.msra.mxu0 0
    %3108 = vmatprep.subr.bf16.mxu0 0
    %3109 = vmatpush1.bf16.msra.mxu0 0
    %3110 = vmatprep.subr.bf16.mxu0 0
    %3111 = vmatpush1.bf16.msra.mxu0 0
    %3112 = vmatprep.subr.bf16.mxu0 0
    %3113 = vmatpush1.bf16.msra.mxu0 0
    %3114 = vmatprep.subr.bf16.mxu0 0
    %3115 = vmatpush1.bf16.msra.mxu0 0
    %3116 = vmatprep.subr.bf16.mxu0 0
    %3117 = vmatpush1.bf16.msra.mxu0 0
    %3118 = vmatprep.subr.bf16.mxu0 0
    %3119 = vmatpush1.bf16.msra.mxu0 0
    %3120 = vmatprep.mubr.bf16.mxu0 0
    %3121 = vmatmul.mubr.bf16.gmra.mrb[0].mxu0 %v3083
    %v3122 = vpop.f32.mrb[0].mxu0
    %v3123 = vadd.f32 0.0, %v3122
    %v3124 = vpop.f32.mrb[0].mxu0
    %v3125 = vpop.f32.mrb[0].mxu0
    %v3126 = vadd.f32 0.0, %v3125
    %v3127 = vpop.f32.mrb[0].mxu0
    %3128 = vdwg.mxu0
    %v3129 = vsel %vm184, %v2982, 0.0
    %v3130 = vsel %vm184, %v3029, 0.0
    %v3131 = vadd.f32 %v3129, %v3130
    %v3132 = vsel %vm184, %v3076, 0.0
    %v3133 = vadd.f32 %v3131, %v3132
    %v3134 = vsel %vm184, %v3123, 0.0
    %v3135 = vadd.f32 %v3133, %v3134
    %v3136 = vsel %vm184, %v2985, 0.0
    %v3137 = vsel %vm184, %v3032, 0.0
    %v3138 = vadd.f32 %v3136, %v3137
    %v3139 = vsel %vm184, %v3079, 0.0
    %v3140 = vadd.f32 %v3138, %v3139
    %v3141 = vsel %vm184, %v3126, 0.0
    %v3142 = vadd.f32 %v3140, %v3141
    %v3143 = vadd.f32 %v1755, %v3135
    %v3144 = vadd.f32 %v1756, %v3142
    %s3145 = scalar_lea.vmem %s8, 1
    %v3146 = vld [vmem:[%s3145] sm:$0x1]
    %s3147 = scalar_lea.vmem %s9, 1
    %v3148 = vld [vmem:[%s3147] sm:$0x1]
    %v3149 = vsel %vm184, %v3143, 0.0
    %v3150 = vsel %vm184, %v3144, 0.0
    %v3151 = vadd.f32 %v3149, %v3150
    %v3152 = vrot.slane %v3151, 4
    %v3153 = vadd.f32 %v3151, %v3152
    %v3154 = vrot.slane %v3153, 2
    %v3155 = vadd.f32 %v3153, %v3154
    %v3156 = vrot.slane %v3155, 1
    %v3157 = vadd.f32 %v3155, %v3156
    %v3158 = vmul.f32 %v3157, %v1518
    %v3159 = vsub.f32 %v3143, %v3158
    %v3160 = vsub.f32 %v3144, %v3158
    %v3161 = vmul.f32 %v3159, %v3159
    %v3162 = vmul.f32 %v3160, %v3160
    %v3163 = vsel %vm184, %v3161, 0.0
    %v3164 = vsel %vm184, %v3162, 0.0
    %v3165 = vadd.f32 %v3163, %v3164
    %v3166 = vrot.slane %v3165, 4
    %v3167 = vadd.f32 %v3165, %v3166
    %v3168 = vrot.slane %v3167, 2
    %v3169 = vadd.f32 %v3167, %v3168
    %v3170 = vrot.slane %v3169, 1
    %v3171 = vadd.f32 %v3169, %v3170
    %v3172 = vmul.f32 %v3171, %v1518
    %v3173 = vadd.f32 %v3172, 1e-05
    %v3174 = vrsqrt.pop %v3173
    %v3175 = vmul.f32 %v3159, %v3174
    %v3176 = vmul.f32 %v3160, %v3174
    %v3178 = vlaneseq
    %v3179 = vshrl.u32 %v3178, 7
    %v3180 = vsub.s32 0, %v3179
    %v3181 = vrot.slane %v3146, %v3180
    %v3183 = vmul.f32 %v3175, %v3181
    %v3184 = vmul.f32 %v3176, %v3181
    %v3186 = vlaneseq
    %v3187 = vshrl.u32 %v3186, 7
    %v3188 = vsub.s32 0, %v3187
    %v3189 = vrot.slane %v3148, %v3188
    %v3191 = vadd.f32 %v3183, %v3189
    %v3192 = vadd.f32 %v3184, %v3189
    %v3193 = vpack.c.bf16 %v3192, %v3191
    %s3194 = scalar_lea.vmem %s10, 16
    %v3195 = vld [vmem:[%s3194] sm:$0xf]
    %v3196 = vld [vmem:[%s3194 + $0x4] sm:$0xf]
    %v3197 = vld [vmem:[%s3194 + $0x8] sm:$0xf]
    %v3198 = vld [vmem:[%s3194 + $0xc] sm:$0xf]
    %s3199 = scalar_lea.vmem %s11, 1
    %v3200 = vld [vmem:[%s3199] sm:$0x1]
    %v3202 = vlaneseq
    %v3203 = vshrl.u32 %v3202, 7
    %v3204 = vsub.s32 0, %v3203
    %v3205 = vrot.slane %v3200, %v3204
    %v3211 = vunpack.c.l.b16 %v3195
    %v3212 = vunpack.c.l.b16 %v3196
    %v3213 = vunpack.c.l.b16 %v3197
    %v3214 = vunpack.c.l.b16 %v3198
    %v3215 = vpack.c.b16 %v3212, %v3211
    %v3216 = vpack.c.b16 %v3214, %v3213
    %v3220 = vsel %vm184, %v3193, 0
    %3222 = vmatprep.subr.bf16.mxu0 0
    %3223 = vmatpush1.bf16.msra.mxu0 %v3215
    %3224 = vmatprep.subr.bf16.mxu0 0
    %3225 = vmatpush1.bf16.msra.mxu0 %v3216
    %3226 = vmatprep.subr.bf16.mxu0 0
    %3227 = vmatpush1.bf16.msra.mxu0 0
    %3228 = vmatprep.subr.bf16.mxu0 0
    %3229 = vmatpush1.bf16.msra.mxu0 0
    %3230 = vmatprep.subr.bf16.mxu0 0
    %3231 = vmatpush1.bf16.msra.mxu0 0
    %3232 = vmatprep.subr.bf16.mxu0 0
    %3233 = vmatpush1.bf16.msra.mxu0 0
    %3234 = vmatprep.subr.bf16.mxu0 0
    %3235 = vmatpush1.bf16.msra.mxu0 0
    %3236 = vmatprep.subr.bf16.mxu0 0
    %3237 = vmatpush1.bf16.msra.mxu0 0
    %3238 = vmatprep.subr.bf16.mxu0 0
    %3239 = vmatpush1.bf16.msra.mxu0 0
    %3240 = vmatprep.subr.bf16.mxu0 0
    %3241 = vmatpush1.bf16.msra.mxu0 0
    %3242 = vmatprep.subr.bf16.mxu0 0
    %3243 = vmatpush1.bf16.msra.mxu0 0
    %3244 = vmatprep.subr.bf16.mxu0 0
    %3245 = vmatpush1.bf16.msra.mxu0 0
    %3246 = vmatprep.subr.bf16.mxu0 0
    %3247 = vmatpush1.bf16.msra.mxu0 0
    %3248 = vmatprep.subr.bf16.mxu0 0
    %3249 = vmatpush1.bf16.msra.mxu0 0
    %3250 = vmatprep.subr.bf16.mxu0 0
    %3251 = vmatpush1.bf16.msra.mxu0 0
    %3252 = vmatprep.subr.bf16.mxu0 0
    %3253 = vmatpush1.bf16.msra.mxu0 0
    %3254 = vmatprep.mubr.bf16.mxu0 0
    %3255 = vmatmul.mubr.bf16.gmra.mrb[0].mxu0 %v3220
    %v3256 = vpop.f32.mrb[0].mxu0
    %v3257 = vadd.f32 %v3205, %v3256
    %v3258 = vpop.f32.mrb[0].mxu0
    %v3259 = vpop.f32.mrb[0].mxu0
    %v3260 = vadd.f32 %v3205, %v3259
    %v3261 = vpop.f32.mrb[0].mxu0
    %3262 = vdwg.mxu0
    %v3263 = vmax.f32 %v3257, 0.0
    %v3264 = vmax.f32 %v3260, 0.0
    %v3265 = vpack.c.bf16 %v3264, %v3263
    %s3266 = scalar_lea.vmem %s12, 32
    %v3267 = vld [vmem:[%s3266] sm:$0xf]
    %v3268 = vld [vmem:[%s3266 + $0x4] sm:$0xf]
    %v3269 = vld [vmem:[%s3266 + $0x8] sm:$0xf]
    %v3270 = vld [vmem:[%s3266 + $0xc] sm:$0xf]
    %v3271 = vld [vmem:[%s3266 + $0x10] sm:$0xf]
    %v3272 = vld [vmem:[%s3266 + $0x14] sm:$0xf]
    %v3273 = vld [vmem:[%s3266 + $0x18] sm:$0xf]
    %v3274 = vld [vmem:[%s3266 + $0x1c] sm:$0xf]
    %s3275 = scalar_lea.vmem %s13, 1
    %v3276 = vld [vmem:[%s3275] sm:$0x1]
    %v3278 = vlaneseq
    %v3279 = vshrl.u32 %v3278, 7
    %v3280 = vsub.s32 0, %v3279
    %v3281 = vrot.slane %v3276, %v3280
    %v3291 = vunpack.c.l.b16 %v3267
    %v3292 = vunpack.c.l.b16 %v3268
    %v3293 = vunpack.c.l.b16 %v3269
    %v3294 = vunpack.c.l.b16 %v3270
    %v3295 = vunpack.c.l.b16 %v3271
    %v3296 = vunpack.c.l.b16 %v3272
    %v3297 = vunpack.c.l.b16 %v3273
    %v3298 = vunpack.c.l.b16 %v3274
    %v3299 = vpack.c.b16 %v3292, %v3291
    %v3300 = vpack.c.b16 %v3294, %v3293
    %v3301 = vpack.c.b16 %v3296, %v3295
    %v3302 = vpack.c.b16 %v3298, %v3297
    %v3308 = vsel %vm1664, %v3265, 0
    %3310 = vmatprep.subr.bf16.mxu0 0
    %3311 = vmatpush1.bf16.msra.mxu0 %v3299
    %3312 = vmatprep.subr.bf16.mxu0 0
    %3313 = vmatpush1.bf16.msra.mxu0 %v3300
    %3314 = vmatprep.subr.bf16.mxu0 0
    %3315 = vmatpush1.bf16.msra.mxu0 %v3301
    %3316 = vmatprep.subr.bf16.mxu0 0
    %3317 = vmatpush1.bf16.msra.mxu0 %v3302
    %3318 = vmatprep.subr.bf16.mxu0 0
    %3319 = vmatpush1.bf16.msra.mxu0 0
    %3320 = vmatprep.subr.bf16.mxu0 0
    %3321 = vmatpush1.bf16.msra.mxu0 0
    %3322 = vmatprep.subr.bf16.mxu0 0
    %3323 = vmatpush1.bf16.msra.mxu0 0
    %3324 = vmatprep.subr.bf16.mxu0 0
    %3325 = vmatpush1.bf16.msra.mxu0 0
    %3326 = vmatprep.subr.bf16.mxu0 0
    %3327 = vmatpush1.bf16.msra.mxu0 0
    %3328 = vmatprep.subr.bf16.mxu0 0
    %3329 = vmatpush1.bf16.msra.mxu0 0
    %3330 = vmatprep.subr.bf16.mxu0 0
    %3331 = vmatpush1.bf16.msra.mxu0 0
    %3332 = vmatprep.subr.bf16.mxu0 0
    %3333 = vmatpush1.bf16.msra.mxu0 0
    %3334 = vmatprep.subr.bf16.mxu0 0
    %3335 = vmatpush1.bf16.msra.mxu0 0
    %3336 = vmatprep.subr.bf16.mxu0 0
    %3337 = vmatpush1.bf16.msra.mxu0 0
    %3338 = vmatprep.subr.bf16.mxu0 0
    %3339 = vmatpush1.bf16.msra.mxu0 0
    %3340 = vmatprep.subr.bf16.mxu0 0
    %3341 = vmatpush1.bf16.msra.mxu0 0
    %3342 = vmatprep.mubr.bf16.mxu0 0
    %3343 = vmatmul.mubr.bf16.gmra.mrb[0].mxu0 %v3308
    %v3344 = vpop.f32.mrb[0].mxu0
    %v3345 = vadd.f32 %v3281, %v3344
    %v3346 = vpop.f32.mrb[0].mxu0
    %v3347 = vpop.f32.mrb[0].mxu0
    %v3348 = vadd.f32 %v3281, %v3347
    %v3349 = vpop.f32.mrb[0].mxu0
    %3350 = vdwg.mxu0
    %v3351 = vadd.f32 %v3191, %v3345
    %v3352 = vadd.f32 %v3192, %v3348
    %s3353 = scalar_lea.vmem %s14, 1
    %v3354 = vld [vmem:[%s3353] sm:$0x1]
    %s3355 = scalar_lea.vmem %s15, 1
    %v3356 = vld [vmem:[%s3355] sm:$0x1]
    %v3357 = vsel %vm184, %v3351, 0.0
    %v3358 = vsel %vm184, %v3352, 0.0
    %v3359 = vadd.f32 %v3357, %v3358
    %v3360 = vrot.slane %v3359, 4
    %v3361 = vadd.f32 %v3359, %v3360
    %v3362 = vrot.slane %v3361, 2
    %v3363 = vadd.f32 %v3361, %v3362
    %v3364 = vrot.slane %v3363, 1
    %v3365 = vadd.f32 %v3363, %v3364
    %v3366 = vmul.f32 %v3365, %v1518
    %v3367 = vsub.f32 %v3351, %v3366
    %v3368 = vsub.f32 %v3352, %v3366
    %v3369 = vmul.f32 %v3367, %v3367
    %v3370 = vmul.f32 %v3368, %v3368
    %v3371 = vsel %vm184, %v3369, 0.0
    %v3372 = vsel %vm184, %v3370, 0.0
    %v3373 = vadd.f32 %v3371, %v3372
    %v3374 = vrot.slane %v3373, 4
    %v3375 = vadd.f32 %v3373, %v3374
    %v3376 = vrot.slane %v3375, 2
    %v3377 = vadd.f32 %v3375, %v3376
    %v3378 = vrot.slane %v3377, 1
    %v3379 = vadd.f32 %v3377, %v3378
    %v3380 = vmul.f32 %v3379, %v1518
    %v3381 = vadd.f32 %v3380, 1e-05
    %v3382 = vrsqrt.pop %v3381
    %v3383 = vmul.f32 %v3367, %v3382
    %v3384 = vmul.f32 %v3368, %v3382
    %v3386 = vlaneseq
    %v3387 = vshrl.u32 %v3386, 7
    %v3388 = vsub.s32 0, %v3387
    %v3389 = vrot.slane %v3354, %v3388
    %v3391 = vmul.f32 %v3383, %v3389
    %v3392 = vmul.f32 %v3384, %v3389
    %v3394 = vlaneseq
    %v3395 = vshrl.u32 %v3394, 7
    %v3396 = vsub.s32 0, %v3395
    %v3397 = vrot.slane %v3356, %v3396
    %v3399 = vadd.f32 %v3391, %v3397
    %v3400 = vadd.f32 %v3392, %v3397
    %v3403 = vrot.slane %v3400, 7
    %vm3404 = vcmask 1041409
    %v3405 = vsel %vm3404, %v3403, %v3399
    %v3407 = vrot.slane %v3399, 1
    %v3408 = vsel %vm3404, %v3400, %v3407
    %3409 = vrot.lane.b32.xlu0 %v3408, 32
    %v3410 = vpop.permute.xlu0 %3409
    %v3412 = vrot.slane %v3399, 2
    %v3413 = vrot.slane %v3400, 1
    %v3414 = vsel %vm3404, %v3413, %v3412
    %3415 = vrot.lane.b32.xlu0 %v3414, 64
    %v3416 = vpop.permute.xlu0 %3415
    %v3418 = vrot.slane %v3399, 3
    %v3419 = vrot.slane %v3400, 2
    %v3420 = vsel %vm3404, %v3419, %v3418
    %3421 = vrot.lane.b32.xlu0 %v3420, 96
    %v3422 = vpop.permute.xlu0 %3421
    %v3424 = vrot.slane %v3399, 4
    %v3425 = vrot.slane %v3400, 3
    %v3426 = vsel %vm3404, %v3425, %v3424
    %v3428 = vrot.slane %v3399, 5
    %v3429 = vrot.slane %v3400, 4
    %v3430 = vsel %vm3404, %v3429, %v3428
    %3431 = vrot.lane.b32.xlu0 %v3430, 32
    %v3432 = vpop.permute.xlu0 %3431
    %v3434 = vrot.slane %v3399, 6
    %v3435 = vrot.slane %v3400, 5
    %v3436 = vsel %vm3404, %v3435, %v3434
    %3437 = vrot.lane.b32.xlu0 %v3436, 64
    %v3438 = vpop.permute.xlu0 %3437
    %v3440 = vrot.slane %v3399, 7
    %v3441 = vrot.slane %v3400, 6
    %v3442 = vsel %vm3404, %v3441, %v3440
    %3443 = vrot.lane.b32.xlu0 %v3442, 96
    %v3444 = vpop.permute.xlu0 %3443
    %v3446 = vsel %vm184, %v3405, %v3410
    %v3447 = vsel %vm1664, %v3446, %v3416
    %vm3448 = vcmask 785408
    %v3449 = vsel %vm3448, %v3447, %v3422
    %v3450 = vsel %vm184, %v3426, %v3432
    %v3451 = vsel %vm1664, %v3450, %v3438
    %v3452 = vsel %vm3448, %v3451, %v3444
    %v3455 = vcombine.low %v3449, %v3452
    %v3457 = vunpack.c.l.s4 1983009808
    %v3458 = vunpack.c.0.s8 %v3457
    %v3459 = vlaneseq
    %v3460 = vshrl.u32 %v3459, 7
    %v3461 = vsub.s32 %v3458, %v3460
    %v3462 = vrot.slane %v3455, %v3461
    %3464 = vst [vmem:[%s16] sm:$0xf] %v3462
    %v3465 = vsel %vm184, %v3399, 0.0
    %v3466 = vrot.slane %v3465, 4
    %v3467 = vadd.f32 %v3465, %v3466
    %v3468 = vrot.slane %v3467, 2
    %v3469 = vadd.f32 %v3467, %v3468
    %v3470 = vrot.slane %v3469, 1
    %v3471 = vadd.f32 %v3469, %v3470
    %v3472 = vsel %vm184, %v3400, 0.0
    %v3473 = vrot.slane %v3472, 4
    %v3474 = vadd.f32 %v3472, %v3473
    %v3475 = vrot.slane %v3474, 2
    %v3476 = vadd.f32 %v3474, %v3475
    %v3477 = vrot.slane %v3476, 1
    %v3478 = vadd.f32 %v3476, %v3477
    %v3479 = vrcp.pop 8.0
    %v3480 = vmul.f32 %v3471, %v3479
    %v3481 = vmul.f32 %v3478, %v3479
    %v3484 = vsel %vm3404, %v3481, %v3480
    %vm3486 = vcmask 254976
    %3487 = vst.msk [vmem:[#allocation2] sm:$0x3] %vm3486, %v3484
    // Predicated region
    $region66: #{graph_attention_encoder.1} parent=1 // pred_check
      _
    $region67: #{graph_attention_encoder.1} parent=1 // pred_check_branch
      %3489 = sbr.rel (0) target = $region69
    $region68: #{graph_attention_encoder.1} parent=1 // pred_region
      _
    $region69: #{graph_attention_encoder.1} parent=1 // pred_fallthru
      _
    // Predicated region
    $region70: #{graph_attention_encoder.1} parent=1 // pred_check
      _
    $region71: #{graph_attention_encoder.1} parent=1 // pred_check_branch
      %3491 = sbr.rel (0) target = $region73
    $region72: #{graph_attention_encoder.1} parent=1 // pred_region
      %s3493 = ssub.s32 32, 32
      %3494 = vsyncadd [#allocation3], %s3493
      %s3496 = sshll.u32 [#allocation2], 4
      %s3497 = int_to_ptr.vmem [resolvable:$true] %s3496
      %3499 = dma.vmem_to_hbm [thread:$0]  %s3497, 32, %s17, [#allocation3]
    $region73: #{graph_attention_encoder.1} parent=1 // pred_fallthru
      _
    // Predicated region
    $region74: #{graph_attention_encoder.1} parent=1 // pred_check
      _
    $region75: #{graph_attention_encoder.1} parent=1 // pred_check_branch
      %3501 = sbr.rel (0) target = $region77
    $region76: #{graph_attention_encoder.1} parent=1 // pred_region
      _
    $region77: #{graph_attention_encoder.1} parent=1 // pred_fallthru
      _
    // Predicated region
    $region78: #{graph_attention_encoder.1} parent=1 // pred_check
      _
    $region79: #{graph_attention_encoder.1} parent=1 // pred_check_branch
      %3503 = sbr.rel (0) target = $region81
    $region80: #{graph_attention_encoder.1} parent=1 // pred_region
      %3504 = dma.done [#allocation3], 32
    $region81: #{graph_attention_encoder.1} parent=1 // pred_fallthru
      _
    %3505 = vsyncpa [#allocation3], 1

</llo_original>
